<compile_context>
chip_gen: v7x
topology: tpu7x:2x2x1
jax: 0.10.0
libtpu: 0.0.40
codegen_flags: <defaults>
</compile_context>

<pallas_src>
import functools

import jax
import jax.numpy as jnp
from jax import lax
from jax.experimental import pallas as pl
from jax.experimental.pallas import tpu as pltpu


# ----------------------------- Pallas kernel --------------------------------
def bilstm_kernel(x_ref, lens_ref,
                  w_ih_ref, b_ih_ref, whh_f_ref, whh_b_ref,
                  out_ref,
                  gx, out_b, hf, cf, hb, cb,
                  *, T, Bp, H):
    """Single-invocation bidirectional LSTM (whole sequence resident in VMEM).

    x_ref   : (T*Bp, E)  bf16 embedded tokens, sequence-major, rows [t*Bp, t*Bp+Bp)
    out_ref : (T*Bp, H)  f32 fwd + bwd summed hidden states (zeros at padding)
    """
    G = 4 * H

    # ---- hoisted, fused input projection: ONE MXU matmul over both dirs -----
    gx[...] = (jnp.dot(x_ref[...], w_ih_ref[...],
                       preferred_element_type=jnp.float32)
               + b_ih_ref[...])                                  # (T*Bp, 8H)

    # ---- init recurrent state ----------------------------------------------
    hf[...] = jnp.zeros_like(hf)
    cf[...] = jnp.zeros_like(cf)
    hb[...] = jnp.zeros_like(hb)
    cb[...] = jnp.zeros_like(cb)

    lens = lens_ref[...]                                         # (Bp, 1) int32

    def lstm_step(gates_x, h_ref, c_ref, whh_ref, valid):
        # Only the h @ W_hh matmul remains inside the recurrence (bf16 MXU).
        gates = gates_x + jnp.dot(h_ref[...].astype(jnp.bfloat16), whh_ref[...],
                                  preferred_element_type=jnp.float32)
        if G > 128:
            # 4H spans multiple vregs: only run the EUP on the slices needed.
            i = jax.nn.sigmoid(gates[:, 0:H])
            f = jax.nn.sigmoid(gates[:, H:2 * H])
            g = jnp.tanh(gates[:, 2 * H:3 * H])
            o = jax.nn.sigmoid(gates[:, 3 * H:4 * H])
        else:
            # 4H == 128: two full-width (one-vreg) EUP passes are optimal.
            sg = jax.nn.sigmoid(gates)
            tg = jnp.tanh(gates)
            i = sg[:, 0:H]
            f = sg[:, H:2 * H]
            g = tg[:, 2 * H:3 * H]
            o = sg[:, 3 * H:4 * H]
        c_new = f * c_ref[...] + i * g
        h_new = o * jnp.tanh(c_new)
        # packed-sequence semantics: padded steps neither update state nor emit
        c_ref[...] = jnp.where(valid, c_new, c_ref[...])
        h_ref[...] = jnp.where(valid, h_new, h_ref[...])
        return jnp.where(valid, h_new, 0.0)

    def body(t, carry):
        # forward direction: timestep t -> plain store into out_ref
        rf = pl.multiple_of(t * Bp, 8)
        of = lstm_step(gx[pl.ds(rf, Bp), 0:G], hf, cf, whh_f_ref, t < lens)
        out_ref[pl.ds(rf, Bp), :] = of
        # backward direction: timestep T-1-t -> plain store into out_b scratch
        tr = T - 1 - t
        rb = pl.multiple_of(tr * Bp, 8)
        ob = lstm_step(gx[pl.ds(rb, Bp), G:2 * G], hb, cb, whh_b_ref, tr < lens)
        out_b[pl.ds(rb, Bp), :] = ob
        return carry

    # Partially unrolled so the LLO scheduler can overlap MXU push/pop with
    # gate math without blowing up vreg pressure for long T.
    lax.fori_loop(0, T, body, 0, unroll=min(T, 8))

    # ---- single contiguous pass: sum the two directions ---------------------
    out_ref[...] = out_ref[...] + out_b[...]


def _vmem_estimate_bytes(T, Bp, E, H):
    """Rough (lane/sublane-padded) VMEM footprint of the resident design."""
    lane = lambda n: ((n + 127) // 128) * 128
    sub = lambda n: ((n + 7) // 8) * 8
    b = 0
    b += sub(T * Bp) * lane(E) * 2                 # x (bf16)
    b += sub(Bp) * lane(1) * 4                     # lens
    b += sub(E) * lane(8 * H) * 2                  # W_ih (bf16)
    b += sub(1) * lane(8 * H) * 4                  # bias
    b += 2 * sub(H) * lane(4 * H) * 2              # W_hh f/b (bf16)
    b += sub(T * Bp) * lane(H) * 4                 # out
    b += sub(T * Bp) * lane(8 * H) * 4             # gx scratch
    b += sub(T * Bp) * lane(H) * 4                 # out_b scratch
    b += 4 * sub(Bp) * lane(H) * 4                 # hf/cf/hb/cb
    return b


def bilstm_pallas(emb, lengths, prep):
    """emb: (T, B, E) f32; lengths: (B,) int -> (T, B, H) f32 (fwd+bwd sum)."""
    T, B, E = emb.shape
    H = prep["H"]

    # Pad batch to a multiple of 8 sublanes; padded rows get length 0 so they
    # never update state and always emit zeros (sliced off below).
    Bp = max(8, ((B + 7) // 8) * 8)
    lengths = lengths.astype(jnp.int32)
    if Bp != B:
        emb = jnp.pad(emb, ((0, 0), (0, Bp - B), (0, 0)))
        lengths = jnp.pad(lengths, (0, Bp - B))

    x2 = emb.reshape(T * Bp, E).astype(jnp.bfloat16)
    lens2 = lengths.reshape(Bp, 1)

    est = _vmem_estimate_bytes(T, Bp, E, H)
    # TODO(synk): above ~24 MiB switch to a T-chunked grid instead of raising.
    vmem_limit = int(min(max(2 * est + (4 << 20), 8 << 20), 32 << 20))

    vmem = pl.BlockSpec(memory_space=pltpu.MemorySpace.VMEM)
    kernel = functools.partial(bilstm_kernel, T=T, Bp=Bp, H=H)

    out2 = pl.pallas_call(
        kernel,
        out_shape=jax.ShapeDtypeStruct((T * Bp, H), jnp.float32),
        in_specs=[vmem] * 6,
        out_specs=vmem,
        scratch_shapes=[
            pltpu.VMEM((T * Bp, 8 * H), jnp.float32),   # gx (fused gate buffer)
            pltpu.VMEM((T * Bp, H), jnp.float32),       # out_b (bwd direction)
            pltpu.VMEM((Bp, H), jnp.float32),           # hf
            pltpu.VMEM((Bp, H), jnp.float32),           # cf
            pltpu.VMEM((Bp, H), jnp.float32),           # hb
            pltpu.VMEM((Bp, H), jnp.float32),           # cb
        ],
        compiler_params=pltpu.CompilerParams(vmem_limit_bytes=vmem_limit),
    )(x2, lens2, prep["w_ih"], prep["b_ih"], prep["whh_f"], prep["whh_b"])

    return out2.reshape(T, Bp, H)[:, :B, :]


# ------------------------------- glue / params ------------------------------
def init_params(key, input_dim, emb_dim, enc_hid_dim, pad_idx):
    ks = jax.random.split(key, 9)
    s = 1.0 / jnp.sqrt(enc_hid_dim)
    emb = 0.1 * jax.random.normal(ks[0], (input_dim, emb_dim), jnp.float32)
    emb = emb.at[pad_idx].set(0.0)  # padding_idx row is zero
    u = lambda k, shape: jax.random.uniform(k, shape, jnp.float32, -s, s)
    return {
        "embedding": emb,
        "wih_f": u(ks[1], (4 * enc_hid_dim, emb_dim)),
        "whh_f": u(ks[2], (4 * enc_hid_dim, enc_hid_dim)),
        "b_f":   u(ks[3], (4 * enc_hid_dim,)),
        "wih_b": u(ks[4], (4 * enc_hid_dim, emb_dim)),
        "whh_b": u(ks[5], (4 * enc_hid_dim, enc_hid_dim)),
        "b_b":   u(ks[6], (4 * enc_hid_dim,)),
    }


def prepare_encoder_weights(params):
    """One-time weight prep: transpose, fuse fwd|bwd input weights, cast bf16."""
    H = params["whh_f"].shape[1]          # whh is (4H, H)
    assert params["whh_f"].shape[0] == 4 * H
    w_ih = jnp.concatenate([params["wih_f"].T, params["wih_b"].T], axis=1)   # (E, 8H)
    b_ih = jnp.concatenate([params["b_f"], params["b_b"]]).reshape(1, -1)    # (1, 8H)
    return {
        "H": H,
        "embedding": params["embedding"],
        "w_ih": w_ih.astype(jnp.bfloat16),
        "b_ih": b_ih.astype(jnp.float32),
        "whh_f": params["whh_f"].T.astype(jnp.bfloat16),   # (H, 4H)
        "whh_b": params["whh_b"].T.astype(jnp.bfloat16),
    }


def encoder_forward(token_ids, lengths, prep):
    # Embedding lookup done as glue (padding_idx row already zero).
    # TODO(synk): optionally fuse the gather into the kernel via scalar-prefetch
    # row indices; marginal at E=16.
    emb = jnp.take(prep["embedding"], token_ids, axis=0)   # (T, B, E)
    # self.dropout(...) is identity in eval mode
    return bilstm_pallas(emb, lengths, prep)


# pure-JAX reference (mirrors packed-sequence LSTM semantics) for verification
def encoder_reference(token_ids, lengths, params):
    T, B = token_ids.shape
    H = params["whh_f"].shape[1]          # whh is (4H, H)
    emb = jnp.take(params["embedding"], token_ids, axis=0)

    def direction(wih, whh, b, reverse):
        def step(carry, inp):
            h, c = carry
            x_t, t = inp
            gates = x_t @ wih.T + h @ whh.T + b
            i = jax.nn.sigmoid(gates[:, 0:H])
            f = jax.nn.sigmoid(gates[:, H:2 * H])
            g = jnp.tanh(gates[:, 2 * H:3 * H])
            o = jax.nn.sigmoid(gates[:, 3 * H:4 * H])
            c_new = f * c + i * g
            h_new = o * jnp.tanh(c_new)
            valid = (t < lengths)[:, None]
            c = jnp.where(valid, c_new, c)
            h = jnp.where(valid, h_new, h)
            return (h, c), jnp.where(valid, h_new, 0.0)

        ts = jnp.arange(T)
        h0 = jnp.zeros((B, H), jnp.float32)
        _, outs = jax.lax.scan(step, (h0, h0), (emb, ts), reverse=reverse)
        return outs

    out_f = direction(params["wih_f"], params["whh_f"], params["b_f"], False)
    out_b = direction(params["wih_b"], params["whh_b"], params["b_b"], True)
    return out_f + out_b


if __name__ == "__main__":
    # Encoder(input_dim=32, emb_dim=16, enc_hid_dim=32, num_layers=1,
    #         enc_dropout=0.0, bidirectional=True, pad_idx=0, repr_layer='rnn1')
    V, E, H, PAD = 32, 16, 32, 0
    T, B = 8, 2

    key = jax.random.PRNGKey(0)
    kp, kx = jax.random.split(key)
    params = init_params(kp, V, E, H, PAD)
    prep = prepare_encoder_weights(params)   # one-time weight prep (no per-call .T)

    lengths = jnp.array([8, 5], dtype=jnp.int32)           # sorted descending
    token_ids = jax.random.randint(kx, (T, B), 1, V, jnp.int32)
    t_idx = jnp.arange(T)[:, None]
    token_ids = jnp.where(t_idx < lengths[None, :], token_ids, PAD)  # pad tail

    out = jax.block_until_ready(encoder_forward(token_ids, lengths, prep))
    ref = jax.block_until_ready(encoder_reference(token_ids, lengths, params))

    assert out.shape == (T, B, H) and out.dtype == jnp.float32
    # padded positions of the shorter sequence must be exactly zero
    assert bool(jnp.all(out[5:, 1, :] == 0.0))
    # bf16 MXU operands (f32 accumulation) -> 2e-2 tolerance vs f32 reference
    assert bool(jnp.allclose(out, ref, rtol=2e-2, atol=2e-2))
    print("KERNEL_OK")
</pallas_src>

<mosaic_0001>
module attributes {stable_mosaic.version = 11 : i64} {
  func.func @bilstm_kernel(%arg0: memref<64x16xbf16, #tpu.memory_space<vmem>>, %arg1: memref<8x1xi32, #tpu.memory_space<vmem>>, %arg2: memref<16x256xbf16, #tpu.memory_space<vmem>>, %arg3: memref<1x256xf32, #tpu.memory_space<vmem>>, %arg4: memref<32x128xbf16, #tpu.memory_space<vmem>>, %arg5: memref<32x128xbf16, #tpu.memory_space<vmem>>, %arg6: memref<64x32xf32, #tpu.memory_space<vmem>>, %arg7: memref<64x256xf32, #tpu.memory_space<vmem>>, %arg8: memref<64x32xf32, #tpu.memory_space<vmem>>, %arg9: memref<8x32xf32, #tpu.memory_space<vmem>>, %arg10: memref<8x32xf32, #tpu.memory_space<vmem>>, %arg11: memref<8x32xf32, #tpu.memory_space<vmem>>, %arg12: memref<8x32xf32, #tpu.memory_space<vmem>>) attributes {dimension_semantics = [], scalar_prefetch = 0 : i64, scratch_operands = 6 : i64, tpu.core_type = #tpu.core_type<tc>} {
    %c0 = arith.constant 0 : index
    %c0_0 = arith.constant 0 : index
    %0 = vector.load %arg0[%c0, %c0_0] : memref<64x16xbf16, #tpu.memory_space<vmem>>, vector<64x16xbf16>
    %c0_1 = arith.constant 0 : index
    %c0_2 = arith.constant 0 : index
    %1 = vector.load %arg2[%c0_1, %c0_2] : memref<16x256xbf16, #tpu.memory_space<vmem>>, vector<16x256xbf16>
    %cst = arith.constant dense<0.000000e+00> : vector<64x256xf32>
    %2 = tpu.matmul %0, %1, %cst {dimension_numbers = #tpu.dot_dimension_numbers<[1], [0], [0], [1], [0, 0, 1, 1], [], []>} : vector<64x16xbf16>, vector<16x256xbf16>, vector<64x256xf32> -> vector<64x256xf32>
    %c0_3 = arith.constant 0 : index
    %c0_4 = arith.constant 0 : index
    %3 = vector.load %arg3[%c0_3, %c0_4] : memref<1x256xf32, #tpu.memory_space<vmem>>, vector<1x256xf32>
    %4 = vector.broadcast %3 : vector<1x256xf32> to vector<64x256xf32>
    %5 = arith.addf %2, %4 : vector<64x256xf32>
    %c0_5 = arith.constant 0 : index
    %c0_6 = arith.constant 0 : index
    %6 = vector.load %arg7[%c0_5, %c0_6] : memref<64x256xf32, #tpu.memory_space<vmem>>, vector<64x256xf32>
    tpu.vector_store %arg7[%c0_5, %c0_6], %5 {strides = array<i32>} : memref<64x256xf32, #tpu.memory_space<vmem>>, vector<64x256xf32>,
    %cst_7 = arith.constant 0.000000e+00 : f32
    %7 = vector.broadcast %cst_7 : f32 to vector<8x32xf32>
    %c0_8 = arith.constant 0 : index
    %c0_9 = arith.constant 0 : index
    %8 = vector.load %arg9[%c0_8, %c0_9] : memref<8x32xf32, #tpu.memory_space<vmem>>, vector<8x32xf32>
    tpu.vector_store %arg9[%c0_8, %c0_9], %7 {strides = array<i32>} : memref<8x32xf32, #tpu.memory_space<vmem>>, vector<8x32xf32>,
    %cst_10 = arith.constant 0.000000e+00 : f32
    %9 = vector.broadcast %cst_10 : f32 to vector<8x32xf32>
    %c0_11 = arith.constant 0 : index
    %c0_12 = arith.constant 0 : index
    %10 = vector.load %arg10[%c0_11, %c0_12] : memref<8x32xf32, #tpu.memory_space<vmem>>, vector<8x32xf32>
    tpu.vector_store %arg10[%c0_11, %c0_12], %9 {strides = array<i32>} : memref<8x32xf32, #tpu.memory_space<vmem>>, vector<8x32xf32>,
    %cst_13 = arith.constant 0.000000e+00 : f32
    %11 = vector.broadcast %cst_13 : f32 to vector<8x32xf32>
    %c0_14 = arith.constant 0 : index
    %c0_15 = arith.constant 0 : index
    %12 = vector.load %arg11[%c0_14, %c0_15] : memref<8x32xf32, #tpu.memory_space<vmem>>, vector<8x32xf32>
    tpu.vector_store %arg11[%c0_14, %c0_15], %11 {strides = array<i32>} : memref<8x32xf32, #tpu.memory_space<vmem>>, vector<8x32xf32>,
    %cst_16 = arith.constant 0.000000e+00 : f32
    %13 = vector.broadcast %cst_16 : f32 to vector<8x32xf32>
    %c0_17 = arith.constant 0 : index
    %c0_18 = arith.constant 0 : index
    %14 = vector.load %arg12[%c0_17, %c0_18] : memref<8x32xf32, #tpu.memory_space<vmem>>, vector<8x32xf32>
    tpu.vector_store %arg12[%c0_17, %c0_18], %13 {strides = array<i32>} : memref<8x32xf32, #tpu.memory_space<vmem>>, vector<8x32xf32>,
    %c0_19 = arith.constant 0 : index
    %c0_20 = arith.constant 0 : index
    %15 = vector.load %arg1[%c0_19, %c0_20] : memref<8x1xi32, #tpu.memory_space<vmem>>, vector<8x1xi32>
    %c0_i32 = arith.constant 0 : i32
    %c8_i32 = arith.constant 8 : i32
    %16 = arith.muli %c0_i32, %c8_i32 : i32
    %17 = tpu.assume_multiple %16, 8 : i32
    %18 = arith.index_cast %17 : i32 to index
    %c0_21 = arith.constant 0 : index
    %19 = vector.load %arg7[%18, %c0_21] : memref<64x256xf32, #tpu.memory_space<vmem>>, vector<8x128xf32>
    %20 = vector.broadcast %c0_i32 : i32 to vector<8x1xi32>
    %21 = arith.cmpi slt, %20, %15 : vector<8x1xi32>
    %c0_22 = arith.constant 0 : index
    %c0_23 = arith.constant 0 : index
    %22 = vector.load %arg9[%c0_22, %c0_23] : memref<8x32xf32, #tpu.memory_space<vmem>>, vector<8x32xf32>
    %23 = arith.truncf %22 : vector<8x32xf32> to vector<8x32xbf16>
    %c0_24 = arith.constant 0 : index
    %c0_25 = arith.constant 0 : index
    %24 = vector.load %arg4[%c0_24, %c0_25] : memref<32x128xbf16, #tpu.memory_space<vmem>>, vector<32x128xbf16>
    %cst_26 = arith.constant dense<0.000000e+00> : vector<8x128xf32>
    %25 = tpu.matmul %23, %24, %cst_26 {dimension_numbers = #tpu.dot_dimension_numbers<[1], [0], [0], [1], [0, 0, 1, 1], [], []>} : vector<8x32xbf16>, vector<32x128xbf16>, vector<8x128xf32> -> vector<8x128xf32>
    %26 = arith.addf %19, %25 : vector<8x128xf32>
    %27 = arith.negf %26 : vector<8x128xf32>
    %28 = math.exp %27 : vector<8x128xf32>
    %cst_27 = arith.constant 1.000000e+00 : f32
    %29 = vector.broadcast %cst_27 : f32 to vector<8x128xf32>
    %30 = arith.addf %29, %28 : vector<8x128xf32>
    %31 = arith.divf %29, %30 : vector<8x128xf32>
    %32 = math.tanh %26 : vector<8x128xf32>
    %33 = vector.extract_strided_slice %31 {offsets = [0, 0], sizes = [8, 32], strides = [1, 1]} : vector<8x128xf32> to vector<8x32xf32>
    %34 = vector.extract_strided_slice %31 {offsets = [0, 32], sizes = [8, 32], strides = [1, 1]} : vector<8x128xf32> to vector<8x32xf32>
    %35 = vector.extract_strided_slice %32 {offsets = [0, 64], sizes = [8, 32], strides = [1, 1]} : vector<8x128xf32> to vector<8x32xf32>
    %36 = vector.extract_strided_slice %31 {offsets = [0, 96], sizes = [8, 32], strides = [1, 1]} : vector<8x128xf32> to vector<8x32xf32>
    %c0_28 = arith.constant 0 : index
    %c0_29 = arith.constant 0 : index
    %37 = vector.load %arg10[%c0_28, %c0_29] : memref<8x32xf32, #tpu.memory_space<vmem>>, vector<8x32xf32>
    %38 = arith.mulf %34, %37 : vector<8x32xf32>
    %39 = arith.mulf %33, %35 : vector<8x32xf32>
    %40 = arith.addf %38, %39 : vector<8x32xf32>
    %41 = math.tanh %40 : vector<8x32xf32>
    %42 = arith.mulf %36, %41 : vector<8x32xf32>
    %c0_30 = arith.constant 0 : index
    %c0_31 = arith.constant 0 : index
    %43 = vector.load %arg10[%c0_30, %c0_31] : memref<8x32xf32, #tpu.memory_space<vmem>>, vector<8x32xf32>
    %44 = vector.shape_cast %21 : vector<8x1xi1> to vector<8x1xi1>
    %45 = vector.broadcast %44 : vector<8x1xi1> to vector<8x32xi1>
    %46 = arith.select %45, %40, %43 : vector<8x32xi1>, vector<8x32xf32>
    %c0_32 = arith.constant 0 : index
    %c0_33 = arith.constant 0 : index
    %47 = vector.load %arg10[%c0_32, %c0_33] : memref<8x32xf32, #tpu.memory_space<vmem>>, vector<8x32xf32>
    tpu.vector_store %arg10[%c0_32, %c0_33], %46 {strides = array<i32>} : memref<8x32xf32, #tpu.memory_space<vmem>>, vector<8x32xf32>,
    %c0_34 = arith.constant 0 : index
    %c0_35 = arith.constant 0 : index
    %48 = vector.load %arg9[%c0_34, %c0_35] : memref<8x32xf32, #tpu.memory_space<vmem>>, vector<8x32xf32>
    %49 = vector.shape_cast %21 : vector<8x1xi1> to vector<8x1xi1>
    %50 = vector.broadcast %49 : vector<8x1xi1> to vector<8x32xi1>
    %51 = arith.select %50, %42, %48 : vector<8x32xi1>, vector<8x32xf32>
    %c0_36 = arith.constant 0 : index
    %c0_37 = arith.constant 0 : index
    %52 = vector.load %arg9[%c0_36, %c0_37] : memref<8x32xf32, #tpu.memory_space<vmem>>, vector<8x32xf32>
    tpu.vector_store %arg9[%c0_36, %c0_37], %51 {strides = array<i32>} : memref<8x32xf32, #tpu.memory_space<vmem>>, vector<8x32xf32>,
    %cst_38 = arith.constant 0.000000e+00 : f32
    %53 = vector.shape_cast %21 : vector<8x1xi1> to vector<8x1xi1>
    %54 = vector.broadcast %53 : vector<8x1xi1> to vector<8x32xi1>
    %55 = vector.broadcast %cst_38 : f32 to vector<8x32xf32>
    %56 = arith.select %54, %42, %55 : vector<8x32xi1>, vector<8x32xf32>
    %57 = arith.index_cast %17 : i32 to index
    %c0_39 = arith.constant 0 : index
    %58 = vector.load %arg6[%57, %c0_39] : memref<64x32xf32, #tpu.memory_space<vmem>>, vector<8x32xf32>
    tpu.vector_store %arg6[%57, %c0_39], %56 {strides = array<i32>} : memref<64x32xf32, #tpu.memory_space<vmem>>, vector<8x32xf32>,
    %c7_i32 = arith.constant 7 : i32
    %59 = arith.subi %c7_i32, %c0_i32 : i32
    %c8_i32_40 = arith.constant 8 : i32
    %60 = arith.muli %59, %c8_i32_40 : i32
    %61 = tpu.assume_multiple %60, 8 : i32
    %62 = arith.index_cast %61 : i32 to index
    %c128 = arith.constant 128 : index
    %63 = vector.load %arg7[%62, %c128] : memref<64x256xf32, #tpu.memory_space<vmem>>, vector<8x128xf32>
    %64 = vector.broadcast %59 : i32 to vector<8x1xi32>
    %65 = arith.cmpi slt, %64, %15 : vector<8x1xi32>
    %c0_41 = arith.constant 0 : index
    %c0_42 = arith.constant 0 : index
    %66 = vector.load %arg11[%c0_41, %c0_42] : memref<8x32xf32, #tpu.memory_space<vmem>>, vector<8x32xf32>
    %67 = arith.truncf %66 : vector<8x32xf32> to vector<8x32xbf16>
    %c0_43 = arith.constant 0 : index
    %c0_44 = arith.constant 0 : index
    %68 = vector.load %arg5[%c0_43, %c0_44] : memref<32x128xbf16, #tpu.memory_space<vmem>>, vector<32x128xbf16>
    %cst_45 = arith.constant dense<0.000000e+00> : vector<8x128xf32>
    %69 = tpu.matmul %67, %68, %cst_45 {dimension_numbers = #tpu.dot_dimension_numbers<[1], [0], [0], [1], [0, 0, 1, 1], [], []>} : vector<8x32xbf16>, vector<32x128xbf16>, vector<8x128xf32> -> vector<8x128xf32>
    %70 = arith.addf %63, %69 : vector<8x128xf32>
    %71 = arith.negf %70 : vector<8x128xf32>
    %72 = math.exp %71 : vector<8x128xf32>
    %cst_46 = arith.constant 1.000000e+00 : f32
    %73 = vector.broadcast %cst_46 : f32 to vector<8x128xf32>
    %74 = arith.addf %73, %72 : vector<8x128xf32>
    %75 = arith.divf %73, %74 : vector<8x128xf32>
    %76 = math.tanh %70 : vector<8x128xf32>
    %77 = vector.extract_strided_slice %75 {offsets = [0, 0], sizes = [8, 32], strides = [1, 1]} : vector<8x128xf32> to vector<8x32xf32>
    %78 = vector.extract_strided_slice %75 {offsets = [0, 32], sizes = [8, 32], strides = [1, 1]} : vector<8x128xf32> to vector<8x32xf32>
    %79 = vector.extract_strided_slice %76 {offsets = [0, 64], sizes = [8, 32], strides = [1, 1]} : vector<8x128xf32> to vector<8x32xf32>
    %80 = vector.extract_strided_slice %75 {offsets = [0, 96], sizes = [8, 32], strides = [1, 1]} : vector<8x128xf32> to vector<8x32xf32>
    %c0_47 = arith.constant 0 : index
    %c0_48 = arith.constant 0 : index
    %81 = vector.load %arg12[%c0_47, %c0_48] : memref<8x32xf32, #tpu.memory_space<vmem>>, vector<8x32xf32>
    %82 = arith.mulf %78, %81 : vector<8x32xf32>
    %83 = arith.mulf %77, %79 : vector<8x32xf32>
    %84 = arith.addf %82, %83 : vector<8x32xf32>
    %85 = math.tanh %84 : vector<8x32xf32>
    %86 = arith.mulf %80, %85 : vector<8x32xf32>
    %c0_49 = arith.constant 0 : index
    %c0_50 = arith.constant 0 : index
    %87 = vector.load %arg12[%c0_49, %c0_50] : memref<8x32xf32, #tpu.memory_space<vmem>>, vector<8x32xf32>
    %88 = vector.shape_cast %65 : vector<8x1xi1> to vector<8x1xi1>
    %89 = vector.broadcast %88 : vector<8x1xi1> to vector<8x32xi1>
    %90 = arith.select %89, %84, %87 : vector<8x32xi1>, vector<8x32xf32>
    %c0_51 = arith.constant 0 : index
    %c0_52 = arith.constant 0 : index
    %91 = vector.load %arg12[%c0_51, %c0_52] : memref<8x32xf32, #tpu.memory_space<vmem>>, vector<8x32xf32>
    tpu.vector_store %arg12[%c0_51, %c0_52], %90 {strides = array<i32>} : memref<8x32xf32, #tpu.memory_space<vmem>>, vector<8x32xf32>,
    %c0_53 = arith.constant 0 : index
    %c0_54 = arith.constant 0 : index
    %92 = vector.load %arg11[%c0_53, %c0_54] : memref<8x32xf32, #tpu.memory_space<vmem>>, vector<8x32xf32>
    %93 = vector.shape_cast %65 : vector<8x1xi1> to vector<8x1xi1>
    %94 = vector.broadcast %93 : vector<8x1xi1> to vector<8x32xi1>
    %95 = arith.select %94, %86, %92 : vector<8x32xi1>, vector<8x32xf32>
    %c0_55 = arith.constant 0 : index
    %c0_56 = arith.constant 0 : index
    %96 = vector.load %arg11[%c0_55, %c0_56] : memref<8x32xf32, #tpu.memory_space<vmem>>, vector<8x32xf32>
    tpu.vector_store %arg11[%c0_55, %c0_56], %95 {strides = array<i32>} : memref<8x32xf32, #tpu.memory_space<vmem>>, vector<8x32xf32>,
    %cst_57 = arith.constant 0.000000e+00 : f32
    %97 = vector.shape_cast %65 : vector<8x1xi1> to vector<8x1xi1>
    %98 = vector.broadcast %97 : vector<8x1xi1> to vector<8x32xi1>
    %99 = vector.broadcast %cst_57 : f32 to vector<8x32xf32>
    %100 = arith.select %98, %86, %99 : vector<8x32xi1>, vector<8x32xf32>
    %101 = arith.index_cast %61 : i32 to index
    %c0_58 = arith.constant 0 : index
    %102 = vector.load %arg8[%101, %c0_58] : memref<64x32xf32, #tpu.memory_space<vmem>>, vector<8x32xf32>
    tpu.vector_store %arg8[%101, %c0_58], %100 {strides = array<i32>} : memref<64x32xf32, #tpu.memory_space<vmem>>, vector<8x32xf32>,
    %c1_i32 = arith.constant 1 : i32
    %c8_i32_59 = arith.constant 8 : i32
    %103 = arith.muli %c1_i32, %c8_i32_59 : i32
    %104 = tpu.assume_multiple %103, 8 : i32
    %105 = arith.index_cast %104 : i32 to index
    %c0_60 = arith.constant 0 : index
    %106 = vector.load %arg7[%105, %c0_60] : memref<64x256xf32, #tpu.memory_space<vmem>>, vector<8x128xf32>
    %107 = vector.broadcast %c1_i32 : i32 to vector<8x1xi32>
    %108 = arith.cmpi slt, %107, %15 : vector<8x1xi32>
    %c0_61 = arith.constant 0 : index
    %c0_62 = arith.constant 0 : index
    %109 = vector.load %arg9[%c0_61, %c0_62] : memref<8x32xf32, #tpu.memory_space<vmem>>, vector<8x32xf32>
    %110 = arith.truncf %109 : vector<8x32xf32> to vector<8x32xbf16>
    %c0_63 = arith.constant 0 : index
    %c0_64 = arith.constant 0 : index
    %111 = vector.load %arg4[%c0_63, %c0_64] : memref<32x128xbf16, #tpu.memory_space<vmem>>, vector<32x128xbf16>
    %cst_65 = arith.constant dense<0.000000e+00> : vector<8x128xf32>
    %112 = tpu.matmul %110, %111, %cst_65 {dimension_numbers = #tpu.dot_dimension_numbers<[1], [0], [0], [1], [0, 0, 1, 1], [], []>} : vector<8x32xbf16>, vector<32x128xbf16>, vector<8x128xf32> -> vector<8x128xf32>
    %113 = arith.addf %106, %112 : vector<8x128xf32>
    %114 = arith.negf %113 : vector<8x128xf32>
    %115 = math.exp %114 : vector<8x128xf32>
    %cst_66 = arith.constant 1.000000e+00 : f32
    %116 = vector.broadcast %cst_66 : f32 to vector<8x128xf32>
    %117 = arith.addf %116, %115 : vector<8x128xf32>
    %118 = arith.divf %116, %117 : vector<8x128xf32>
    %119 = math.tanh %113 : vector<8x128xf32>
    %120 = vector.extract_strided_slice %118 {offsets = [0, 0], sizes = [8, 32], strides = [1, 1]} : vector<8x128xf32> to vector<8x32xf32>
    %121 = vector.extract_strided_slice %118 {offsets = [0, 32], sizes = [8, 32], strides = [1, 1]} : vector<8x128xf32> to vector<8x32xf32>
    %122 = vector.extract_strided_slice %119 {offsets = [0, 64], sizes = [8, 32], strides = [1, 1]} : vector<8x128xf32> to vector<8x32xf32>
    %123 = vector.extract_strided_slice %118 {offsets = [0, 96], sizes = [8, 32], strides = [1, 1]} : vector<8x128xf32> to vector<8x32xf32>
    %c0_67 = arith.constant 0 : index
    %c0_68 = arith.constant 0 : index
    %124 = vector.load %arg10[%c0_67, %c0_68] : memref<8x32xf32, #tpu.memory_space<vmem>>, vector<8x32xf32>
    %125 = arith.mulf %121, %124 : vector<8x32xf32>
    %126 = arith.mulf %120, %122 : vector<8x32xf32>
    %127 = arith.addf %125, %126 : vector<8x32xf32>
    %128 = math.tanh %127 : vector<8x32xf32>
    %129 = arith.mulf %123, %128 : vector<8x32xf32>
    %c0_69 = arith.constant 0 : index
    %c0_70 = arith.constant 0 : index
    %130 = vector.load %arg10[%c0_69, %c0_70] : memref<8x32xf32, #tpu.memory_space<vmem>>, vector<8x32xf32>
    %131 = vector.shape_cast %108 : vector<8x1xi1> to vector<8x1xi1>
    %132 = vector.broadcast %131 : vector<8x1xi1> to vector<8x32xi1>
    %133 = arith.select %132, %127, %130 : vector<8x32xi1>, vector<8x32xf32>
    %c0_71 = arith.constant 0 : index
    %c0_72 = arith.constant 0 : index
    %134 = vector.load %arg10[%c0_71, %c0_72] : memref<8x32xf32, #tpu.memory_space<vmem>>, vector<8x32xf32>
    tpu.vector_store %arg10[%c0_71, %c0_72], %133 {strides = array<i32>} : memref<8x32xf32, #tpu.memory_space<vmem>>, vector<8x32xf32>,
    %c0_73 = arith.constant 0 : index
    %c0_74 = arith.constant 0 : index
    %135 = vector.load %arg9[%c0_73, %c0_74] : memref<8x32xf32, #tpu.memory_space<vmem>>, vector<8x32xf32>
    %136 = vector.shape_cast %108 : vector<8x1xi1> to vector<8x1xi1>
    %137 = vector.broadcast %136 : vector<8x1xi1> to vector<8x32xi1>
    %138 = arith.select %137, %129, %135 : vector<8x32xi1>, vector<8x32xf32>
    %c0_75 = arith.constant 0 : index
    %c0_76 = arith.constant 0 : index
    %139 = vector.load %arg9[%c0_75, %c0_76] : memref<8x32xf32, #tpu.memory_space<vmem>>, vector<8x32xf32>
    tpu.vector_store %arg9[%c0_75, %c0_76], %138 {strides = array<i32>} : memref<8x32xf32, #tpu.memory_space<vmem>>, vector<8x32xf32>,
    %cst_77 = arith.constant 0.000000e+00 : f32
    %140 = vector.shape_cast %108 : vector<8x1xi1> to vector<8x1xi1>
    %141 = vector.broadcast %140 : vector<8x1xi1> to vector<8x32xi1>
    %142 = vector.broadcast %cst_77 : f32 to vector<8x32xf32>
    %143 = arith.select %141, %129, %142 : vector<8x32xi1>, vector<8x32xf32>
    %144 = arith.index_cast %104 : i32 to index
    %c0_78 = arith.constant 0 : index
    %145 = vector.load %arg6[%144, %c0_78] : memref<64x32xf32, #tpu.memory_space<vmem>>, vector<8x32xf32>
    tpu.vector_store %arg6[%144, %c0_78], %143 {strides = array<i32>} : memref<64x32xf32, #tpu.memory_space<vmem>>, vector<8x32xf32>,
    %c7_i32_79 = arith.constant 7 : i32
    %146 = arith.subi %c7_i32_79, %c1_i32 : i32
    %c8_i32_80 = arith.constant 8 : i32
    %147 = arith.muli %146, %c8_i32_80 : i32
    %148 = tpu.assume_multiple %147, 8 : i32
    %149 = arith.index_cast %148 : i32 to index
    %c128_81 = arith.constant 128 : index
    %150 = vector.load %arg7[%149, %c128_81] : memref<64x256xf32, #tpu.memory_space<vmem>>, vector<8x128xf32>
    %151 = vector.broadcast %146 : i32 to vector<8x1xi32>
    %152 = arith.cmpi slt, %151, %15 : vector<8x1xi32>
    %c0_82 = arith.constant 0 : index
    %c0_83 = arith.constant 0 : index
    %153 = vector.load %arg11[%c0_82, %c0_83] : memref<8x32xf32, #tpu.memory_space<vmem>>, vector<8x32xf32>
    %154 = arith.truncf %153 : vector<8x32xf32> to vector<8x32xbf16>
    %c0_84 = arith.constant 0 : index
    %c0_85 = arith.constant 0 : index
    %155 = vector.load %arg5[%c0_84, %c0_85] : memref<32x128xbf16, #tpu.memory_space<vmem>>, vector<32x128xbf16>
    %cst_86 = arith.constant dense<0.000000e+00> : vector<8x128xf32>
    %156 = tpu.matmul %154, %155, %cst_86 {dimension_numbers = #tpu.dot_dimension_numbers<[1], [0], [0], [1], [0, 0, 1, 1], [], []>} : vector<8x32xbf16>, vector<32x128xbf16>, vector<8x128xf32> -> vector<8x128xf32>
    %157 = arith.addf %150, %156 : vector<8x128xf32>
    %158 = arith.negf %157 : vector<8x128xf32>
    %159 = math.exp %158 : vector<8x128xf32>
    %cst_87 = arith.constant 1.000000e+00 : f32
    %160 = vector.broadcast %cst_87 : f32 to vector<8x128xf32>
    %161 = arith.addf %160, %159 : vector<8x128xf32>
    %162 = arith.divf %160, %161 : vector<8x128xf32>
    %163 = math.tanh %157 : vector<8x128xf32>
    %164 = vector.extract_strided_slice %162 {offsets = [0, 0], sizes = [8, 32], strides = [1, 1]} : vector<8x128xf32> to vector<8x32xf32>
    %165 = vector.extract_strided_slice %162 {offsets = [0, 32], sizes = [8, 32], strides = [1, 1]} : vector<8x128xf32> to vector<8x32xf32>
    %166 = vector.extract_strided_slice %163 {offsets = [0, 64], sizes = [8, 32], strides = [1, 1]} : vector<8x128xf32> to vector<8x32xf32>
    %167 = vector.extract_strided_slice %162 {offsets = [0, 96], sizes = [8, 32], strides = [1, 1]} : vector<8x128xf32> to vector<8x32xf32>
    %c0_88 = arith.constant 0 : index
    %c0_89 = arith.constant 0 : index
    %168 = vector.load %arg12[%c0_88, %c0_89] : memref<8x32xf32, #tpu.memory_space<vmem>>, vector<8x32xf32>
    %169 = arith.mulf %165, %168 : vector<8x32xf32>
    %170 = arith.mulf %164, %166 : vector<8x32xf32>
    %171 = arith.addf %169, %170 : vector<8x32xf32>
    %172 = math.tanh %171 : vector<8x32xf32>
    %173 = arith.mulf %167, %172 : vector<8x32xf32>
    %c0_90 = arith.constant 0 : index
    %c0_91 = arith.constant 0 : index
    %174 = vector.load %arg12[%c0_90, %c0_91] : memref<8x32xf32, #tpu.memory_space<vmem>>, vector<8x32xf32>
    %175 = vector.shape_cast %152 : vector<8x1xi1> to vector<8x1xi1>
    %176 = vector.broadcast %175 : vector<8x1xi1> to vector<8x32xi1>
    %177 = arith.select %176, %171, %174 : vector<8x32xi1>, vector<8x32xf32>
    %c0_92 = arith.constant 0 : index
    %c0_93 = arith.constant 0 : index
    %178 = vector.load %arg12[%c0_92, %c0_93] : memref<8x32xf32, #tpu.memory_space<vmem>>, vector<8x32xf32>
    tpu.vector_store %arg12[%c0_92, %c0_93], %177 {strides = array<i32>} : memref<8x32xf32, #tpu.memory_space<vmem>>, vector<8x32xf32>,
    %c0_94 = arith.constant 0 : index
    %c0_95 = arith.constant 0 : index
    %179 = vector.load %arg11[%c0_94, %c0_95] : memref<8x32xf32, #tpu.memory_space<vmem>>, vector<8x32xf32>
    %180 = vector.shape_cast %152 : vector<8x1xi1> to vector<8x1xi1>
    %181 = vector.broadcast %180 : vector<8x1xi1> to vector<8x32xi1>
    %182 = arith.select %181, %173, %179 : vector<8x32xi1>, vector<8x32xf32>
    %c0_96 = arith.constant 0 : index
    %c0_97 = arith.constant 0 : index
    %183 = vector.load %arg11[%c0_96, %c0_97] : memref<8x32xf32, #tpu.memory_space<vmem>>, vector<8x32xf32>
    tpu.vector_store %arg11[%c0_96, %c0_97], %182 {strides = array<i32>} : memref<8x32xf32, #tpu.memory_space<vmem>>, vector<8x32xf32>,
    %cst_98 = arith.constant 0.000000e+00 : f32
    %184 = vector.shape_cast %152 : vector<8x1xi1> to vector<8x1xi1>
    %185 = vector.broadcast %184 : vector<8x1xi1> to vector<8x32xi1>
    %186 = vector.broadcast %cst_98 : f32 to vector<8x32xf32>
    %187 = arith.select %185, %173, %186 : vector<8x32xi1>, vector<8x32xf32>
    %188 = arith.index_cast %148 : i32 to index
    %c0_99 = arith.constant 0 : index
    %189 = vector.load %arg8[%188, %c0_99] : memref<64x32xf32, #tpu.memory_space<vmem>>, vector<8x32xf32>
    tpu.vector_store %arg8[%188, %c0_99], %187 {strides = array<i32>} : memref<64x32xf32, #tpu.memory_space<vmem>>, vector<8x32xf32>,
    %c2_i32 = arith.constant 2 : i32
    %c8_i32_100 = arith.constant 8 : i32
    %190 = arith.muli %c2_i32, %c8_i32_100 : i32
    %191 = tpu.assume_multiple %190, 8 : i32
    %192 = arith.index_cast %191 : i32 to index
    %c0_101 = arith.constant 0 : index
    %193 = vector.load %arg7[%192, %c0_101] : memref<64x256xf32, #tpu.memory_space<vmem>>, vector<8x128xf32>
    %194 = vector.broadcast %c2_i32 : i32 to vector<8x1xi32>
    %195 = arith.cmpi slt, %194, %15 : vector<8x1xi32>
    %c0_102 = arith.constant 0 : index
    %c0_103 = arith.constant 0 : index
    %196 = vector.load %arg9[%c0_102, %c0_103] : memref<8x32xf32, #tpu.memory_space<vmem>>, vector<8x32xf32>
    %197 = arith.truncf %196 : vector<8x32xf32> to vector<8x32xbf16>
    %c0_104 = arith.constant 0 : index
    %c0_105 = arith.constant 0 : index
    %198 = vector.load %arg4[%c0_104, %c0_105] : memref<32x128xbf16, #tpu.memory_space<vmem>>, vector<32x128xbf16>
    %cst_106 = arith.constant dense<0.000000e+00> : vector<8x128xf32>
    %199 = tpu.matmul %197, %198, %cst_106 {dimension_numbers = #tpu.dot_dimension_numbers<[1], [0], [0], [1], [0, 0, 1, 1], [], []>} : vector<8x32xbf16>, vector<32x128xbf16>, vector<8x128xf32> -> vector<8x128xf32>
    %200 = arith.addf %193, %199 : vector<8x128xf32>
    %201 = arith.negf %200 : vector<8x128xf32>
    %202 = math.exp %201 : vector<8x128xf32>
    %cst_107 = arith.constant 1.000000e+00 : f32
    %203 = vector.broadcast %cst_107 : f32 to vector<8x128xf32>
    %204 = arith.addf %203, %202 : vector<8x128xf32>
    %205 = arith.divf %203, %204 : vector<8x128xf32>
    %206 = math.tanh %200 : vector<8x128xf32>
    %207 = vector.extract_strided_slice %205 {offsets = [0, 0], sizes = [8, 32], strides = [1, 1]} : vector<8x128xf32> to vector<8x32xf32>
    %208 = vector.extract_strided_slice %205 {offsets = [0, 32], sizes = [8, 32], strides = [1, 1]} : vector<8x128xf32> to vector<8x32xf32>
    %209 = vector.extract_strided_slice %206 {offsets = [0, 64], sizes = [8, 32], strides = [1, 1]} : vector<8x128xf32> to vector<8x32xf32>
    %210 = vector.extract_strided_slice %205 {offsets = [0, 96], sizes = [8, 32], strides = [1, 1]} : vector<8x128xf32> to vector<8x32xf32>
    %c0_108 = arith.constant 0 : index
    %c0_109 = arith.constant 0 : index
    %211 = vector.load %arg10[%c0_108, %c0_109] : memref<8x32xf32, #tpu.memory_space<vmem>>, vector<8x32xf32>
    %212 = arith.mulf %208, %211 : vector<8x32xf32>
    %213 = arith.mulf %207, %209 : vector<8x32xf32>
    %214 = arith.addf %212, %213 : vector<8x32xf32>
    %215 = math.tanh %214 : vector<8x32xf32>
    %216 = arith.mulf %210, %215 : vector<8x32xf32>
    %c0_110 = arith.constant 0 : index
    %c0_111 = arith.constant 0 : index
    %217 = vector.load %arg10[%c0_110, %c0_111] : memref<8x32xf32, #tpu.memory_space<vmem>>, vector<8x32xf32>
    %218 = vector.shape_cast %195 : vector<8x1xi1> to vector<8x1xi1>
    %219 = vector.broadcast %218 : vector<8x1xi1> to vector<8x32xi1>
    %220 = arith.select %219, %214, %217 : vector<8x32xi1>, vector<8x32xf32>
    %c0_112 = arith.constant 0 : index
    %c0_113 = arith.constant 0 : index
    %221 = vector.load %arg10[%c0_112, %c0_113] : memref<8x32xf32, #tpu.memory_space<vmem>>, vector<8x32xf32>
    tpu.vector_store %arg10[%c0_112, %c0_113], %220 {strides = array<i32>} : memref<8x32xf32, #tpu.memory_space<vmem>>, vector<8x32xf32>,
    %c0_114 = arith.constant 0 : index
    %c0_115 = arith.constant 0 : index
    %222 = vector.load %arg9[%c0_114, %c0_115] : memref<8x32xf32, #tpu.memory_space<vmem>>, vector<8x32xf32>
    %223 = vector.shape_cast %195 : vector<8x1xi1> to vector<8x1xi1>
    %224 = vector.broadcast %223 : vector<8x1xi1> to vector<8x32xi1>
    %225 = arith.select %224, %216, %222 : vector<8x32xi1>, vector<8x32xf32>
    %c0_116 = arith.constant 0 : index
    %c0_117 = arith.constant 0 : index
    %226 = vector.load %arg9[%c0_116, %c0_117] : memref<8x32xf32, #tpu.memory_space<vmem>>, vector<8x32xf32>
    tpu.vector_store %arg9[%c0_116, %c0_117], %225 {strides = array<i32>} : memref<8x32xf32, #tpu.memory_space<vmem>>, vector<8x32xf32>,
    %cst_118 = arith.constant 0.000000e+00 : f32
    %227 = vector.shape_cast %195 : vector<8x1xi1> to vector<8x1xi1>
    %228 = vector.broadcast %227 : vector<8x1xi1> to vector<8x32xi1>
    %229 = vector.broadcast %cst_118 : f32 to vector<8x32xf32>
    %230 = arith.select %228, %216, %229 : vector<8x32xi1>, vector<8x32xf32>
    %231 = arith.index_cast %191 : i32 to index
    %c0_119 = arith.constant 0 : index
    %232 = vector.load %arg6[%231, %c0_119] : memref<64x32xf32, #tpu.memory_space<vmem>>, vector<8x32xf32>
    tpu.vector_store %arg6[%231, %c0_119], %230 {strides = array<i32>} : memref<64x32xf32, #tpu.memory_space<vmem>>, vector<8x32xf32>,
    %c7_i32_120 = arith.constant 7 : i32
    %233 = arith.subi %c7_i32_120, %c2_i32 : i32
    %c8_i32_121 = arith.constant 8 : i32
    %234 = arith.muli %233, %c8_i32_121 : i32
    %235 = tpu.assume_multiple %234, 8 : i32
    %236 = arith.index_cast %235 : i32 to index
    %c128_122 = arith.constant 128 : index
    %237 = vector.load %arg7[%236, %c128_122] : memref<64x256xf32, #tpu.memory_space<vmem>>, vector<8x128xf32>
    %238 = vector.broadcast %233 : i32 to vector<8x1xi32>
    %239 = arith.cmpi slt, %238, %15 : vector<8x1xi32>
    %c0_123 = arith.constant 0 : index
    %c0_124 = arith.constant 0 : index
    %240 = vector.load %arg11[%c0_123, %c0_124] : memref<8x32xf32, #tpu.memory_space<vmem>>, vector<8x32xf32>
    %241 = arith.truncf %240 : vector<8x32xf32> to vector<8x32xbf16>
    %c0_125 = arith.constant 0 : index
    %c0_126 = arith.constant 0 : index
    %242 = vector.load %arg5[%c0_125, %c0_126] : memref<32x128xbf16, #tpu.memory_space<vmem>>, vector<32x128xbf16>
    %cst_127 = arith.constant dense<0.000000e+00> : vector<8x128xf32>
    %243 = tpu.matmul %241, %242, %cst_127 {dimension_numbers = #tpu.dot_dimension_numbers<[1], [0], [0], [1], [0, 0, 1, 1], [], []>} : vector<8x32xbf16>, vector<32x128xbf16>, vector<8x128xf32> -> vector<8x128xf32>
    %244 = arith.addf %237, %243 : vector<8x128xf32>
    %245 = arith.negf %244 : vector<8x128xf32>
    %246 = math.exp %245 : vector<8x128xf32>
    %cst_128 = arith.constant 1.000000e+00 : f32
    %247 = vector.broadcast %cst_128 : f32 to vector<8x128xf32>
    %248 = arith.addf %247, %246 : vector<8x128xf32>
    %249 = arith.divf %247, %248 : vector<8x128xf32>
    %250 = math.tanh %244 : vector<8x128xf32>
    %251 = vector.extract_strided_slice %249 {offsets = [0, 0], sizes = [8, 32], strides = [1, 1]} : vector<8x128xf32> to vector<8x32xf32>
    %252 = vector.extract_strided_slice %249 {offsets = [0, 32], sizes = [8, 32], strides = [1, 1]} : vector<8x128xf32> to vector<8x32xf32>
    %253 = vector.extract_strided_slice %250 {offsets = [0, 64], sizes = [8, 32], strides = [1, 1]} : vector<8x128xf32> to vector<8x32xf32>
    %254 = vector.extract_strided_slice %249 {offsets = [0, 96], sizes = [8, 32], strides = [1, 1]} : vector<8x128xf32> to vector<8x32xf32>
    %c0_129 = arith.constant 0 : index
    %c0_130 = arith.constant 0 : index
    %255 = vector.load %arg12[%c0_129, %c0_130] : memref<8x32xf32, #tpu.memory_space<vmem>>, vector<8x32xf32>
    %256 = arith.mulf %252, %255 : vector<8x32xf32>
    %257 = arith.mulf %251, %253 : vector<8x32xf32>
    %258 = arith.addf %256, %257 : vector<8x32xf32>
    %259 = math.tanh %258 : vector<8x32xf32>
    %260 = arith.mulf %254, %259 : vector<8x32xf32>
    %c0_131 = arith.constant 0 : index
    %c0_132 = arith.constant 0 : index
    %261 = vector.load %arg12[%c0_131, %c0_132] : memref<8x32xf32, #tpu.memory_space<vmem>>, vector<8x32xf32>
    %262 = vector.shape_cast %239 : vector<8x1xi1> to vector<8x1xi1>
    %263 = vector.broadcast %262 : vector<8x1xi1> to vector<8x32xi1>
    %264 = arith.select %263, %258, %261 : vector<8x32xi1>, vector<8x32xf32>
    %c0_133 = arith.constant 0 : index
    %c0_134 = arith.constant 0 : index
    %265 = vector.load %arg12[%c0_133, %c0_134] : memref<8x32xf32, #tpu.memory_space<vmem>>, vector<8x32xf32>
    tpu.vector_store %arg12[%c0_133, %c0_134], %264 {strides = array<i32>} : memref<8x32xf32, #tpu.memory_space<vmem>>, vector<8x32xf32>,
    %c0_135 = arith.constant 0 : index
    %c0_136 = arith.constant 0 : index
    %266 = vector.load %arg11[%c0_135, %c0_136] : memref<8x32xf32, #tpu.memory_space<vmem>>, vector<8x32xf32>
    %267 = vector.shape_cast %239 : vector<8x1xi1> to vector<8x1xi1>
    %268 = vector.broadcast %267 : vector<8x1xi1> to vector<8x32xi1>
    %269 = arith.select %268, %260, %266 : vector<8x32xi1>, vector<8x32xf32>
    %c0_137 = arith.constant 0 : index
    %c0_138 = arith.constant 0 : index
    %270 = vector.load %arg11[%c0_137, %c0_138] : memref<8x32xf32, #tpu.memory_space<vmem>>, vector<8x32xf32>
    tpu.vector_store %arg11[%c0_137, %c0_138], %269 {strides = array<i32>} : memref<8x32xf32, #tpu.memory_space<vmem>>, vector<8x32xf32>,
    %cst_139 = arith.constant 0.000000e+00 : f32
    %271 = vector.shape_cast %239 : vector<8x1xi1> to vector<8x1xi1>
    %272 = vector.broadcast %271 : vector<8x1xi1> to vector<8x32xi1>
    %273 = vector.broadcast %cst_139 : f32 to vector<8x32xf32>
    %274 = arith.select %272, %260, %273 : vector<8x32xi1>, vector<8x32xf32>
    %275 = arith.index_cast %235 : i32 to index
    %c0_140 = arith.constant 0 : index
    %276 = vector.load %arg8[%275, %c0_140] : memref<64x32xf32, #tpu.memory_space<vmem>>, vector<8x32xf32>
    tpu.vector_store %arg8[%275, %c0_140], %274 {strides = array<i32>} : memref<64x32xf32, #tpu.memory_space<vmem>>, vector<8x32xf32>,
    %c3_i32 = arith.constant 3 : i32
    %c8_i32_141 = arith.constant 8 : i32
    %277 = arith.muli %c3_i32, %c8_i32_141 : i32
    %278 = tpu.assume_multiple %277, 8 : i32
    %279 = arith.index_cast %278 : i32 to index
    %c0_142 = arith.constant 0 : index
    %280 = vector.load %arg7[%279, %c0_142] : memref<64x256xf32, #tpu.memory_space<vmem>>, vector<8x128xf32>
    %281 = vector.broadcast %c3_i32 : i32 to vector<8x1xi32>
    %282 = arith.cmpi slt, %281, %15 : vector<8x1xi32>
    %c0_143 = arith.constant 0 : index
    %c0_144 = arith.constant 0 : index
    %283 = vector.load %arg9[%c0_143, %c0_144] : memref<8x32xf32, #tpu.memory_space<vmem>>, vector<8x32xf32>
    %284 = arith.truncf %283 : vector<8x32xf32> to vector<8x32xbf16>
    %c0_145 = arith.constant 0 : index
    %c0_146 = arith.constant 0 : index
    %285 = vector.load %arg4[%c0_145, %c0_146] : memref<32x128xbf16, #tpu.memory_space<vmem>>, vector<32x128xbf16>
    %cst_147 = arith.constant dense<0.000000e+00> : vector<8x128xf32>
    %286 = tpu.matmul %284, %285, %cst_147 {dimension_numbers = #tpu.dot_dimension_numbers<[1], [0], [0], [1], [0, 0, 1, 1], [], []>} : vector<8x32xbf16>, vector<32x128xbf16>, vector<8x128xf32> -> vector<8x128xf32>
    %287 = arith.addf %280, %286 : vector<8x128xf32>
    %288 = arith.negf %287 : vector<8x128xf32>
    %289 = math.exp %288 : vector<8x128xf32>
    %cst_148 = arith.constant 1.000000e+00 : f32
    %290 = vector.broadcast %cst_148 : f32 to vector<8x128xf32>
    %291 = arith.addf %290, %289 : vector<8x128xf32>
    %292 = arith.divf %290, %291 : vector<8x128xf32>
    %293 = math.tanh %287 : vector<8x128xf32>
    %294 = vector.extract_strided_slice %292 {offsets = [0, 0], sizes = [8, 32], strides = [1, 1]} : vector<8x128xf32> to vector<8x32xf32>
    %295 = vector.extract_strided_slice %292 {offsets = [0, 32], sizes = [8, 32], strides = [1, 1]} : vector<8x128xf32> to vector<8x32xf32>
    %296 = vector.extract_strided_slice %293 {offsets = [0, 64], sizes = [8, 32], strides = [1, 1]} : vector<8x128xf32> to vector<8x32xf32>
    %297 = vector.extract_strided_slice %292 {offsets = [0, 96], sizes = [8, 32], strides = [1, 1]} : vector<8x128xf32> to vector<8x32xf32>
    %c0_149 = arith.constant 0 : index
    %c0_150 = arith.constant 0 : index
    %298 = vector.load %arg10[%c0_149, %c0_150] : memref<8x32xf32, #tpu.memory_space<vmem>>, vector<8x32xf32>
    %299 = arith.mulf %295, %298 : vector<8x32xf32>
    %300 = arith.mulf %294, %296 : vector<8x32xf32>
    %301 = arith.addf %299, %300 : vector<8x32xf32>
    %302 = math.tanh %301 : vector<8x32xf32>
    %303 = arith.mulf %297, %302 : vector<8x32xf32>
    %c0_151 = arith.constant 0 : index
    %c0_152 = arith.constant 0 : index
    %304 = vector.load %arg10[%c0_151, %c0_152] : memref<8x32xf32, #tpu.memory_space<vmem>>, vector<8x32xf32>
    %305 = vector.shape_cast %282 : vector<8x1xi1> to vector<8x1xi1>
    %306 = vector.broadcast %305 : vector<8x1xi1> to vector<8x32xi1>
    %307 = arith.select %306, %301, %304 : vector<8x32xi1>, vector<8x32xf32>
    %c0_153 = arith.constant 0 : index
    %c0_154 = arith.constant 0 : index
    %308 = vector.load %arg10[%c0_153, %c0_154] : memref<8x32xf32, #tpu.memory_space<vmem>>, vector<8x32xf32>
    tpu.vector_store %arg10[%c0_153, %c0_154], %307 {strides = array<i32>} : memref<8x32xf32, #tpu.memory_space<vmem>>, vector<8x32xf32>,
    %c0_155 = arith.constant 0 : index
    %c0_156 = arith.constant 0 : index
    %309 = vector.load %arg9[%c0_155, %c0_156] : memref<8x32xf32, #tpu.memory_space<vmem>>, vector<8x32xf32>
    %310 = vector.shape_cast %282 : vector<8x1xi1> to vector<8x1xi1>
    %311 = vector.broadcast %310 : vector<8x1xi1> to vector<8x32xi1>
    %312 = arith.select %311, %303, %309 : vector<8x32xi1>, vector<8x32xf32>
    %c0_157 = arith.constant 0 : index
    %c0_158 = arith.constant 0 : index
    %313 = vector.load %arg9[%c0_157, %c0_158] : memref<8x32xf32, #tpu.memory_space<vmem>>, vector<8x32xf32>
    tpu.vector_store %arg9[%c0_157, %c0_158], %312 {strides = array<i32>} : memref<8x32xf32, #tpu.memory_space<vmem>>, vector<8x32xf32>,
    %cst_159 = arith.constant 0.000000e+00 : f32
    %314 = vector.shape_cast %282 : vector<8x1xi1> to vector<8x1xi1>
    %315 = vector.broadcast %314 : vector<8x1xi1> to vector<8x32xi1>
    %316 = vector.broadcast %cst_159 : f32 to vector<8x32xf32>
    %317 = arith.select %315, %303, %316 : vector<8x32xi1>, vector<8x32xf32>
    %318 = arith.index_cast %278 : i32 to index
    %c0_160 = arith.constant 0 : index
    %319 = vector.load %arg6[%318, %c0_160] : memref<64x32xf32, #tpu.memory_space<vmem>>, vector<8x32xf32>
    tpu.vector_store %arg6[%318, %c0_160], %317 {strides = array<i32>} : memref<64x32xf32, #tpu.memory_space<vmem>>, vector<8x32xf32>,
    %c7_i32_161 = arith.constant 7 : i32
    %320 = arith.subi %c7_i32_161, %c3_i32 : i32
    %c8_i32_162 = arith.constant 8 : i32
    %321 = arith.muli %320, %c8_i32_162 : i32
    %322 = tpu.assume_multiple %321, 8 : i32
    %323 = arith.index_cast %322 : i32 to index
    %c128_163 = arith.constant 128 : index
    %324 = vector.load %arg7[%323, %c128_163] : memref<64x256xf32, #tpu.memory_space<vmem>>, vector<8x128xf32>
    %325 = vector.broadcast %320 : i32 to vector<8x1xi32>
    %326 = arith.cmpi slt, %325, %15 : vector<8x1xi32>
    %c0_164 = arith.constant 0 : index
    %c0_165 = arith.constant 0 : index
    %327 = vector.load %arg11[%c0_164, %c0_165] : memref<8x32xf32, #tpu.memory_space<vmem>>, vector<8x32xf32>
    %328 = arith.truncf %327 : vector<8x32xf32> to vector<8x32xbf16>
    %c0_166 = arith.constant 0 : index
    %c0_167 = arith.constant 0 : index
    %329 = vector.load %arg5[%c0_166, %c0_167] : memref<32x128xbf16, #tpu.memory_space<vmem>>, vector<32x128xbf16>
    %cst_168 = arith.constant dense<0.000000e+00> : vector<8x128xf32>
    %330 = tpu.matmul %328, %329, %cst_168 {dimension_numbers = #tpu.dot_dimension_numbers<[1], [0], [0], [1], [0, 0, 1, 1], [], []>} : vector<8x32xbf16>, vector<32x128xbf16>, vector<8x128xf32> -> vector<8x128xf32>
    %331 = arith.addf %324, %330 : vector<8x128xf32>
    %332 = arith.negf %331 : vector<8x128xf32>
    %333 = math.exp %332 : vector<8x128xf32>
    %cst_169 = arith.constant 1.000000e+00 : f32
    %334 = vector.broadcast %cst_169 : f32 to vector<8x128xf32>
    %335 = arith.addf %334, %333 : vector<8x128xf32>
    %336 = arith.divf %334, %335 : vector<8x128xf32>
    %337 = math.tanh %331 : vector<8x128xf32>
    %338 = vector.extract_strided_slice %336 {offsets = [0, 0], sizes = [8, 32], strides = [1, 1]} : vector<8x128xf32> to vector<8x32xf32>
    %339 = vector.extract_strided_slice %336 {offsets = [0, 32], sizes = [8, 32], strides = [1, 1]} : vector<8x128xf32> to vector<8x32xf32>
    %340 = vector.extract_strided_slice %337 {offsets = [0, 64], sizes = [8, 32], strides = [1, 1]} : vector<8x128xf32> to vector<8x32xf32>
    %341 = vector.extract_strided_slice %336 {offsets = [0, 96], sizes = [8, 32], strides = [1, 1]} : vector<8x128xf32> to vector<8x32xf32>
    %c0_170 = arith.constant 0 : index
    %c0_171 = arith.constant 0 : index
    %342 = vector.load %arg12[%c0_170, %c0_171] : memref<8x32xf32, #tpu.memory_space<vmem>>, vector<8x32xf32>
    %343 = arith.mulf %339, %342 : vector<8x32xf32>
    %344 = arith.mulf %338, %340 : vector<8x32xf32>
    %345 = arith.addf %343, %344 : vector<8x32xf32>
    %346 = math.tanh %345 : vector<8x32xf32>
    %347 = arith.mulf %341, %346 : vector<8x32xf32>
    %c0_172 = arith.constant 0 : index
    %c0_173 = arith.constant 0 : index
    %348 = vector.load %arg12[%c0_172, %c0_173] : memref<8x32xf32, #tpu.memory_space<vmem>>, vector<8x32xf32>
    %349 = vector.shape_cast %326 : vector<8x1xi1> to vector<8x1xi1>
    %350 = vector.broadcast %349 : vector<8x1xi1> to vector<8x32xi1>
    %351 = arith.select %350, %345, %348 : vector<8x32xi1>, vector<8x32xf32>
    %c0_174 = arith.constant 0 : index
    %c0_175 = arith.constant 0 : index
    %352 = vector.load %arg12[%c0_174, %c0_175] : memref<8x32xf32, #tpu.memory_space<vmem>>, vector<8x32xf32>
    tpu.vector_store %arg12[%c0_174, %c0_175], %351 {strides = array<i32>} : memref<8x32xf32, #tpu.memory_space<vmem>>, vector<8x32xf32>,
    %c0_176 = arith.constant 0 : index
    %c0_177 = arith.constant 0 : index
    %353 = vector.load %arg11[%c0_176, %c0_177] : memref<8x32xf32, #tpu.memory_space<vmem>>, vector<8x32xf32>
    %354 = vector.shape_cast %326 : vector<8x1xi1> to vector<8x1xi1>
    %355 = vector.broadcast %354 : vector<8x1xi1> to vector<8x32xi1>
    %356 = arith.select %355, %347, %353 : vector<8x32xi1>, vector<8x32xf32>
    %c0_178 = arith.constant 0 : index
    %c0_179 = arith.constant 0 : index
    %357 = vector.load %arg11[%c0_178, %c0_179] : memref<8x32xf32, #tpu.memory_space<vmem>>, vector<8x32xf32>
    tpu.vector_store %arg11[%c0_178, %c0_179], %356 {strides = array<i32>} : memref<8x32xf32, #tpu.memory_space<vmem>>, vector<8x32xf32>,
    %cst_180 = arith.constant 0.000000e+00 : f32
    %358 = vector.shape_cast %326 : vector<8x1xi1> to vector<8x1xi1>
    %359 = vector.broadcast %358 : vector<8x1xi1> to vector<8x32xi1>
    %360 = vector.broadcast %cst_180 : f32 to vector<8x32xf32>
    %361 = arith.select %359, %347, %360 : vector<8x32xi1>, vector<8x32xf32>
    %362 = arith.index_cast %322 : i32 to index
    %c0_181 = arith.constant 0 : index
    %363 = vector.load %arg8[%362, %c0_181] : memref<64x32xf32, #tpu.memory_space<vmem>>, vector<8x32xf32>
    tpu.vector_store %arg8[%362, %c0_181], %361 {strides = array<i32>} : memref<64x32xf32, #tpu.memory_space<vmem>>, vector<8x32xf32>,
    %c4_i32 = arith.constant 4 : i32
    %c8_i32_182 = arith.constant 8 : i32
    %364 = arith.muli %c4_i32, %c8_i32_182 : i32
    %365 = tpu.assume_multiple %364, 8 : i32
    %366 = arith.index_cast %365 : i32 to index
    %c0_183 = arith.constant 0 : index
    %367 = vector.load %arg7[%366, %c0_183] : memref<64x256xf32, #tpu.memory_space<vmem>>, vector<8x128xf32>
    %368 = vector.broadcast %c4_i32 : i32 to vector<8x1xi32>
    %369 = arith.cmpi slt, %368, %15 : vector<8x1xi32>
    %c0_184 = arith.constant 0 : index
    %c0_185 = arith.constant 0 : index
    %370 = vector.load %arg9[%c0_184, %c0_185] : memref<8x32xf32, #tpu.memory_space<vmem>>, vector<8x32xf32>
    %371 = arith.truncf %370 : vector<8x32xf32> to vector<8x32xbf16>
    %c0_186 = arith.constant 0 : index
    %c0_187 = arith.constant 0 : index
    %372 = vector.load %arg4[%c0_186, %c0_187] : memref<32x128xbf16, #tpu.memory_space<vmem>>, vector<32x128xbf16>
    %cst_188 = arith.constant dense<0.000000e+00> : vector<8x128xf32>
    %373 = tpu.matmul %371, %372, %cst_188 {dimension_numbers = #tpu.dot_dimension_numbers<[1], [0], [0], [1], [0, 0, 1, 1], [], []>} : vector<8x32xbf16>, vector<32x128xbf16>, vector<8x128xf32> -> vector<8x128xf32>
    %374 = arith.addf %367, %373 : vector<8x128xf32>
    %375 = arith.negf %374 : vector<8x128xf32>
    %376 = math.exp %375 : vector<8x128xf32>
    %cst_189 = arith.constant 1.000000e+00 : f32
    %377 = vector.broadcast %cst_189 : f32 to vector<8x128xf32>
    %378 = arith.addf %377, %376 : vector<8x128xf32>
    %379 = arith.divf %377, %378 : vector<8x128xf32>
    %380 = math.tanh %374 : vector<8x128xf32>
    %381 = vector.extract_strided_slice %379 {offsets = [0, 0], sizes = [8, 32], strides = [1, 1]} : vector<8x128xf32> to vector<8x32xf32>
    %382 = vector.extract_strided_slice %379 {offsets = [0, 32], sizes = [8, 32], strides = [1, 1]} : vector<8x128xf32> to vector<8x32xf32>
    %383 = vector.extract_strided_slice %380 {offsets = [0, 64], sizes = [8, 32], strides = [1, 1]} : vector<8x128xf32> to vector<8x32xf32>
    %384 = vector.extract_strided_slice %379 {offsets = [0, 96], sizes = [8, 32], strides = [1, 1]} : vector<8x128xf32> to vector<8x32xf32>
    %c0_190 = arith.constant 0 : index
    %c0_191 = arith.constant 0 : index
    %385 = vector.load %arg10[%c0_190, %c0_191] : memref<8x32xf32, #tpu.memory_space<vmem>>, vector<8x32xf32>
    %386 = arith.mulf %382, %385 : vector<8x32xf32>
    %387 = arith.mulf %381, %383 : vector<8x32xf32>
    %388 = arith.addf %386, %387 : vector<8x32xf32>
    %389 = math.tanh %388 : vector<8x32xf32>
    %390 = arith.mulf %384, %389 : vector<8x32xf32>
    %c0_192 = arith.constant 0 : index
    %c0_193 = arith.constant 0 : index
    %391 = vector.load %arg10[%c0_192, %c0_193] : memref<8x32xf32, #tpu.memory_space<vmem>>, vector<8x32xf32>
    %392 = vector.shape_cast %369 : vector<8x1xi1> to vector<8x1xi1>
    %393 = vector.broadcast %392 : vector<8x1xi1> to vector<8x32xi1>
    %394 = arith.select %393, %388, %391 : vector<8x32xi1>, vector<8x32xf32>
    %c0_194 = arith.constant 0 : index
    %c0_195 = arith.constant 0 : index
    %395 = vector.load %arg10[%c0_194, %c0_195] : memref<8x32xf32, #tpu.memory_space<vmem>>, vector<8x32xf32>
    tpu.vector_store %arg10[%c0_194, %c0_195], %394 {strides = array<i32>} : memref<8x32xf32, #tpu.memory_space<vmem>>, vector<8x32xf32>,
    %c0_196 = arith.constant 0 : index
    %c0_197 = arith.constant 0 : index
    %396 = vector.load %arg9[%c0_196, %c0_197] : memref<8x32xf32, #tpu.memory_space<vmem>>, vector<8x32xf32>
    %397 = vector.shape_cast %369 : vector<8x1xi1> to vector<8x1xi1>
    %398 = vector.broadcast %397 : vector<8x1xi1> to vector<8x32xi1>
    %399 = arith.select %398, %390, %396 : vector<8x32xi1>, vector<8x32xf32>
    %c0_198 = arith.constant 0 : index
    %c0_199 = arith.constant 0 : index
    %400 = vector.load %arg9[%c0_198, %c0_199] : memref<8x32xf32, #tpu.memory_space<vmem>>, vector<8x32xf32>
    tpu.vector_store %arg9[%c0_198, %c0_199], %399 {strides = array<i32>} : memref<8x32xf32, #tpu.memory_space<vmem>>, vector<8x32xf32>,
    %cst_200 = arith.constant 0.000000e+00 : f32
    %401 = vector.shape_cast %369 : vector<8x1xi1> to vector<8x1xi1>
    %402 = vector.broadcast %401 : vector<8x1xi1> to vector<8x32xi1>
    %403 = vector.broadcast %cst_200 : f32 to vector<8x32xf32>
    %404 = arith.select %402, %390, %403 : vector<8x32xi1>, vector<8x32xf32>
    %405 = arith.index_cast %365 : i32 to index
    %c0_201 = arith.constant 0 : index
    %406 = vector.load %arg6[%405, %c0_201] : memref<64x32xf32, #tpu.memory_space<vmem>>, vector<8x32xf32>
    tpu.vector_store %arg6[%405, %c0_201], %404 {strides = array<i32>} : memref<64x32xf32, #tpu.memory_space<vmem>>, vector<8x32xf32>,
    %c7_i32_202 = arith.constant 7 : i32
    %407 = arith.subi %c7_i32_202, %c4_i32 : i32
    %c8_i32_203 = arith.constant 8 : i32
    %408 = arith.muli %407, %c8_i32_203 : i32
    %409 = tpu.assume_multiple %408, 8 : i32
    %410 = arith.index_cast %409 : i32 to index
    %c128_204 = arith.constant 128 : index
    %411 = vector.load %arg7[%410, %c128_204] : memref<64x256xf32, #tpu.memory_space<vmem>>, vector<8x128xf32>
    %412 = vector.broadcast %407 : i32 to vector<8x1xi32>
    %413 = arith.cmpi slt, %412, %15 : vector<8x1xi32>
    %c0_205 = arith.constant 0 : index
    %c0_206 = arith.constant 0 : index
    %414 = vector.load %arg11[%c0_205, %c0_206] : memref<8x32xf32, #tpu.memory_space<vmem>>, vector<8x32xf32>
    %415 = arith.truncf %414 : vector<8x32xf32> to vector<8x32xbf16>
    %c0_207 = arith.constant 0 : index
    %c0_208 = arith.constant 0 : index
    %416 = vector.load %arg5[%c0_207, %c0_208] : memref<32x128xbf16, #tpu.memory_space<vmem>>, vector<32x128xbf16>
    %cst_209 = arith.constant dense<0.000000e+00> : vector<8x128xf32>
    %417 = tpu.matmul %415, %416, %cst_209 {dimension_numbers = #tpu.dot_dimension_numbers<[1], [0], [0], [1], [0, 0, 1, 1], [], []>} : vector<8x32xbf16>, vector<32x128xbf16>, vector<8x128xf32> -> vector<8x128xf32>
    %418 = arith.addf %411, %417 : vector<8x128xf32>
    %419 = arith.negf %418 : vector<8x128xf32>
    %420 = math.exp %419 : vector<8x128xf32>
    %cst_210 = arith.constant 1.000000e+00 : f32
    %421 = vector.broadcast %cst_210 : f32 to vector<8x128xf32>
    %422 = arith.addf %421, %420 : vector<8x128xf32>
    %423 = arith.divf %421, %422 : vector<8x128xf32>
    %424 = math.tanh %418 : vector<8x128xf32>
    %425 = vector.extract_strided_slice %423 {offsets = [0, 0], sizes = [8, 32], strides = [1, 1]} : vector<8x128xf32> to vector<8x32xf32>
    %426 = vector.extract_strided_slice %423 {offsets = [0, 32], sizes = [8, 32], strides = [1, 1]} : vector<8x128xf32> to vector<8x32xf32>
    %427 = vector.extract_strided_slice %424 {offsets = [0, 64], sizes = [8, 32], strides = [1, 1]} : vector<8x128xf32> to vector<8x32xf32>
    %428 = vector.extract_strided_slice %423 {offsets = [0, 96], sizes = [8, 32], strides = [1, 1]} : vector<8x128xf32> to vector<8x32xf32>
    %c0_211 = arith.constant 0 : index
    %c0_212 = arith.constant 0 : index
    %429 = vector.load %arg12[%c0_211, %c0_212] : memref<8x32xf32, #tpu.memory_space<vmem>>, vector<8x32xf32>
    %430 = arith.mulf %426, %429 : vector<8x32xf32>
    %431 = arith.mulf %425, %427 : vector<8x32xf32>
    %432 = arith.addf %430, %431 : vector<8x32xf32>
    %433 = math.tanh %432 : vector<8x32xf32>
    %434 = arith.mulf %428, %433 : vector<8x32xf32>
    %c0_213 = arith.constant 0 : index
    %c0_214 = arith.constant 0 : index
    %435 = vector.load %arg12[%c0_213, %c0_214] : memref<8x32xf32, #tpu.memory_space<vmem>>, vector<8x32xf32>
    %436 = vector.shape_cast %413 : vector<8x1xi1> to vector<8x1xi1>
    %437 = vector.broadcast %436 : vector<8x1xi1> to vector<8x32xi1>
    %438 = arith.select %437, %432, %435 : vector<8x32xi1>, vector<8x32xf32>
    %c0_215 = arith.constant 0 : index
    %c0_216 = arith.constant 0 : index
    %439 = vector.load %arg12[%c0_215, %c0_216] : memref<8x32xf32, #tpu.memory_space<vmem>>, vector<8x32xf32>
    tpu.vector_store %arg12[%c0_215, %c0_216], %438 {strides = array<i32>} : memref<8x32xf32, #tpu.memory_space<vmem>>, vector<8x32xf32>,
    %c0_217 = arith.constant 0 : index
    %c0_218 = arith.constant 0 : index
    %440 = vector.load %arg11[%c0_217, %c0_218] : memref<8x32xf32, #tpu.memory_space<vmem>>, vector<8x32xf32>
    %441 = vector.shape_cast %413 : vector<8x1xi1> to vector<8x1xi1>
    %442 = vector.broadcast %441 : vector<8x1xi1> to vector<8x32xi1>
    %443 = arith.select %442, %434, %440 : vector<8x32xi1>, vector<8x32xf32>
    %c0_219 = arith.constant 0 : index
    %c0_220 = arith.constant 0 : index
    %444 = vector.load %arg11[%c0_219, %c0_220] : memref<8x32xf32, #tpu.memory_space<vmem>>, vector<8x32xf32>
    tpu.vector_store %arg11[%c0_219, %c0_220], %443 {strides = array<i32>} : memref<8x32xf32, #tpu.memory_space<vmem>>, vector<8x32xf32>,
    %cst_221 = arith.constant 0.000000e+00 : f32
    %445 = vector.shape_cast %413 : vector<8x1xi1> to vector<8x1xi1>
    %446 = vector.broadcast %445 : vector<8x1xi1> to vector<8x32xi1>
    %447 = vector.broadcast %cst_221 : f32 to vector<8x32xf32>
    %448 = arith.select %446, %434, %447 : vector<8x32xi1>, vector<8x32xf32>
    %449 = arith.index_cast %409 : i32 to index
    %c0_222 = arith.constant 0 : index
    %450 = vector.load %arg8[%449, %c0_222] : memref<64x32xf32, #tpu.memory_space<vmem>>, vector<8x32xf32>
    tpu.vector_store %arg8[%449, %c0_222], %448 {strides = array<i32>} : memref<64x32xf32, #tpu.memory_space<vmem>>, vector<8x32xf32>,
    %c5_i32 = arith.constant 5 : i32
    %c8_i32_223 = arith.constant 8 : i32
    %451 = arith.muli %c5_i32, %c8_i32_223 : i32
    %452 = tpu.assume_multiple %451, 8 : i32
    %453 = arith.index_cast %452 : i32 to index
    %c0_224 = arith.constant 0 : index
    %454 = vector.load %arg7[%453, %c0_224] : memref<64x256xf32, #tpu.memory_space<vmem>>, vector<8x128xf32>
    %455 = vector.broadcast %c5_i32 : i32 to vector<8x1xi32>
    %456 = arith.cmpi slt, %455, %15 : vector<8x1xi32>
    %c0_225 = arith.constant 0 : index
    %c0_226 = arith.constant 0 : index
    %457 = vector.load %arg9[%c0_225, %c0_226] : memref<8x32xf32, #tpu.memory_space<vmem>>, vector<8x32xf32>
    %458 = arith.truncf %457 : vector<8x32xf32> to vector<8x32xbf16>
    %c0_227 = arith.constant 0 : index
    %c0_228 = arith.constant 0 : index
    %459 = vector.load %arg4[%c0_227, %c0_228] : memref<32x128xbf16, #tpu.memory_space<vmem>>, vector<32x128xbf16>
    %cst_229 = arith.constant dense<0.000000e+00> : vector<8x128xf32>
    %460 = tpu.matmul %458, %459, %cst_229 {dimension_numbers = #tpu.dot_dimension_numbers<[1], [0], [0], [1], [0, 0, 1, 1], [], []>} : vector<8x32xbf16>, vector<32x128xbf16>, vector<8x128xf32> -> vector<8x128xf32>
    %461 = arith.addf %454, %460 : vector<8x128xf32>
    %462 = arith.negf %461 : vector<8x128xf32>
    %463 = math.exp %462 : vector<8x128xf32>
    %cst_230 = arith.constant 1.000000e+00 : f32
    %464 = vector.broadcast %cst_230 : f32 to vector<8x128xf32>
    %465 = arith.addf %464, %463 : vector<8x128xf32>
    %466 = arith.divf %464, %465 : vector<8x128xf32>
    %467 = math.tanh %461 : vector<8x128xf32>
    %468 = vector.extract_strided_slice %466 {offsets = [0, 0], sizes = [8, 32], strides = [1, 1]} : vector<8x128xf32> to vector<8x32xf32>
    %469 = vector.extract_strided_slice %466 {offsets = [0, 32], sizes = [8, 32], strides = [1, 1]} : vector<8x128xf32> to vector<8x32xf32>
    %470 = vector.extract_strided_slice %467 {offsets = [0, 64], sizes = [8, 32], strides = [1, 1]} : vector<8x128xf32> to vector<8x32xf32>
    %471 = vector.extract_strided_slice %466 {offsets = [0, 96], sizes = [8, 32], strides = [1, 1]} : vector<8x128xf32> to vector<8x32xf32>
    %c0_231 = arith.constant 0 : index
    %c0_232 = arith.constant 0 : index
    %472 = vector.load %arg10[%c0_231, %c0_232] : memref<8x32xf32, #tpu.memory_space<vmem>>, vector<8x32xf32>
    %473 = arith.mulf %469, %472 : vector<8x32xf32>
    %474 = arith.mulf %468, %470 : vector<8x32xf32>
    %475 = arith.addf %473, %474 : vector<8x32xf32>
    %476 = math.tanh %475 : vector<8x32xf32>
    %477 = arith.mulf %471, %476 : vector<8x32xf32>
    %c0_233 = arith.constant 0 : index
    %c0_234 = arith.constant 0 : index
    %478 = vector.load %arg10[%c0_233, %c0_234] : memref<8x32xf32, #tpu.memory_space<vmem>>, vector<8x32xf32>
    %479 = vector.shape_cast %456 : vector<8x1xi1> to vector<8x1xi1>
    %480 = vector.broadcast %479 : vector<8x1xi1> to vector<8x32xi1>
    %481 = arith.select %480, %475, %478 : vector<8x32xi1>, vector<8x32xf32>
    %c0_235 = arith.constant 0 : index
    %c0_236 = arith.constant 0 : index
    %482 = vector.load %arg10[%c0_235, %c0_236] : memref<8x32xf32, #tpu.memory_space<vmem>>, vector<8x32xf32>
    tpu.vector_store %arg10[%c0_235, %c0_236], %481 {strides = array<i32>} : memref<8x32xf32, #tpu.memory_space<vmem>>, vector<8x32xf32>,
    %c0_237 = arith.constant 0 : index
    %c0_238 = arith.constant 0 : index
    %483 = vector.load %arg9[%c0_237, %c0_238] : memref<8x32xf32, #tpu.memory_space<vmem>>, vector<8x32xf32>
    %484 = vector.shape_cast %456 : vector<8x1xi1> to vector<8x1xi1>
    %485 = vector.broadcast %484 : vector<8x1xi1> to vector<8x32xi1>
    %486 = arith.select %485, %477, %483 : vector<8x32xi1>, vector<8x32xf32>
    %c0_239 = arith.constant 0 : index
    %c0_240 = arith.constant 0 : index
    %487 = vector.load %arg9[%c0_239, %c0_240] : memref<8x32xf32, #tpu.memory_space<vmem>>, vector<8x32xf32>
    tpu.vector_store %arg9[%c0_239, %c0_240], %486 {strides = array<i32>} : memref<8x32xf32, #tpu.memory_space<vmem>>, vector<8x32xf32>,
    %cst_241 = arith.constant 0.000000e+00 : f32
    %488 = vector.shape_cast %456 : vector<8x1xi1> to vector<8x1xi1>
    %489 = vector.broadcast %488 : vector<8x1xi1> to vector<8x32xi1>
    %490 = vector.broadcast %cst_241 : f32 to vector<8x32xf32>
    %491 = arith.select %489, %477, %490 : vector<8x32xi1>, vector<8x32xf32>
    %492 = arith.index_cast %452 : i32 to index
    %c0_242 = arith.constant 0 : index
    %493 = vector.load %arg6[%492, %c0_242] : memref<64x32xf32, #tpu.memory_space<vmem>>, vector<8x32xf32>
    tpu.vector_store %arg6[%492, %c0_242], %491 {strides = array<i32>} : memref<64x32xf32, #tpu.memory_space<vmem>>, vector<8x32xf32>,
    %c7_i32_243 = arith.constant 7 : i32
    %494 = arith.subi %c7_i32_243, %c5_i32 : i32
    %c8_i32_244 = arith.constant 8 : i32
    %495 = arith.muli %494, %c8_i32_244 : i32
    %496 = tpu.assume_multiple %495, 8 : i32
    %497 = arith.index_cast %496 : i32 to index
    %c128_245 = arith.constant 128 : index
    %498 = vector.load %arg7[%497, %c128_245] : memref<64x256xf32, #tpu.memory_space<vmem>>, vector<8x128xf32>
    %499 = vector.broadcast %494 : i32 to vector<8x1xi32>
    %500 = arith.cmpi slt, %499, %15 : vector<8x1xi32>
    %c0_246 = arith.constant 0 : index
    %c0_247 = arith.constant 0 : index
    %501 = vector.load %arg11[%c0_246, %c0_247] : memref<8x32xf32, #tpu.memory_space<vmem>>, vector<8x32xf32>
    %502 = arith.truncf %501 : vector<8x32xf32> to vector<8x32xbf16>
    %c0_248 = arith.constant 0 : index
    %c0_249 = arith.constant 0 : index
    %503 = vector.load %arg5[%c0_248, %c0_249] : memref<32x128xbf16, #tpu.memory_space<vmem>>, vector<32x128xbf16>
    %cst_250 = arith.constant dense<0.000000e+00> : vector<8x128xf32>
    %504 = tpu.matmul %502, %503, %cst_250 {dimension_numbers = #tpu.dot_dimension_numbers<[1], [0], [0], [1], [0, 0, 1, 1], [], []>} : vector<8x32xbf16>, vector<32x128xbf16>, vector<8x128xf32> -> vector<8x128xf32>
    %505 = arith.addf %498, %504 : vector<8x128xf32>
    %506 = arith.negf %505 : vector<8x128xf32>
    %507 = math.exp %506 : vector<8x128xf32>
    %cst_251 = arith.constant 1.000000e+00 : f32
    %508 = vector.broadcast %cst_251 : f32 to vector<8x128xf32>
    %509 = arith.addf %508, %507 : vector<8x128xf32>
    %510 = arith.divf %508, %509 : vector<8x128xf32>
    %511 = math.tanh %505 : vector<8x128xf32>
    %512 = vector.extract_strided_slice %510 {offsets = [0, 0], sizes = [8, 32], strides = [1, 1]} : vector<8x128xf32> to vector<8x32xf32>
    %513 = vector.extract_strided_slice %510 {offsets = [0, 32], sizes = [8, 32], strides = [1, 1]} : vector<8x128xf32> to vector<8x32xf32>
    %514 = vector.extract_strided_slice %511 {offsets = [0, 64], sizes = [8, 32], strides = [1, 1]} : vector<8x128xf32> to vector<8x32xf32>
    %515 = vector.extract_strided_slice %510 {offsets = [0, 96], sizes = [8, 32], strides = [1, 1]} : vector<8x128xf32> to vector<8x32xf32>
    %c0_252 = arith.constant 0 : index
    %c0_253 = arith.constant 0 : index
    %516 = vector.load %arg12[%c0_252, %c0_253] : memref<8x32xf32, #tpu.memory_space<vmem>>, vector<8x32xf32>
    %517 = arith.mulf %513, %516 : vector<8x32xf32>
    %518 = arith.mulf %512, %514 : vector<8x32xf32>
    %519 = arith.addf %517, %518 : vector<8x32xf32>
    %520 = math.tanh %519 : vector<8x32xf32>
    %521 = arith.mulf %515, %520 : vector<8x32xf32>
    %c0_254 = arith.constant 0 : index
    %c0_255 = arith.constant 0 : index
    %522 = vector.load %arg12[%c0_254, %c0_255] : memref<8x32xf32, #tpu.memory_space<vmem>>, vector<8x32xf32>
    %523 = vector.shape_cast %500 : vector<8x1xi1> to vector<8x1xi1>
    %524 = vector.broadcast %523 : vector<8x1xi1> to vector<8x32xi1>
    %525 = arith.select %524, %519, %522 : vector<8x32xi1>, vector<8x32xf32>
    %c0_256 = arith.constant 0 : index
    %c0_257 = arith.constant 0 : index
    %526 = vector.load %arg12[%c0_256, %c0_257] : memref<8x32xf32, #tpu.memory_space<vmem>>, vector<8x32xf32>
    tpu.vector_store %arg12[%c0_256, %c0_257], %525 {strides = array<i32>} : memref<8x32xf32, #tpu.memory_space<vmem>>, vector<8x32xf32>,
    %c0_258 = arith.constant 0 : index
    %c0_259 = arith.constant 0 : index
    %527 = vector.load %arg11[%c0_258, %c0_259] : memref<8x32xf32, #tpu.memory_space<vmem>>, vector<8x32xf32>
    %528 = vector.shape_cast %500 : vector<8x1xi1> to vector<8x1xi1>
    %529 = vector.broadcast %528 : vector<8x1xi1> to vector<8x32xi1>
    %530 = arith.select %529, %521, %527 : vector<8x32xi1>, vector<8x32xf32>
    %c0_260 = arith.constant 0 : index
    %c0_261 = arith.constant 0 : index
    %531 = vector.load %arg11[%c0_260, %c0_261] : memref<8x32xf32, #tpu.memory_space<vmem>>, vector<8x32xf32>
    tpu.vector_store %arg11[%c0_260, %c0_261], %530 {strides = array<i32>} : memref<8x32xf32, #tpu.memory_space<vmem>>, vector<8x32xf32>,
    %cst_262 = arith.constant 0.000000e+00 : f32
    %532 = vector.shape_cast %500 : vector<8x1xi1> to vector<8x1xi1>
    %533 = vector.broadcast %532 : vector<8x1xi1> to vector<8x32xi1>
    %534 = vector.broadcast %cst_262 : f32 to vector<8x32xf32>
    %535 = arith.select %533, %521, %534 : vector<8x32xi1>, vector<8x32xf32>
    %536 = arith.index_cast %496 : i32 to index
    %c0_263 = arith.constant 0 : index
    %537 = vector.load %arg8[%536, %c0_263] : memref<64x32xf32, #tpu.memory_space<vmem>>, vector<8x32xf32>
    tpu.vector_store %arg8[%536, %c0_263], %535 {strides = array<i32>} : memref<64x32xf32, #tpu.memory_space<vmem>>, vector<8x32xf32>,
    %c6_i32 = arith.constant 6 : i32
    %c8_i32_264 = arith.constant 8 : i32
    %538 = arith.muli %c6_i32, %c8_i32_264 : i32
    %539 = tpu.assume_multiple %538, 8 : i32
    %540 = arith.index_cast %539 : i32 to index
    %c0_265 = arith.constant 0 : index
    %541 = vector.load %arg7[%540, %c0_265] : memref<64x256xf32, #tpu.memory_space<vmem>>, vector<8x128xf32>
    %542 = vector.broadcast %c6_i32 : i32 to vector<8x1xi32>
    %543 = arith.cmpi slt, %542, %15 : vector<8x1xi32>
    %c0_266 = arith.constant 0 : index
    %c0_267 = arith.constant 0 : index
    %544 = vector.load %arg9[%c0_266, %c0_267] : memref<8x32xf32, #tpu.memory_space<vmem>>, vector<8x32xf32>
    %545 = arith.truncf %544 : vector<8x32xf32> to vector<8x32xbf16>
    %c0_268 = arith.constant 0 : index
    %c0_269 = arith.constant 0 : index
    %546 = vector.load %arg4[%c0_268, %c0_269] : memref<32x128xbf16, #tpu.memory_space<vmem>>, vector<32x128xbf16>
    %cst_270 = arith.constant dense<0.000000e+00> : vector<8x128xf32>
    %547 = tpu.matmul %545, %546, %cst_270 {dimension_numbers = #tpu.dot_dimension_numbers<[1], [0], [0], [1], [0, 0, 1, 1], [], []>} : vector<8x32xbf16>, vector<32x128xbf16>, vector<8x128xf32> -> vector<8x128xf32>
    %548 = arith.addf %541, %547 : vector<8x128xf32>
    %549 = arith.negf %548 : vector<8x128xf32>
    %550 = math.exp %549 : vector<8x128xf32>
    %cst_271 = arith.constant 1.000000e+00 : f32
    %551 = vector.broadcast %cst_271 : f32 to vector<8x128xf32>
    %552 = arith.addf %551, %550 : vector<8x128xf32>
    %553 = arith.divf %551, %552 : vector<8x128xf32>
    %554 = math.tanh %548 : vector<8x128xf32>
    %555 = vector.extract_strided_slice %553 {offsets = [0, 0], sizes = [8, 32], strides = [1, 1]} : vector<8x128xf32> to vector<8x32xf32>
    %556 = vector.extract_strided_slice %553 {offsets = [0, 32], sizes = [8, 32], strides = [1, 1]} : vector<8x128xf32> to vector<8x32xf32>
    %557 = vector.extract_strided_slice %554 {offsets = [0, 64], sizes = [8, 32], strides = [1, 1]} : vector<8x128xf32> to vector<8x32xf32>
    %558 = vector.extract_strided_slice %553 {offsets = [0, 96], sizes = [8, 32], strides = [1, 1]} : vector<8x128xf32> to vector<8x32xf32>
    %c0_272 = arith.constant 0 : index
    %c0_273 = arith.constant 0 : index
    %559 = vector.load %arg10[%c0_272, %c0_273] : memref<8x32xf32, #tpu.memory_space<vmem>>, vector<8x32xf32>
    %560 = arith.mulf %556, %559 : vector<8x32xf32>
    %561 = arith.mulf %555, %557 : vector<8x32xf32>
    %562 = arith.addf %560, %561 : vector<8x32xf32>
    %563 = math.tanh %562 : vector<8x32xf32>
    %564 = arith.mulf %558, %563 : vector<8x32xf32>
    %c0_274 = arith.constant 0 : index
    %c0_275 = arith.constant 0 : index
    %565 = vector.load %arg10[%c0_274, %c0_275] : memref<8x32xf32, #tpu.memory_space<vmem>>, vector<8x32xf32>
    %566 = vector.shape_cast %543 : vector<8x1xi1> to vector<8x1xi1>
    %567 = vector.broadcast %566 : vector<8x1xi1> to vector<8x32xi1>
    %568 = arith.select %567, %562, %565 : vector<8x32xi1>, vector<8x32xf32>
    %c0_276 = arith.constant 0 : index
    %c0_277 = arith.constant 0 : index
    %569 = vector.load %arg10[%c0_276, %c0_277] : memref<8x32xf32, #tpu.memory_space<vmem>>, vector<8x32xf32>
    tpu.vector_store %arg10[%c0_276, %c0_277], %568 {strides = array<i32>} : memref<8x32xf32, #tpu.memory_space<vmem>>, vector<8x32xf32>,
    %c0_278 = arith.constant 0 : index
    %c0_279 = arith.constant 0 : index
    %570 = vector.load %arg9[%c0_278, %c0_279] : memref<8x32xf32, #tpu.memory_space<vmem>>, vector<8x32xf32>
    %571 = vector.shape_cast %543 : vector<8x1xi1> to vector<8x1xi1>
    %572 = vector.broadcast %571 : vector<8x1xi1> to vector<8x32xi1>
    %573 = arith.select %572, %564, %570 : vector<8x32xi1>, vector<8x32xf32>
    %c0_280 = arith.constant 0 : index
    %c0_281 = arith.constant 0 : index
    %574 = vector.load %arg9[%c0_280, %c0_281] : memref<8x32xf32, #tpu.memory_space<vmem>>, vector<8x32xf32>
    tpu.vector_store %arg9[%c0_280, %c0_281], %573 {strides = array<i32>} : memref<8x32xf32, #tpu.memory_space<vmem>>, vector<8x32xf32>,
    %cst_282 = arith.constant 0.000000e+00 : f32
    %575 = vector.shape_cast %543 : vector<8x1xi1> to vector<8x1xi1>
    %576 = vector.broadcast %575 : vector<8x1xi1> to vector<8x32xi1>
    %577 = vector.broadcast %cst_282 : f32 to vector<8x32xf32>
    %578 = arith.select %576, %564, %577 : vector<8x32xi1>, vector<8x32xf32>
    %579 = arith.index_cast %539 : i32 to index
    %c0_283 = arith.constant 0 : index
    %580 = vector.load %arg6[%579, %c0_283] : memref<64x32xf32, #tpu.memory_space<vmem>>, vector<8x32xf32>
    tpu.vector_store %arg6[%579, %c0_283], %578 {strides = array<i32>} : memref<64x32xf32, #tpu.memory_space<vmem>>, vector<8x32xf32>,
    %c7_i32_284 = arith.constant 7 : i32
    %581 = arith.subi %c7_i32_284, %c6_i32 : i32
    %c8_i32_285 = arith.constant 8 : i32
    %582 = arith.muli %581, %c8_i32_285 : i32
    %583 = tpu.assume_multiple %582, 8 : i32
    %584 = arith.index_cast %583 : i32 to index
    %c128_286 = arith.constant 128 : index
    %585 = vector.load %arg7[%584, %c128_286] : memref<64x256xf32, #tpu.memory_space<vmem>>, vector<8x128xf32>
    %586 = vector.broadcast %581 : i32 to vector<8x1xi32>
    %587 = arith.cmpi slt, %586, %15 : vector<8x1xi32>
    %c0_287 = arith.constant 0 : index
    %c0_288 = arith.constant 0 : index
    %588 = vector.load %arg11[%c0_287, %c0_288] : memref<8x32xf32, #tpu.memory_space<vmem>>, vector<8x32xf32>
    %589 = arith.truncf %588 : vector<8x32xf32> to vector<8x32xbf16>
    %c0_289 = arith.constant 0 : index
    %c0_290 = arith.constant 0 : index
    %590 = vector.load %arg5[%c0_289, %c0_290] : memref<32x128xbf16, #tpu.memory_space<vmem>>, vector<32x128xbf16>
    %cst_291 = arith.constant dense<0.000000e+00> : vector<8x128xf32>
    %591 = tpu.matmul %589, %590, %cst_291 {dimension_numbers = #tpu.dot_dimension_numbers<[1], [0], [0], [1], [0, 0, 1, 1], [], []>} : vector<8x32xbf16>, vector<32x128xbf16>, vector<8x128xf32> -> vector<8x128xf32>
    %592 = arith.addf %585, %591 : vector<8x128xf32>
    %593 = arith.negf %592 : vector<8x128xf32>
    %594 = math.exp %593 : vector<8x128xf32>
    %cst_292 = arith.constant 1.000000e+00 : f32
    %595 = vector.broadcast %cst_292 : f32 to vector<8x128xf32>
    %596 = arith.addf %595, %594 : vector<8x128xf32>
    %597 = arith.divf %595, %596 : vector<8x128xf32>
    %598 = math.tanh %592 : vector<8x128xf32>
    %599 = vector.extract_strided_slice %597 {offsets = [0, 0], sizes = [8, 32], strides = [1, 1]} : vector<8x128xf32> to vector<8x32xf32>
    %600 = vector.extract_strided_slice %597 {offsets = [0, 32], sizes = [8, 32], strides = [1, 1]} : vector<8x128xf32> to vector<8x32xf32>
    %601 = vector.extract_strided_slice %598 {offsets = [0, 64], sizes = [8, 32], strides = [1, 1]} : vector<8x128xf32> to vector<8x32xf32>
    %602 = vector.extract_strided_slice %597 {offsets = [0, 96], sizes = [8, 32], strides = [1, 1]} : vector<8x128xf32> to vector<8x32xf32>
    %c0_293 = arith.constant 0 : index
    %c0_294 = arith.constant 0 : index
    %603 = vector.load %arg12[%c0_293, %c0_294] : memref<8x32xf32, #tpu.memory_space<vmem>>, vector<8x32xf32>
    %604 = arith.mulf %600, %603 : vector<8x32xf32>
    %605 = arith.mulf %599, %601 : vector<8x32xf32>
    %606 = arith.addf %604, %605 : vector<8x32xf32>
    %607 = math.tanh %606 : vector<8x32xf32>
    %608 = arith.mulf %602, %607 : vector<8x32xf32>
    %c0_295 = arith.constant 0 : index
    %c0_296 = arith.constant 0 : index
    %609 = vector.load %arg12[%c0_295, %c0_296] : memref<8x32xf32, #tpu.memory_space<vmem>>, vector<8x32xf32>
    %610 = vector.shape_cast %587 : vector<8x1xi1> to vector<8x1xi1>
    %611 = vector.broadcast %610 : vector<8x1xi1> to vector<8x32xi1>
    %612 = arith.select %611, %606, %609 : vector<8x32xi1>, vector<8x32xf32>
    %c0_297 = arith.constant 0 : index
    %c0_298 = arith.constant 0 : index
    %613 = vector.load %arg12[%c0_297, %c0_298] : memref<8x32xf32, #tpu.memory_space<vmem>>, vector<8x32xf32>
    tpu.vector_store %arg12[%c0_297, %c0_298], %612 {strides = array<i32>} : memref<8x32xf32, #tpu.memory_space<vmem>>, vector<8x32xf32>,
    %c0_299 = arith.constant 0 : index
    %c0_300 = arith.constant 0 : index
    %614 = vector.load %arg11[%c0_299, %c0_300] : memref<8x32xf32, #tpu.memory_space<vmem>>, vector<8x32xf32>
    %615 = vector.shape_cast %587 : vector<8x1xi1> to vector<8x1xi1>
    %616 = vector.broadcast %615 : vector<8x1xi1> to vector<8x32xi1>
    %617 = arith.select %616, %608, %614 : vector<8x32xi1>, vector<8x32xf32>
    %c0_301 = arith.constant 0 : index
    %c0_302 = arith.constant 0 : index
    %618 = vector.load %arg11[%c0_301, %c0_302] : memref<8x32xf32, #tpu.memory_space<vmem>>, vector<8x32xf32>
    tpu.vector_store %arg11[%c0_301, %c0_302], %617 {strides = array<i32>} : memref<8x32xf32, #tpu.memory_space<vmem>>, vector<8x32xf32>,
    %cst_303 = arith.constant 0.000000e+00 : f32
    %619 = vector.shape_cast %587 : vector<8x1xi1> to vector<8x1xi1>
    %620 = vector.broadcast %619 : vector<8x1xi1> to vector<8x32xi1>
    %621 = vector.broadcast %cst_303 : f32 to vector<8x32xf32>
    %622 = arith.select %620, %608, %621 : vector<8x32xi1>, vector<8x32xf32>
    %623 = arith.index_cast %583 : i32 to index
    %c0_304 = arith.constant 0 : index
    %624 = vector.load %arg8[%623, %c0_304] : memref<64x32xf32, #tpu.memory_space<vmem>>, vector<8x32xf32>
    tpu.vector_store %arg8[%623, %c0_304], %622 {strides = array<i32>} : memref<64x32xf32, #tpu.memory_space<vmem>>, vector<8x32xf32>,
    %c7_i32_305 = arith.constant 7 : i32
    %c8_i32_306 = arith.constant 8 : i32
    %625 = arith.muli %c7_i32_305, %c8_i32_306 : i32
    %626 = tpu.assume_multiple %625, 8 : i32
    %627 = arith.index_cast %626 : i32 to index
    %c0_307 = arith.constant 0 : index
    %628 = vector.load %arg7[%627, %c0_307] : memref<64x256xf32, #tpu.memory_space<vmem>>, vector<8x128xf32>
    %629 = vector.broadcast %c7_i32_305 : i32 to vector<8x1xi32>
    %630 = arith.cmpi slt, %629, %15 : vector<8x1xi32>
    %c0_308 = arith.constant 0 : index
    %c0_309 = arith.constant 0 : index
    %631 = vector.load %arg9[%c0_308, %c0_309] : memref<8x32xf32, #tpu.memory_space<vmem>>, vector<8x32xf32>
    %632 = arith.truncf %631 : vector<8x32xf32> to vector<8x32xbf16>
    %c0_310 = arith.constant 0 : index
    %c0_311 = arith.constant 0 : index
    %633 = vector.load %arg4[%c0_310, %c0_311] : memref<32x128xbf16, #tpu.memory_space<vmem>>, vector<32x128xbf16>
    %cst_312 = arith.constant dense<0.000000e+00> : vector<8x128xf32>
    %634 = tpu.matmul %632, %633, %cst_312 {dimension_numbers = #tpu.dot_dimension_numbers<[1], [0], [0], [1], [0, 0, 1, 1], [], []>} : vector<8x32xbf16>, vector<32x128xbf16>, vector<8x128xf32> -> vector<8x128xf32>
    %635 = arith.addf %628, %634 : vector<8x128xf32>
    %636 = arith.negf %635 : vector<8x128xf32>
    %637 = math.exp %636 : vector<8x128xf32>
    %cst_313 = arith.constant 1.000000e+00 : f32
    %638 = vector.broadcast %cst_313 : f32 to vector<8x128xf32>
    %639 = arith.addf %638, %637 : vector<8x128xf32>
    %640 = arith.divf %638, %639 : vector<8x128xf32>
    %641 = math.tanh %635 : vector<8x128xf32>
    %642 = vector.extract_strided_slice %640 {offsets = [0, 0], sizes = [8, 32], strides = [1, 1]} : vector<8x128xf32> to vector<8x32xf32>
    %643 = vector.extract_strided_slice %640 {offsets = [0, 32], sizes = [8, 32], strides = [1, 1]} : vector<8x128xf32> to vector<8x32xf32>
    %644 = vector.extract_strided_slice %641 {offsets = [0, 64], sizes = [8, 32], strides = [1, 1]} : vector<8x128xf32> to vector<8x32xf32>
    %645 = vector.extract_strided_slice %640 {offsets = [0, 96], sizes = [8, 32], strides = [1, 1]} : vector<8x128xf32> to vector<8x32xf32>
    %c0_314 = arith.constant 0 : index
    %c0_315 = arith.constant 0 : index
    %646 = vector.load %arg10[%c0_314, %c0_315] : memref<8x32xf32, #tpu.memory_space<vmem>>, vector<8x32xf32>
    %647 = arith.mulf %643, %646 : vector<8x32xf32>
    %648 = arith.mulf %642, %644 : vector<8x32xf32>
    %649 = arith.addf %647, %648 : vector<8x32xf32>
    %650 = math.tanh %649 : vector<8x32xf32>
    %651 = arith.mulf %645, %650 : vector<8x32xf32>
    %c0_316 = arith.constant 0 : index
    %c0_317 = arith.constant 0 : index
    %652 = vector.load %arg10[%c0_316, %c0_317] : memref<8x32xf32, #tpu.memory_space<vmem>>, vector<8x32xf32>
    %653 = vector.shape_cast %630 : vector<8x1xi1> to vector<8x1xi1>
    %654 = vector.broadcast %653 : vector<8x1xi1> to vector<8x32xi1>
    %655 = arith.select %654, %649, %652 : vector<8x32xi1>, vector<8x32xf32>
    %c0_318 = arith.constant 0 : index
    %c0_319 = arith.constant 0 : index
    %656 = vector.load %arg10[%c0_318, %c0_319] : memref<8x32xf32, #tpu.memory_space<vmem>>, vector<8x32xf32>
    tpu.vector_store %arg10[%c0_318, %c0_319], %655 {strides = array<i32>} : memref<8x32xf32, #tpu.memory_space<vmem>>, vector<8x32xf32>,
    %c0_320 = arith.constant 0 : index
    %c0_321 = arith.constant 0 : index
    %657 = vector.load %arg9[%c0_320, %c0_321] : memref<8x32xf32, #tpu.memory_space<vmem>>, vector<8x32xf32>
    %658 = vector.shape_cast %630 : vector<8x1xi1> to vector<8x1xi1>
    %659 = vector.broadcast %658 : vector<8x1xi1> to vector<8x32xi1>
    %660 = arith.select %659, %651, %657 : vector<8x32xi1>, vector<8x32xf32>
    %c0_322 = arith.constant 0 : index
    %c0_323 = arith.constant 0 : index
    %661 = vector.load %arg9[%c0_322, %c0_323] : memref<8x32xf32, #tpu.memory_space<vmem>>, vector<8x32xf32>
    tpu.vector_store %arg9[%c0_322, %c0_323], %660 {strides = array<i32>} : memref<8x32xf32, #tpu.memory_space<vmem>>, vector<8x32xf32>,
    %cst_324 = arith.constant 0.000000e+00 : f32
    %662 = vector.shape_cast %630 : vector<8x1xi1> to vector<8x1xi1>
    %663 = vector.broadcast %662 : vector<8x1xi1> to vector<8x32xi1>
    %664 = vector.broadcast %cst_324 : f32 to vector<8x32xf32>
    %665 = arith.select %663, %651, %664 : vector<8x32xi1>, vector<8x32xf32>
    %666 = arith.index_cast %626 : i32 to index
    %c0_325 = arith.constant 0 : index
    %667 = vector.load %arg6[%666, %c0_325] : memref<64x32xf32, #tpu.memory_space<vmem>>, vector<8x32xf32>
    tpu.vector_store %arg6[%666, %c0_325], %665 {strides = array<i32>} : memref<64x32xf32, #tpu.memory_space<vmem>>, vector<8x32xf32>,
    %c7_i32_326 = arith.constant 7 : i32
    %668 = arith.subi %c7_i32_326, %c7_i32_305 : i32
    %c8_i32_327 = arith.constant 8 : i32
    %669 = arith.muli %668, %c8_i32_327 : i32
    %670 = tpu.assume_multiple %669, 8 : i32
    %671 = arith.index_cast %670 : i32 to index
    %c128_328 = arith.constant 128 : index
    %672 = vector.load %arg7[%671, %c128_328] : memref<64x256xf32, #tpu.memory_space<vmem>>, vector<8x128xf32>
    %673 = vector.broadcast %668 : i32 to vector<8x1xi32>
    %674 = arith.cmpi slt, %673, %15 : vector<8x1xi32>
    %c0_329 = arith.constant 0 : index
    %c0_330 = arith.constant 0 : index
    %675 = vector.load %arg11[%c0_329, %c0_330] : memref<8x32xf32, #tpu.memory_space<vmem>>, vector<8x32xf32>
    %676 = arith.truncf %675 : vector<8x32xf32> to vector<8x32xbf16>
    %c0_331 = arith.constant 0 : index
    %c0_332 = arith.constant 0 : index
    %677 = vector.load %arg5[%c0_331, %c0_332] : memref<32x128xbf16, #tpu.memory_space<vmem>>, vector<32x128xbf16>
    %cst_333 = arith.constant dense<0.000000e+00> : vector<8x128xf32>
    %678 = tpu.matmul %676, %677, %cst_333 {dimension_numbers = #tpu.dot_dimension_numbers<[1], [0], [0], [1], [0, 0, 1, 1], [], []>} : vector<8x32xbf16>, vector<32x128xbf16>, vector<8x128xf32> -> vector<8x128xf32>
    %679 = arith.addf %672, %678 : vector<8x128xf32>
    %680 = arith.negf %679 : vector<8x128xf32>
    %681 = math.exp %680 : vector<8x128xf32>
    %cst_334 = arith.constant 1.000000e+00 : f32
    %682 = vector.broadcast %cst_334 : f32 to vector<8x128xf32>
    %683 = arith.addf %682, %681 : vector<8x128xf32>
    %684 = arith.divf %682, %683 : vector<8x128xf32>
    %685 = math.tanh %679 : vector<8x128xf32>
    %686 = vector.extract_strided_slice %684 {offsets = [0, 0], sizes = [8, 32], strides = [1, 1]} : vector<8x128xf32> to vector<8x32xf32>
    %687 = vector.extract_strided_slice %684 {offsets = [0, 32], sizes = [8, 32], strides = [1, 1]} : vector<8x128xf32> to vector<8x32xf32>
    %688 = vector.extract_strided_slice %685 {offsets = [0, 64], sizes = [8, 32], strides = [1, 1]} : vector<8x128xf32> to vector<8x32xf32>
    %689 = vector.extract_strided_slice %684 {offsets = [0, 96], sizes = [8, 32], strides = [1, 1]} : vector<8x128xf32> to vector<8x32xf32>
    %c0_335 = arith.constant 0 : index
    %c0_336 = arith.constant 0 : index
    %690 = vector.load %arg12[%c0_335, %c0_336] : memref<8x32xf32, #tpu.memory_space<vmem>>, vector<8x32xf32>
    %691 = arith.mulf %687, %690 : vector<8x32xf32>
    %692 = arith.mulf %686, %688 : vector<8x32xf32>
    %693 = arith.addf %691, %692 : vector<8x32xf32>
    %694 = math.tanh %693 : vector<8x32xf32>
    %695 = arith.mulf %689, %694 : vector<8x32xf32>
    %c0_337 = arith.constant 0 : index
    %c0_338 = arith.constant 0 : index
    %696 = vector.load %arg12[%c0_337, %c0_338] : memref<8x32xf32, #tpu.memory_space<vmem>>, vector<8x32xf32>
    %697 = vector.shape_cast %674 : vector<8x1xi1> to vector<8x1xi1>
    %698 = vector.broadcast %697 : vector<8x1xi1> to vector<8x32xi1>
    %699 = arith.select %698, %693, %696 : vector<8x32xi1>, vector<8x32xf32>
    %c0_339 = arith.constant 0 : index
    %c0_340 = arith.constant 0 : index
    %700 = vector.load %arg12[%c0_339, %c0_340] : memref<8x32xf32, #tpu.memory_space<vmem>>, vector<8x32xf32>
    tpu.vector_store %arg12[%c0_339, %c0_340], %699 {strides = array<i32>} : memref<8x32xf32, #tpu.memory_space<vmem>>, vector<8x32xf32>,
    %c0_341 = arith.constant 0 : index
    %c0_342 = arith.constant 0 : index
    %701 = vector.load %arg11[%c0_341, %c0_342] : memref<8x32xf32, #tpu.memory_space<vmem>>, vector<8x32xf32>
    %702 = vector.shape_cast %674 : vector<8x1xi1> to vector<8x1xi1>
    %703 = vector.broadcast %702 : vector<8x1xi1> to vector<8x32xi1>
    %704 = arith.select %703, %695, %701 : vector<8x32xi1>, vector<8x32xf32>
    %c0_343 = arith.constant 0 : index
    %c0_344 = arith.constant 0 : index
    %705 = vector.load %arg11[%c0_343, %c0_344] : memref<8x32xf32, #tpu.memory_space<vmem>>, vector<8x32xf32>
    tpu.vector_store %arg11[%c0_343, %c0_344], %704 {strides = array<i32>} : memref<8x32xf32, #tpu.memory_space<vmem>>, vector<8x32xf32>,
    %cst_345 = arith.constant 0.000000e+00 : f32
    %706 = vector.shape_cast %674 : vector<8x1xi1> to vector<8x1xi1>
    %707 = vector.broadcast %706 : vector<8x1xi1> to vector<8x32xi1>
    %708 = vector.broadcast %cst_345 : f32 to vector<8x32xf32>
    %709 = arith.select %707, %695, %708 : vector<8x32xi1>, vector<8x32xf32>
    %710 = arith.index_cast %670 : i32 to index
    %c0_346 = arith.constant 0 : index
    %711 = vector.load %arg8[%710, %c0_346] : memref<64x32xf32, #tpu.memory_space<vmem>>, vector<8x32xf32>
    tpu.vector_store %arg8[%710, %c0_346], %709 {strides = array<i32>} : memref<64x32xf32, #tpu.memory_space<vmem>>, vector<8x32xf32>,
    %c8_i32_347 = arith.constant 8 : i32
    %c0_348 = arith.constant 0 : index
    %c0_349 = arith.constant 0 : index
    %712 = vector.load %arg6[%c0_348, %c0_349] : memref<64x32xf32, #tpu.memory_space<vmem>>, vector<64x32xf32>
    %c0_350 = arith.constant 0 : index
    %c0_351 = arith.constant 0 : index
    %713 = vector.load %arg8[%c0_350, %c0_351] : memref<64x32xf32, #tpu.memory_space<vmem>>, vector<64x32xf32>
    %714 = arith.addf %712, %713 : vector<64x32xf32>
    %c0_352 = arith.constant 0 : index
    %c0_353 = arith.constant 0 : index
    %715 = vector.load %arg6[%c0_352, %c0_353] : memref<64x32xf32, #tpu.memory_space<vmem>>, vector<64x32xf32>
    tpu.vector_store %arg6[%c0_352, %c0_353], %714 {strides = array<i32>} : memref<64x32xf32, #tpu.memory_space<vmem>>, vector<64x32xf32>,
    return
  }
}

</mosaic_0001>

<llo_original>
// kernel: tpu_custom_call.1
$region0: #{tpu_custom_call.1}
  #allocation0 [shape = 'u32[]', space=smem, size = 0x4, offset = 0x4, fixed_abs, tag = 'smem constant byte address 0x4 - core index']
  #allocation1 [shape = 'u32[144,128]{1,0:T(1,128)}', space=vmem, size = 0x12000, scoped, tag = 'internal scratch']
  #allocation2 [shape = 'f32[64,256]{1,0:T(8,128)}', space=vmem, size = 0x10000, scoped, tag = 'scratch operand']
  #allocation3 [shape = 'f32[64,32]{1,0:T(8,128)}', space=vmem, size = 0x8000, scoped, tag = 'scratch operand']
  #allocation4 [shape = 'f32[8,32]{1,0:T(8,128)}', space=vmem, size = 0x1000, scoped, tag = 'scratch operand']
  #allocation5 [shape = 'f32[8,32]{1,0:T(8,128)}', space=vmem, size = 0x1000, scoped, tag = 'scratch operand']
  #allocation6 [shape = 'f32[8,32]{1,0:T(8,128)}', space=vmem, size = 0x1000, scoped, tag = 'scratch operand']
  #allocation7 [shape = 'f32[8,32]{1,0:T(8,128)}', space=vmem, size = 0x1000, scoped, tag = 'scratch operand']
  %s0 = inlined_call_operand.vmem [shape: bf16[64,16], index: 0, kind: input, shape index: {}]
  %s1 = inlined_call_operand.vmem [shape: s32[8,1], index: 1, kind: input, shape index: {}]
  %s2 = inlined_call_operand.vmem [shape: bf16[16,256], index: 2, kind: input, shape index: {}]
  %s3 = inlined_call_operand.vmem [shape: f32[1,256], index: 3, kind: input, shape index: {}]
  %s4 = inlined_call_operand.vmem [shape: bf16[32,128], index: 4, kind: input, shape index: {}]
  %s5 = inlined_call_operand.vmem [shape: bf16[32,128], index: 5, kind: input, shape index: {}]
  %s6 = inlined_call_operand.vmem [shape: f32[64,32], index: 6, kind: output, shape index: {}]
  %s7 = sld [smem:[#allocation0]]
  $region34: #{tpu_custom_call.1} parent=0
    _
  %s9 = ssub.s32 1, %s7
  %s10 = scalar_select 0, %s9, %s7
  // Predicated region
  $region2: #{tpu_custom_call.1} parent=0 // pred_check
    _
  $region3: #{tpu_custom_call.1} parent=0 // pred_check_branch
    %12 = sbr.rel (0) target = $region5
  $region4: #{tpu_custom_call.1} parent=0 // pred_region
    _
  $region5: #{tpu_custom_call.1} parent=0 // pred_fallthru
    _
  // Predicated region
  $region6: #{tpu_custom_call.1} parent=0 // pred_check
    _
  $region7: #{tpu_custom_call.1} parent=0 // pred_check_branch
    %14 = sbr.rel (0) target = $region9
  $region8: #{tpu_custom_call.1} parent=0 // pred_region
    _
  $region9: #{tpu_custom_call.1} parent=0 // pred_fallthru
    _
  // Predicated region
  $region10: #{tpu_custom_call.1} parent=0 // pred_check
    _
  $region11: #{tpu_custom_call.1} parent=0 // pred_check_branch
    %16 = sbr.rel (0) target = $region13
  $region12: #{tpu_custom_call.1} parent=0 // pred_region
    _
  $region13: #{tpu_custom_call.1} parent=0 // pred_fallthru
    _
  // Predicated region
  $region14: #{tpu_custom_call.1} parent=0 // pred_check
    _
  $region15: #{tpu_custom_call.1} parent=0 // pred_check_branch
    %18 = sbr.rel (0) target = $region17
  $region16: #{tpu_custom_call.1} parent=0 // pred_region
    _
  $region17: #{tpu_custom_call.1} parent=0 // pred_fallthru
    _
  // Predicated region
  $region18: #{tpu_custom_call.1} parent=0 // pred_check
    _
  $region19: #{tpu_custom_call.1} parent=0 // pred_check_branch
    %20 = sbr.rel (0) target = $region21
  $region20: #{tpu_custom_call.1} parent=0 // pred_region
    _
  $region21: #{tpu_custom_call.1} parent=0 // pred_fallthru
    _
  // Predicated region
  $region22: #{tpu_custom_call.1} parent=0 // pred_check
    _
  $region23: #{tpu_custom_call.1} parent=0 // pred_check_branch
    %22 = sbr.rel (0) target = $region25
  $region24: #{tpu_custom_call.1} parent=0 // pred_region
    _
  $region25: #{tpu_custom_call.1} parent=0 // pred_fallthru
    _
  %v24 = vld [vmem:[%s0] sm:$0xf]
  %v25 = vld [vmem:[%s0 + $0x4] sm:$0xf]
  %v26 = vld [vmem:[%s0 + $0x8] sm:$0xf]
  %v27 = vld [vmem:[%s0 + $0xc] sm:$0xf]
  %v28 = vld [vmem:[%s0 + $0x10] sm:$0xf]
  %v29 = vld [vmem:[%s0 + $0x14] sm:$0xf]
  %v30 = vld [vmem:[%s0 + $0x18] sm:$0xf]
  %v31 = vld [vmem:[%s0 + $0x1c] sm:$0xf]
  %v32 = vld [vmem:[%s2] sm:$0xff]
  %v33 = vld [vmem:[%s2 + $0x8] sm:$0xff]
  %v34 = vld [vmem:[%s3] sm:$0x3]
  %v36 = vlaneseq
  %v37 = vshrl.u32 %v36, 7
  %v38 = vsub.s32 0, %v37
  %v39 = vrot.slane %v34, %v38
  %v40 = vlaneseq
  %v41 = vshrl.u32 %v40, 7
  %v42 = vsub.s32 1, %v41
  %v43 = vrot.slane %v34, %v42
  %v54 = vunpack.c.l.b16 %v24
  %v55 = vunpack.c.l.b16 %v25
  %v56 = vunpack.c.l.b16 %v26
  %v57 = vunpack.c.l.b16 %v27
  %v58 = vunpack.c.l.b16 %v28
  %v59 = vunpack.c.l.b16 %v29
  %v60 = vunpack.c.l.b16 %v30
  %v61 = vunpack.c.l.b16 %v31
  %v62 = vpack.c.b16 %v55, %v54
  %v63 = vpack.c.b16 %v57, %v56
  %v64 = vpack.c.b16 %v59, %v58
  %v65 = vpack.c.b16 %v61, %v60
  %v68 = vunpack.c.l.b16 %v32
  %v69 = vunpack.c.h.b16 %v32
  %v70 = vunpack.c.l.b16 %v33
  %v71 = vunpack.c.h.b16 %v33
  %v72 = vpack.c.b16 %v70, %v68
  %v73 = vpack.c.b16 %v71, %v69
  %vm76 = vcmask 130048
  %v78 = vsel %vm76, %v62, 0
  %v81 = vsel %vm76, %v63, 0
  %v84 = vsel %vm76, %v64, 0
  %v87 = vsel %vm76, %v65, 0
  %89 = vmatprep.subr.bf16.mxu0 %v73
  %90 = vmatpush1.bf16.msra.mxu0 %v72
  %91 = vmatprep.subr.bf16.mxu0 0
  %92 = vmatpush1.bf16.msra.mxu0 0
  %93 = vmatprep.subr.bf16.mxu0 0
  %94 = vmatpush1.bf16.msra.mxu0 0
  %95 = vmatprep.subr.bf16.mxu0 0
  %96 = vmatpush1.bf16.msra.mxu0 0
  %97 = vmatprep.subr.bf16.mxu0 0
  %98 = vmatpush1.bf16.msra.mxu0 0
  %99 = vmatprep.subr.bf16.mxu0 0
  %100 = vmatpush1.bf16.msra.mxu0 0
  %101 = vmatprep.subr.bf16.mxu0 0
  %102 = vmatpush1.bf16.msra.mxu0 0
  %103 = vmatprep.subr.bf16.mxu0 0
  %104 = vmatpush1.bf16.msra.mxu0 0
  %105 = vmatprep.subr.bf16.mxu0 0
  %106 = vmatpush1.bf16.msra.mxu0 0
  %107 = vmatprep.subr.bf16.mxu0 0
  %108 = vmatpush1.bf16.msra.mxu0 0
  %109 = vmatprep.subr.bf16.mxu0 0
  %110 = vmatpush1.bf16.msra.mxu0 0
  %111 = vmatprep.subr.bf16.mxu0 0
  %112 = vmatpush1.bf16.msra.mxu0 0
  %113 = vmatprep.subr.bf16.mxu0 0
  %114 = vmatpush1.bf16.msra.mxu0 0
  %115 = vmatprep.subr.bf16.mxu0 0
  %116 = vmatpush1.bf16.msra.mxu0 0
  %117 = vmatprep.subr.bf16.mxu0 0
  %118 = vmatpush1.bf16.msra.mxu0 0
  %119 = vmatprep.subr.bf16.mxu0 0
  %120 = vmatpush1.bf16.msra.mxu0 0
  %121 = vmatprep.mubr.bf16.mxu0 0
  %122 = vmatmul.mubr.bf16.gmra.mrb[0].mxu0 %v78
  %v123 = vpop.f32.mrb[0].mxu0
  %v124 = vadd.f32 %v39, %v123
  %v125 = vpop.f32.mrb[0].mxu0
  %v126 = vadd.f32 %v43, %v125
  %v127 = vpop.f32.mrb[0].mxu0
  %v128 = vadd.f32 %v39, %v127
  %v129 = vpop.f32.mrb[0].mxu0
  %v130 = vadd.f32 %v43, %v129
  %131 = vmatprep.mubr.bf16.mxu0 0
  %132 = vmatmul.mubr.bf16.gmra.mrb[0].mxu0 %v81
  %v133 = vpop.f32.mrb[0].mxu0
  %v134 = vadd.f32 %v39, %v133
  %v135 = vpop.f32.mrb[0].mxu0
  %v136 = vadd.f32 %v43, %v135
  %v137 = vpop.f32.mrb[0].mxu0
  %v138 = vadd.f32 %v39, %v137
  %v139 = vpop.f32.mrb[0].mxu0
  %v140 = vadd.f32 %v43, %v139
  %141 = vmatprep.mubr.bf16.mxu0 0
  %142 = vmatmul.mubr.bf16.gmra.mrb[0].mxu0 %v84
  %v143 = vpop.f32.mrb[0].mxu0
  %v144 = vadd.f32 %v39, %v143
  %v145 = vpop.f32.mrb[0].mxu0
  %v146 = vadd.f32 %v43, %v145
  %v147 = vpop.f32.mrb[0].mxu0
  %v148 = vadd.f32 %v39, %v147
  %v149 = vpop.f32.mrb[0].mxu0
  %v150 = vadd.f32 %v43, %v149
  %151 = vmatprep.mubr.bf16.mxu0 0
  %152 = vmatmul.mubr.bf16.gmra.mrb[0].mxu0 %v87
  %v153 = vpop.f32.mrb[0].mxu0
  %v154 = vadd.f32 %v39, %v153
  %v155 = vpop.f32.mrb[0].mxu0
  %v156 = vadd.f32 %v43, %v155
  %v157 = vpop.f32.mrb[0].mxu0
  %v158 = vadd.f32 %v39, %v157
  %v159 = vpop.f32.mrb[0].mxu0
  %v160 = vadd.f32 %v43, %v159
  %161 = vdwg.mxu0
  %162 = vst [vmem:[#allocation2] sm:$0xff] %v124
  %163 = vst [vmem:[#allocation2 + $0x8] sm:$0xff] %v126
  %164 = vst [vmem:[#allocation2 + $0x10] sm:$0xff] %v128
  %165 = vst [vmem:[#allocation2 + $0x18] sm:$0xff] %v130
  %166 = vst [vmem:[#allocation2 + $0x20] sm:$0xff] %v134
  %167 = vst [vmem:[#allocation2 + $0x28] sm:$0xff] %v136
  %168 = vst [vmem:[#allocation2 + $0x30] sm:$0xff] %v138
  %169 = vst [vmem:[#allocation2 + $0x38] sm:$0xff] %v140
  %170 = vst [vmem:[#allocation2 + $0x40] sm:$0xff] %v144
  %171 = vst [vmem:[#allocation2 + $0x48] sm:$0xff] %v146
  %172 = vst [vmem:[#allocation2 + $0x50] sm:$0xff] %v148
  %173 = vst [vmem:[#allocation2 + $0x58] sm:$0xff] %v150
  %174 = vst [vmem:[#allocation2 + $0x60] sm:$0xff] %v154
  %175 = vst [vmem:[#allocation2 + $0x68] sm:$0xff] %v156
  %176 = vst [vmem:[#allocation2 + $0x70] sm:$0xff] %v158
  %177 = vst [vmem:[#allocation2 + $0x78] sm:$0xff] %v160
  %vm178 = vcmask 261120
  %179 = vst.msk [vmem:[#allocation4] sm:$0xff] %vm178, 0.0
  %180 = vst.msk [vmem:[#allocation5] sm:$0xff] %vm178, 0.0
  %181 = vst.msk [vmem:[#allocation6] sm:$0xff] %vm178, 0.0
  %182 = vst.msk [vmem:[#allocation7] sm:$0xff] %vm178, 0.0
  %v183 = vld [vmem:[%s1] sm:$0xff]
  %s184 = smul.u32 0, 2
  %s185 = smul.addr %s184, 8
  %s186 = scalar_lea.vmem [#allocation2], %s185
  %v187 = vld [vmem:[%s186] sm:$0xff]
  %vm188 = vcmp.gt.s32.totalorder %v183, 0
  %v189 = vld [vmem:[#allocation4] sm:$0xff]
  %v190 = vpack.c.bf16 %v189, %v189
  %v191 = vld [vmem:[%s4] sm:$0xf]
  %v192 = vld [vmem:[%s4 + $0x4] sm:$0xf]
  %v193 = vld [vmem:[%s4 + $0x8] sm:$0xf]
  %v194 = vld [vmem:[%s4 + $0xc] sm:$0xf]
  %v199 = vunpack.c.l.b16 %v191
  %v200 = vunpack.c.l.b16 %v192
  %v201 = vunpack.c.l.b16 %v193
  %v202 = vunpack.c.l.b16 %v194
  %v203 = vpack.c.b16 %v200, %v199
  %v204 = vpack.c.b16 %v202, %v201
  %v208 = vsel %vm178, %v190, 0
  %210 = vmatprep.subr.bf16.mxu0 0
  %211 = vmatpush1.bf16.msra.mxu0 %v203
  %212 = vmatprep.subr.bf16.mxu0 0
  %213 = vmatpush1.bf16.msra.mxu0 %v204
  %214 = vmatprep.subr.bf16.mxu0 0
  %215 = vmatpush1.bf16.msra.mxu0 0
  %216 = vmatprep.subr.bf16.mxu0 0
  %217 = vmatpush1.bf16.msra.mxu0 0
  %218 = vmatprep.subr.bf16.mxu0 0
  %219 = vmatpush1.bf16.msra.mxu0 0
  %220 = vmatprep.subr.bf16.mxu0 0
  %221 = vmatpush1.bf16.msra.mxu0 0
  %222 = vmatprep.subr.bf16.mxu0 0
  %223 = vmatpush1.bf16.msra.mxu0 0
  %224 = vmatprep.subr.bf16.mxu0 0
  %225 = vmatpush1.bf16.msra.mxu0 0
  %226 = vmatprep.subr.bf16.mxu0 0
  %227 = vmatpush1.bf16.msra.mxu0 0
  %228 = vmatprep.subr.bf16.mxu0 0
  %229 = vmatpush1.bf16.msra.mxu0 0
  %230 = vmatprep.subr.bf16.mxu0 0
  %231 = vmatpush1.bf16.msra.mxu0 0
  %232 = vmatprep.subr.bf16.mxu0 0
  %233 = vmatpush1.bf16.msra.mxu0 0
  %234 = vmatprep.subr.bf16.mxu0 0
  %235 = vmatpush1.bf16.msra.mxu0 0
  %236 = vmatprep.subr.bf16.mxu0 0
  %237 = vmatpush1.bf16.msra.mxu0 0
  %238 = vmatprep.subr.bf16.mxu0 0
  %239 = vmatpush1.bf16.msra.mxu0 0
  %240 = vmatprep.subr.bf16.mxu0 0
  %241 = vmatpush1.bf16.msra.mxu0 0
  %242 = vmatprep.mubr.bf16.mxu0 0
  %243 = vmatmul.mubr.bf16.gmra.mrb[0].mxu0 %v208
  %v244 = vpop.f32.mrb[0].mxu0
  %v245 = vadd.f32 0.0, %v244
  %v246 = vpop.f32.mrb[0].mxu0
  %v247 = vpop.f32.mrb[0].mxu0
  %v248 = vpop.f32.mrb[0].mxu0
  %249 = vdwg.mxu0
  %v250 = vadd.f32 %v187, %v245
  %v251 = vxor.u32 %v250, 2147483648
  %v252 = vmul.f32 %v251, 1.442695
  %v253 = vpow.pop %v252
  %v254 = vadd.f32 %v253, 1.0
  %v255 = vrcp.pop %v254
  %v256 = vmul.f32 1.0, %v255
  %v257 = vtanh.pop %v250
  %v258 = vld [vmem:[#allocation5] sm:$0xff]
  %260 = vrot.lane.b32.xlu0 %v258, 32
  %v261 = vpop.permute.xlu0 %260
  %v263 = vmul.f32 %v256, %v261
  %265 = vrot.lane.b32.xlu0 %v257, 64
  %v266 = vpop.permute.xlu0 %265
  %v268 = vmul.f32 %v256, %v266
  %270 = vrot.lane.b32.xlu0 %v268, 32
  %v271 = vpop.permute.xlu0 %270
  %v273 = vadd.f32 %v263, %v271
  %v274 = vtanh.pop %v273
  %276 = vrot.lane.b32.xlu0 %v274, 64
  %v277 = vpop.permute.xlu0 %276
  %v279 = vmul.f32 %v256, %v277
  %v280 = vsel %vm188, 1, 0
  %281 = vset.pattern.permute.xlu0 0
  %282 = vperm.xlu0 %281, %v280
  %v283 = vpop.permute.xlu0 %282
  %vm284 = vcmp.eq.s32.totalorder %v283, 1
  %v285 = vsel %vm284, %v273, %v261
  %287 = vrot.lane.b32.xlu0 %v285, 96
  %v288 = vpop.permute.xlu0 %287
  %290 = vst.msk [vmem:[#allocation5] sm:$0xff] %vm178, %v288
  %v291 = vld [vmem:[#allocation4] sm:$0xff]
  %293 = vrot.lane.b32.xlu0 %v291, 96
  %v294 = vpop.permute.xlu0 %293
  %v296 = vsel %vm284, %v279, %v294
  %298 = vrot.lane.b32.xlu0 %v296, 32
  %v299 = vpop.permute.xlu0 %298
  %301 = vst.msk [vmem:[#allocation4] sm:$0xff] %vm178, %v299
  %v302 = vsel %vm284, %v279, 0.0
  %304 = vrot.lane.b32.xlu0 %v302, 32
  %v305 = vpop.permute.xlu0 %304
  %307 = vst.msk [vmem:[%s6] sm:$0xff] %vm178, %v305
  %s308 = smul.u32 7, 2
  %s309 = smul.addr %s308, 8
  %s310 = scalar_lea.vmem [#allocation2], %s309
  %v311 = vld [vmem:[%s310 + $0x8] sm:$0xff]
  %vm312 = vcmp.gt.s32.totalorder %v183, 7
  %v313 = vld [vmem:[#allocation6] sm:$0xff]
  %v314 = vpack.c.bf16 %v313, %v313
  %v315 = vld [vmem:[%s5] sm:$0xf]
  %v316 = vld [vmem:[%s5 + $0x4] sm:$0xf]
  %v317 = vld [vmem:[%s5 + $0x8] sm:$0xf]
  %v318 = vld [vmem:[%s5 + $0xc] sm:$0xf]
  %v323 = vunpack.c.l.b16 %v315
  %v324 = vunpack.c.l.b16 %v316
  %v325 = vunpack.c.l.b16 %v317
  %v326 = vunpack.c.l.b16 %v318
  %v327 = vpack.c.b16 %v324, %v323
  %v328 = vpack.c.b16 %v326, %v325
  %v332 = vsel %vm178, %v314, 0
  %334 = vmatprep.subr.bf16.mxu0 0
  %335 = vmatpush1.bf16.msra.mxu0 %v327
  %336 = vmatprep.subr.bf16.mxu0 0
  %337 = vmatpush1.bf16.msra.mxu0 %v328
  %338 = vmatprep.subr.bf16.mxu0 0
  %339 = vmatpush1.bf16.msra.mxu0 0
  %340 = vmatprep.subr.bf16.mxu0 0
  %341 = vmatpush1.bf16.msra.mxu0 0
  %342 = vmatprep.subr.bf16.mxu0 0
  %343 = vmatpush1.bf16.msra.mxu0 0
  %344 = vmatprep.subr.bf16.mxu0 0
  %345 = vmatpush1.bf16.msra.mxu0 0
  %346 = vmatprep.subr.bf16.mxu0 0
  %347 = vmatpush1.bf16.msra.mxu0 0
  %348 = vmatprep.subr.bf16.mxu0 0
  %349 = vmatpush1.bf16.msra.mxu0 0
  %350 = vmatprep.subr.bf16.mxu0 0
  %351 = vmatpush1.bf16.msra.mxu0 0
  %352 = vmatprep.subr.bf16.mxu0 0
  %353 = vmatpush1.bf16.msra.mxu0 0
  %354 = vmatprep.subr.bf16.mxu0 0
  %355 = vmatpush1.bf16.msra.mxu0 0
  %356 = vmatprep.subr.bf16.mxu0 0
  %357 = vmatpush1.bf16.msra.mxu0 0
  %358 = vmatprep.subr.bf16.mxu0 0
  %359 = vmatpush1.bf16.msra.mxu0 0
  %360 = vmatprep.subr.bf16.mxu0 0
  %361 = vmatpush1.bf16.msra.mxu0 0
  %362 = vmatprep.subr.bf16.mxu0 0
  %363 = vmatpush1.bf16.msra.mxu0 0
  %364 = vmatprep.subr.bf16.mxu0 0
  %365 = vmatpush1.bf16.msra.mxu0 0
  %366 = vmatprep.mubr.bf16.mxu0 0
  %367 = vmatmul.mubr.bf16.gmra.mrb[0].mxu0 %v332
  %v368 = vpop.f32.mrb[0].mxu0
  %v369 = vadd.f32 0.0, %v368
  %v370 = vpop.f32.mrb[0].mxu0
  %v371 = vpop.f32.mrb[0].mxu0
  %v372 = vpop.f32.mrb[0].mxu0
  %373 = vdwg.mxu0
  %v374 = vadd.f32 %v311, %v369
  %v375 = vxor.u32 %v374, 2147483648
  %v376 = vmul.f32 %v375, 1.442695
  %v377 = vpow.pop %v376
  %v378 = vadd.f32 %v377, 1.0
  %v379 = vrcp.pop %v378
  %v380 = vmul.f32 1.0, %v379
  %v381 = vtanh.pop %v374
  %v382 = vld [vmem:[#allocation7] sm:$0xff]
  %384 = vrot.lane.b32.xlu0 %v382, 32
  %v385 = vpop.permute.xlu0 %384
  %v387 = vmul.f32 %v380, %v385
  %389 = vrot.lane.b32.xlu0 %v381, 64
  %v390 = vpop.permute.xlu0 %389
  %v392 = vmul.f32 %v380, %v390
  %394 = vrot.lane.b32.xlu0 %v392, 32
  %v395 = vpop.permute.xlu0 %394
  %v397 = vadd.f32 %v387, %v395
  %v398 = vtanh.pop %v397
  %400 = vrot.lane.b32.xlu0 %v398, 64
  %v401 = vpop.permute.xlu0 %400
  %v403 = vmul.f32 %v380, %v401
  %v404 = vsel %vm312, 1, 0
  %405 = vset.pattern.permute.xlu0 0
  %406 = vperm.xlu0 %405, %v404
  %v407 = vpop.permute.xlu0 %406
  %vm408 = vcmp.eq.s32.totalorder %v407, 1
  %v409 = vsel %vm408, %v397, %v385
  %411 = vrot.lane.b32.xlu0 %v409, 96
  %v412 = vpop.permute.xlu0 %411
  %414 = vst.msk [vmem:[#allocation7] sm:$0xff] %vm178, %v412
  %v415 = vld [vmem:[#allocation6] sm:$0xff]
  %417 = vrot.lane.b32.xlu0 %v415, 96
  %v418 = vpop.permute.xlu0 %417
  %v420 = vsel %vm408, %v403, %v418
  %422 = vrot.lane.b32.xlu0 %v420, 32
  %v423 = vpop.permute.xlu0 %422
  %425 = vst.msk [vmem:[#allocation6] sm:$0xff] %vm178, %v423
  %v426 = vsel %vm408, %v403, 0.0
  %428 = vrot.lane.b32.xlu0 %v426, 32
  %v429 = vpop.permute.xlu0 %428
  %s431 = scalar_lea.vmem [#allocation3], 56
  %432 = vst.msk [vmem:[%s431] sm:$0xff] %vm178, %v429
  %s433 = smul.u32 1, 2
  %s434 = smul.addr %s433, 8
  %s435 = scalar_lea.vmem [#allocation2], %s434
  %v436 = vld [vmem:[%s435] sm:$0xff]
  %vm437 = vcmp.gt.s32.totalorder %v183, 1
  %v438 = vld [vmem:[#allocation4] sm:$0xff]
  %v439 = vpack.c.bf16 %v438, %v438
  %v440 = vld [vmem:[%s4] sm:$0xf]
  %v441 = vld [vmem:[%s4 + $0x4] sm:$0xf]
  %v442 = vld [vmem:[%s4 + $0x8] sm:$0xf]
  %v443 = vld [vmem:[%s4 + $0xc] sm:$0xf]
  %v448 = vunpack.c.l.b16 %v440
  %v449 = vunpack.c.l.b16 %v441
  %v450 = vunpack.c.l.b16 %v442
  %v451 = vunpack.c.l.b16 %v443
  %v452 = vpack.c.b16 %v449, %v448
  %v453 = vpack.c.b16 %v451, %v450
  %v457 = vsel %vm178, %v439, 0
  %459 = vmatprep.subr.bf16.mxu0 0
  %460 = vmatpush1.bf16.msra.mxu0 %v452
  %461 = vmatprep.subr.bf16.mxu0 0
  %462 = vmatpush1.bf16.msra.mxu0 %v453
  %463 = vmatprep.subr.bf16.mxu0 0
  %464 = vmatpush1.bf16.msra.mxu0 0
  %465 = vmatprep.subr.bf16.mxu0 0
  %466 = vmatpush1.bf16.msra.mxu0 0
  %467 = vmatprep.subr.bf16.mxu0 0
  %468 = vmatpush1.bf16.msra.mxu0 0
  %469 = vmatprep.subr.bf16.mxu0 0
  %470 = vmatpush1.bf16.msra.mxu0 0
  %471 = vmatprep.subr.bf16.mxu0 0
  %472 = vmatpush1.bf16.msra.mxu0 0
  %473 = vmatprep.subr.bf16.mxu0 0
  %474 = vmatpush1.bf16.msra.mxu0 0
  %475 = vmatprep.subr.bf16.mxu0 0
  %476 = vmatpush1.bf16.msra.mxu0 0
  %477 = vmatprep.subr.bf16.mxu0 0
  %478 = vmatpush1.bf16.msra.mxu0 0
  %479 = vmatprep.subr.bf16.mxu0 0
  %480 = vmatpush1.bf16.msra.mxu0 0
  %481 = vmatprep.subr.bf16.mxu0 0
  %482 = vmatpush1.bf16.msra.mxu0 0
  %483 = vmatprep.subr.bf16.mxu0 0
  %484 = vmatpush1.bf16.msra.mxu0 0
  %485 = vmatprep.subr.bf16.mxu0 0
  %486 = vmatpush1.bf16.msra.mxu0 0
  %487 = vmatprep.subr.bf16.mxu0 0
  %488 = vmatpush1.bf16.msra.mxu0 0
  %489 = vmatprep.subr.bf16.mxu0 0
  %490 = vmatpush1.bf16.msra.mxu0 0
  %491 = vmatprep.mubr.bf16.mxu0 0
  %492 = vmatmul.mubr.bf16.gmra.mrb[0].mxu0 %v457
  %v493 = vpop.f32.mrb[0].mxu0
  %v494 = vadd.f32 0.0, %v493
  %v495 = vpop.f32.mrb[0].mxu0
  %v496 = vpop.f32.mrb[0].mxu0
  %v497 = vpop.f32.mrb[0].mxu0
  %498 = vdwg.mxu0
  %v499 = vadd.f32 %v436, %v494
  %v500 = vxor.u32 %v499, 2147483648
  %v501 = vmul.f32 %v500, 1.442695
  %v502 = vpow.pop %v501
  %v503 = vadd.f32 %v502, 1.0
  %v504 = vrcp.pop %v503
  %v505 = vmul.f32 1.0, %v504
  %v506 = vtanh.pop %v499
  %v507 = vld [vmem:[#allocation5] sm:$0xff]
  %509 = vrot.lane.b32.xlu0 %v507, 32
  %v510 = vpop.permute.xlu0 %509
  %v512 = vmul.f32 %v505, %v510
  %514 = vrot.lane.b32.xlu0 %v506, 64
  %v515 = vpop.permute.xlu0 %514
  %v517 = vmul.f32 %v505, %v515
  %519 = vrot.lane.b32.xlu0 %v517, 32
  %v520 = vpop.permute.xlu0 %519
  %v522 = vadd.f32 %v512, %v520
  %v523 = vtanh.pop %v522
  %525 = vrot.lane.b32.xlu0 %v523, 64
  %v526 = vpop.permute.xlu0 %525
  %v528 = vmul.f32 %v505, %v526
  %v529 = vsel %vm437, 1, 0
  %530 = vset.pattern.permute.xlu0 0
  %531 = vperm.xlu0 %530, %v529
  %v532 = vpop.permute.xlu0 %531
  %vm533 = vcmp.eq.s32.totalorder %v532, 1
  %v534 = vsel %vm533, %v522, %v510
  %536 = vrot.lane.b32.xlu0 %v534, 96
  %v537 = vpop.permute.xlu0 %536
  %539 = vst.msk [vmem:[#allocation5] sm:$0xff] %vm178, %v537
  %v540 = vld [vmem:[#allocation4] sm:$0xff]
  %542 = vrot.lane.b32.xlu0 %v540, 96
  %v543 = vpop.permute.xlu0 %542
  %v545 = vsel %vm533, %v528, %v543
  %547 = vrot.lane.b32.xlu0 %v545, 32
  %v548 = vpop.permute.xlu0 %547
  %550 = vst.msk [vmem:[#allocation4] sm:$0xff] %vm178, %v548
  %v551 = vsel %vm533, %v528, 0.0
  %553 = vrot.lane.b32.xlu0 %v551, 32
  %v554 = vpop.permute.xlu0 %553
  %s556 = scalar_lea.vmem %s6, 8
  %557 = vst.msk [vmem:[%s556] sm:$0xff] %vm178, %v554
  %s558 = smul.u32 6, 2
  %s559 = smul.addr %s558, 8
  %s560 = scalar_lea.vmem [#allocation2], %s559
  %v561 = vld [vmem:[%s560 + $0x8] sm:$0xff]
  %vm562 = vcmp.gt.s32.totalorder %v183, 6
  %v563 = vld [vmem:[#allocation6] sm:$0xff]
  %v564 = vpack.c.bf16 %v563, %v563
  %v565 = vld [vmem:[%s5] sm:$0xf]
  %v566 = vld [vmem:[%s5 + $0x4] sm:$0xf]
  %v567 = vld [vmem:[%s5 + $0x8] sm:$0xf]
  %v568 = vld [vmem:[%s5 + $0xc] sm:$0xf]
  %v573 = vunpack.c.l.b16 %v565
  %v574 = vunpack.c.l.b16 %v566
  %v575 = vunpack.c.l.b16 %v567
  %v576 = vunpack.c.l.b16 %v568
  %v577 = vpack.c.b16 %v574, %v573
  %v578 = vpack.c.b16 %v576, %v575
  %v582 = vsel %vm178, %v564, 0
  %584 = vmatprep.subr.bf16.mxu0 0
  %585 = vmatpush1.bf16.msra.mxu0 %v577
  %586 = vmatprep.subr.bf16.mxu0 0
  %587 = vmatpush1.bf16.msra.mxu0 %v578
  %588 = vmatprep.subr.bf16.mxu0 0
  %589 = vmatpush1.bf16.msra.mxu0 0
  %590 = vmatprep.subr.bf16.mxu0 0
  %591 = vmatpush1.bf16.msra.mxu0 0
  %592 = vmatprep.subr.bf16.mxu0 0
  %593 = vmatpush1.bf16.msra.mxu0 0
  %594 = vmatprep.subr.bf16.mxu0 0
  %595 = vmatpush1.bf16.msra.mxu0 0
  %596 = vmatprep.subr.bf16.mxu0 0
  %597 = vmatpush1.bf16.msra.mxu0 0
  %598 = vmatprep.subr.bf16.mxu0 0
  %599 = vmatpush1.bf16.msra.mxu0 0
  %600 = vmatprep.subr.bf16.mxu0 0
  %601 = vmatpush1.bf16.msra.mxu0 0
  %602 = vmatprep.subr.bf16.mxu0 0
  %603 = vmatpush1.bf16.msra.mxu0 0
  %604 = vmatprep.subr.bf16.mxu0 0
  %605 = vmatpush1.bf16.msra.mxu0 0
  %606 = vmatprep.subr.bf16.mxu0 0
  %607 = vmatpush1.bf16.msra.mxu0 0
  %608 = vmatprep.subr.bf16.mxu0 0
  %609 = vmatpush1.bf16.msra.mxu0 0
  %610 = vmatprep.subr.bf16.mxu0 0
  %611 = vmatpush1.bf16.msra.mxu0 0
  %612 = vmatprep.subr.bf16.mxu0 0
  %613 = vmatpush1.bf16.msra.mxu0 0
  %614 = vmatprep.subr.bf16.mxu0 0
  %615 = vmatpush1.bf16.msra.mxu0 0
  %616 = vmatprep.mubr.bf16.mxu0 0
  %617 = vmatmul.mubr.bf16.gmra.mrb[0].mxu0 %v582
  %v618 = vpop.f32.mrb[0].mxu0
  %v619 = vadd.f32 0.0, %v618
  %v620 = vpop.f32.mrb[0].mxu0
  %v621 = vpop.f32.mrb[0].mxu0
  %v622 = vpop.f32.mrb[0].mxu0
  %623 = vdwg.mxu0
  %v624 = vadd.f32 %v561, %v619
  %v625 = vxor.u32 %v624, 2147483648
  %v626 = vmul.f32 %v625, 1.442695
  %v627 = vpow.pop %v626
  %v628 = vadd.f32 %v627, 1.0
  %v629 = vrcp.pop %v628
  %v630 = vmul.f32 1.0, %v629
  %v631 = vtanh.pop %v624
  %v632 = vld [vmem:[#allocation7] sm:$0xff]
  %634 = vrot.lane.b32.xlu0 %v632, 32
  %v635 = vpop.permute.xlu0 %634
  %v637 = vmul.f32 %v630, %v635
  %639 = vrot.lane.b32.xlu0 %v631, 64
  %v640 = vpop.permute.xlu0 %639
  %v642 = vmul.f32 %v630, %v640
  %644 = vrot.lane.b32.xlu0 %v642, 32
  %v645 = vpop.permute.xlu0 %644
  %v647 = vadd.f32 %v637, %v645
  %v648 = vtanh.pop %v647
  %650 = vrot.lane.b32.xlu0 %v648, 64
  %v651 = vpop.permute.xlu0 %650
  %v653 = vmul.f32 %v630, %v651
  %v654 = vsel %vm562, 1, 0
  %655 = vset.pattern.permute.xlu0 0
  %656 = vperm.xlu0 %655, %v654
  %v657 = vpop.permute.xlu0 %656
  %vm658 = vcmp.eq.s32.totalorder %v657, 1
  %v659 = vsel %vm658, %v647, %v635
  %661 = vrot.lane.b32.xlu0 %v659, 96
  %v662 = vpop.permute.xlu0 %661
  %664 = vst.msk [vmem:[#allocation7] sm:$0xff] %vm178, %v662
  %v665 = vld [vmem:[#allocation6] sm:$0xff]
  %667 = vrot.lane.b32.xlu0 %v665, 96
  %v668 = vpop.permute.xlu0 %667
  %v670 = vsel %vm658, %v653, %v668
  %672 = vrot.lane.b32.xlu0 %v670, 32
  %v673 = vpop.permute.xlu0 %672
  %675 = vst.msk [vmem:[#allocation6] sm:$0xff] %vm178, %v673
  %v676 = vsel %vm658, %v653, 0.0
  %678 = vrot.lane.b32.xlu0 %v676, 32
  %v679 = vpop.permute.xlu0 %678
  %s681 = scalar_lea.vmem [#allocation3], 48
  %682 = vst.msk [vmem:[%s681] sm:$0xff] %vm178, %v679
  %s683 = smul.u32 2, 2
  %s684 = smul.addr %s683, 8
  %s685 = scalar_lea.vmem [#allocation2], %s684
  %v686 = vld [vmem:[%s685] sm:$0xff]
  %vm687 = vcmp.gt.s32.totalorder %v183, 2
  %v688 = vld [vmem:[#allocation4] sm:$0xff]
  %v689 = vpack.c.bf16 %v688, %v688
  %v690 = vld [vmem:[%s4] sm:$0xf]
  %v691 = vld [vmem:[%s4 + $0x4] sm:$0xf]
  %v692 = vld [vmem:[%s4 + $0x8] sm:$0xf]
  %v693 = vld [vmem:[%s4 + $0xc] sm:$0xf]
  %v698 = vunpack.c.l.b16 %v690
  %v699 = vunpack.c.l.b16 %v691
  %v700 = vunpack.c.l.b16 %v692
  %v701 = vunpack.c.l.b16 %v693
  %v702 = vpack.c.b16 %v699, %v698
  %v703 = vpack.c.b16 %v701, %v700
  %v707 = vsel %vm178, %v689, 0
  %709 = vmatprep.subr.bf16.mxu0 0
  %710 = vmatpush1.bf16.msra.mxu0 %v702
  %711 = vmatprep.subr.bf16.mxu0 0
  %712 = vmatpush1.bf16.msra.mxu0 %v703
  %713 = vmatprep.subr.bf16.mxu0 0
  %714 = vmatpush1.bf16.msra.mxu0 0
  %715 = vmatprep.subr.bf16.mxu0 0
  %716 = vmatpush1.bf16.msra.mxu0 0
  %717 = vmatprep.subr.bf16.mxu0 0
  %718 = vmatpush1.bf16.msra.mxu0 0
  %719 = vmatprep.subr.bf16.mxu0 0
  %720 = vmatpush1.bf16.msra.mxu0 0
  %721 = vmatprep.subr.bf16.mxu0 0
  %722 = vmatpush1.bf16.msra.mxu0 0
  %723 = vmatprep.subr.bf16.mxu0 0
  %724 = vmatpush1.bf16.msra.mxu0 0
  %725 = vmatprep.subr.bf16.mxu0 0
  %726 = vmatpush1.bf16.msra.mxu0 0
  %727 = vmatprep.subr.bf16.mxu0 0
  %728 = vmatpush1.bf16.msra.mxu0 0
  %729 = vmatprep.subr.bf16.mxu0 0
  %730 = vmatpush1.bf16.msra.mxu0 0
  %731 = vmatprep.subr.bf16.mxu0 0
  %732 = vmatpush1.bf16.msra.mxu0 0
  %733 = vmatprep.subr.bf16.mxu0 0
  %734 = vmatpush1.bf16.msra.mxu0 0
  %735 = vmatprep.subr.bf16.mxu0 0
  %736 = vmatpush1.bf16.msra.mxu0 0
  %737 = vmatprep.subr.bf16.mxu0 0
  %738 = vmatpush1.bf16.msra.mxu0 0
  %739 = vmatprep.subr.bf16.mxu0 0
  %740 = vmatpush1.bf16.msra.mxu0 0
  %741 = vmatprep.mubr.bf16.mxu0 0
  %742 = vmatmul.mubr.bf16.gmra.mrb[0].mxu0 %v707
  %v743 = vpop.f32.mrb[0].mxu0
  %v744 = vadd.f32 0.0, %v743
  %v745 = vpop.f32.mrb[0].mxu0
  %v746 = vpop.f32.mrb[0].mxu0
  %v747 = vpop.f32.mrb[0].mxu0
  %748 = vdwg.mxu0
  %v749 = vadd.f32 %v686, %v744
  %v750 = vxor.u32 %v749, 2147483648
  %v751 = vmul.f32 %v750, 1.442695
  %v752 = vpow.pop %v751
  %v753 = vadd.f32 %v752, 1.0
  %v754 = vrcp.pop %v753
  %v755 = vmul.f32 1.0, %v754
  %v756 = vtanh.pop %v749
  %v757 = vld [vmem:[#allocation5] sm:$0xff]
  %759 = vrot.lane.b32.xlu0 %v757, 32
  %v760 = vpop.permute.xlu0 %759
  %v762 = vmul.f32 %v755, %v760
  %764 = vrot.lane.b32.xlu0 %v756, 64
  %v765 = vpop.permute.xlu0 %764
  %v767 = vmul.f32 %v755, %v765
  %769 = vrot.lane.b32.xlu0 %v767, 32
  %v770 = vpop.permute.xlu0 %769
  %v772 = vadd.f32 %v762, %v770
  %v773 = vtanh.pop %v772
  %775 = vrot.lane.b32.xlu0 %v773, 64
  %v776 = vpop.permute.xlu0 %775
  %v778 = vmul.f32 %v755, %v776
  %v779 = vsel %vm687, 1, 0
  %780 = vset.pattern.permute.xlu0 0
  %781 = vperm.xlu0 %780, %v779
  %v782 = vpop.permute.xlu0 %781
  %vm783 = vcmp.eq.s32.totalorder %v782, 1
  %v784 = vsel %vm783, %v772, %v760
  %786 = vrot.lane.b32.xlu0 %v784, 96
  %v787 = vpop.permute.xlu0 %786
  %789 = vst.msk [vmem:[#allocation5] sm:$0xff] %vm178, %v787
  %v790 = vld [vmem:[#allocation4] sm:$0xff]
  %792 = vrot.lane.b32.xlu0 %v790, 96
  %v793 = vpop.permute.xlu0 %792
  %v795 = vsel %vm783, %v778, %v793
  %797 = vrot.lane.b32.xlu0 %v795, 32
  %v798 = vpop.permute.xlu0 %797
  %800 = vst.msk [vmem:[#allocation4] sm:$0xff] %vm178, %v798
  %v801 = vsel %vm783, %v778, 0.0
  %803 = vrot.lane.b32.xlu0 %v801, 32
  %v804 = vpop.permute.xlu0 %803
  %s806 = scalar_lea.vmem %s6, 16
  %807 = vst.msk [vmem:[%s806] sm:$0xff] %vm178, %v804
  %s808 = smul.u32 5, 2
  %s809 = smul.addr %s808, 8
  %s810 = scalar_lea.vmem [#allocation2], %s809
  %v811 = vld [vmem:[%s810 + $0x8] sm:$0xff]
  %vm812 = vcmp.gt.s32.totalorder %v183, 5
  %v813 = vld [vmem:[#allocation6] sm:$0xff]
  %v814 = vpack.c.bf16 %v813, %v813
  %v815 = vld [vmem:[%s5] sm:$0xf]
  %v816 = vld [vmem:[%s5 + $0x4] sm:$0xf]
  %v817 = vld [vmem:[%s5 + $0x8] sm:$0xf]
  %v818 = vld [vmem:[%s5 + $0xc] sm:$0xf]
  %v823 = vunpack.c.l.b16 %v815
  %v824 = vunpack.c.l.b16 %v816
  %v825 = vunpack.c.l.b16 %v817
  %v826 = vunpack.c.l.b16 %v818
  %v827 = vpack.c.b16 %v824, %v823
  %v828 = vpack.c.b16 %v826, %v825
  %v832 = vsel %vm178, %v814, 0
  %834 = vmatprep.subr.bf16.mxu0 0
  %835 = vmatpush1.bf16.msra.mxu0 %v827
  %836 = vmatprep.subr.bf16.mxu0 0
  %837 = vmatpush1.bf16.msra.mxu0 %v828
  %838 = vmatprep.subr.bf16.mxu0 0
  %839 = vmatpush1.bf16.msra.mxu0 0
  %840 = vmatprep.subr.bf16.mxu0 0
  %841 = vmatpush1.bf16.msra.mxu0 0
  %842 = vmatprep.subr.bf16.mxu0 0
  %843 = vmatpush1.bf16.msra.mxu0 0
  %844 = vmatprep.subr.bf16.mxu0 0
  %845 = vmatpush1.bf16.msra.mxu0 0
  %846 = vmatprep.subr.bf16.mxu0 0
  %847 = vmatpush1.bf16.msra.mxu0 0
  %848 = vmatprep.subr.bf16.mxu0 0
  %849 = vmatpush1.bf16.msra.mxu0 0
  %850 = vmatprep.subr.bf16.mxu0 0
  %851 = vmatpush1.bf16.msra.mxu0 0
  %852 = vmatprep.subr.bf16.mxu0 0
  %853 = vmatpush1.bf16.msra.mxu0 0
  %854 = vmatprep.subr.bf16.mxu0 0
  %855 = vmatpush1.bf16.msra.mxu0 0
  %856 = vmatprep.subr.bf16.mxu0 0
  %857 = vmatpush1.bf16.msra.mxu0 0
  %858 = vmatprep.subr.bf16.mxu0 0
  %859 = vmatpush1.bf16.msra.mxu0 0
  %860 = vmatprep.subr.bf16.mxu0 0
  %861 = vmatpush1.bf16.msra.mxu0 0
  %862 = vmatprep.subr.bf16.mxu0 0
  %863 = vmatpush1.bf16.msra.mxu0 0
  %864 = vmatprep.subr.bf16.mxu0 0
  %865 = vmatpush1.bf16.msra.mxu0 0
  %866 = vmatprep.mubr.bf16.mxu0 0
  %867 = vmatmul.mubr.bf16.gmra.mrb[0].mxu0 %v832
  %v868 = vpop.f32.mrb[0].mxu0
  %v869 = vadd.f32 0.0, %v868
  %v870 = vpop.f32.mrb[0].mxu0
  %v871 = vpop.f32.mrb[0].mxu0
  %v872 = vpop.f32.mrb[0].mxu0
  %873 = vdwg.mxu0
  %v874 = vadd.f32 %v811, %v869
  %v875 = vxor.u32 %v874, 2147483648
  %v876 = vmul.f32 %v875, 1.442695
  %v877 = vpow.pop %v876
  %v878 = vadd.f32 %v877, 1.0
  %v879 = vrcp.pop %v878
  %v880 = vmul.f32 1.0, %v879
  %v881 = vtanh.pop %v874
  %v882 = vld [vmem:[#allocation7] sm:$0xff]
  %884 = vrot.lane.b32.xlu0 %v882, 32
  %v885 = vpop.permute.xlu0 %884
  %v887 = vmul.f32 %v880, %v885
  %889 = vrot.lane.b32.xlu0 %v881, 64
  %v890 = vpop.permute.xlu0 %889
  %v892 = vmul.f32 %v880, %v890
  %894 = vrot.lane.b32.xlu0 %v892, 32
  %v895 = vpop.permute.xlu0 %894
  %v897 = vadd.f32 %v887, %v895
  %v898 = vtanh.pop %v897
  %900 = vrot.lane.b32.xlu0 %v898, 64
  %v901 = vpop.permute.xlu0 %900
  %v903 = vmul.f32 %v880, %v901
  %v904 = vsel %vm812, 1, 0
  %905 = vset.pattern.permute.xlu0 0
  %906 = vperm.xlu0 %905, %v904
  %v907 = vpop.permute.xlu0 %906
  %vm908 = vcmp.eq.s32.totalorder %v907, 1
  %v909 = vsel %vm908, %v897, %v885
  %911 = vrot.lane.b32.xlu0 %v909, 96
  %v912 = vpop.permute.xlu0 %911
  %914 = vst.msk [vmem:[#allocation7] sm:$0xff] %vm178, %v912
  %v915 = vld [vmem:[#allocation6] sm:$0xff]
  %917 = vrot.lane.b32.xlu0 %v915, 96
  %v918 = vpop.permute.xlu0 %917
  %v920 = vsel %vm908, %v903, %v918
  %922 = vrot.lane.b32.xlu0 %v920, 32
  %v923 = vpop.permute.xlu0 %922
  %925 = vst.msk [vmem:[#allocation6] sm:$0xff] %vm178, %v923
  %v926 = vsel %vm908, %v903, 0.0
  %928 = vrot.lane.b32.xlu0 %v926, 32
  %v929 = vpop.permute.xlu0 %928
  %s931 = scalar_lea.vmem [#allocation3], 40
  %932 = vst.msk [vmem:[%s931] sm:$0xff] %vm178, %v929
  %s933 = smul.u32 3, 2
  %s934 = smul.addr %s933, 8
  %s935 = scalar_lea.vmem [#allocation2], %s934
  %v936 = vld [vmem:[%s935] sm:$0xff]
  %vm937 = vcmp.gt.s32.totalorder %v183, 3
  %v938 = vld [vmem:[#allocation4] sm:$0xff]
  %v939 = vpack.c.bf16 %v938, %v938
  %v940 = vld [vmem:[%s4] sm:$0xf]
  %v941 = vld [vmem:[%s4 + $0x4] sm:$0xf]
  %v942 = vld [vmem:[%s4 + $0x8] sm:$0xf]
  %v943 = vld [vmem:[%s4 + $0xc] sm:$0xf]
  %v948 = vunpack.c.l.b16 %v940
  %v949 = vunpack.c.l.b16 %v941
  %v950 = vunpack.c.l.b16 %v942
  %v951 = vunpack.c.l.b16 %v943
  %v952 = vpack.c.b16 %v949, %v948
  %v953 = vpack.c.b16 %v951, %v950
  %v957 = vsel %vm178, %v939, 0
  %959 = vmatprep.subr.bf16.mxu0 0
  %960 = vmatpush1.bf16.msra.mxu0 %v952
  %961 = vmatprep.subr.bf16.mxu0 0
  %962 = vmatpush1.bf16.msra.mxu0 %v953
  %963 = vmatprep.subr.bf16.mxu0 0
  %964 = vmatpush1.bf16.msra.mxu0 0
  %965 = vmatprep.subr.bf16.mxu0 0
  %966 = vmatpush1.bf16.msra.mxu0 0
  %967 = vmatprep.subr.bf16.mxu0 0
  %968 = vmatpush1.bf16.msra.mxu0 0
  %969 = vmatprep.subr.bf16.mxu0 0
  %970 = vmatpush1.bf16.msra.mxu0 0
  %971 = vmatprep.subr.bf16.mxu0 0
  %972 = vmatpush1.bf16.msra.mxu0 0
  %973 = vmatprep.subr.bf16.mxu0 0
  %974 = vmatpush1.bf16.msra.mxu0 0
  %975 = vmatprep.subr.bf16.mxu0 0
  %976 = vmatpush1.bf16.msra.mxu0 0
  %977 = vmatprep.subr.bf16.mxu0 0
  %978 = vmatpush1.bf16.msra.mxu0 0
  %979 = vmatprep.subr.bf16.mxu0 0
  %980 = vmatpush1.bf16.msra.mxu0 0
  %981 = vmatprep.subr.bf16.mxu0 0
  %982 = vmatpush1.bf16.msra.mxu0 0
  %983 = vmatprep.subr.bf16.mxu0 0
  %984 = vmatpush1.bf16.msra.mxu0 0
  %985 = vmatprep.subr.bf16.mxu0 0
  %986 = vmatpush1.bf16.msra.mxu0 0
  %987 = vmatprep.subr.bf16.mxu0 0
  %988 = vmatpush1.bf16.msra.mxu0 0
  %989 = vmatprep.subr.bf16.mxu0 0
  %990 = vmatpush1.bf16.msra.mxu0 0
  %991 = vmatprep.mubr.bf16.mxu0 0
  %992 = vmatmul.mubr.bf16.gmra.mrb[0].mxu0 %v957
  %v993 = vpop.f32.mrb[0].mxu0
  %v994 = vadd.f32 0.0, %v993
  %v995 = vpop.f32.mrb[0].mxu0
  %v996 = vpop.f32.mrb[0].mxu0
  %v997 = vpop.f32.mrb[0].mxu0
  %998 = vdwg.mxu0
  %v999 = vadd.f32 %v936, %v994
  %v1000 = vxor.u32 %v999, 2147483648
  %v1001 = vmul.f32 %v1000, 1.442695
  %v1002 = vpow.pop %v1001
  %v1003 = vadd.f32 %v1002, 1.0
  %v1004 = vrcp.pop %v1003
  %v1005 = vmul.f32 1.0, %v1004
  %v1006 = vtanh.pop %v999
  %v1007 = vld [vmem:[#allocation5] sm:$0xff]
  %1009 = vrot.lane.b32.xlu0 %v1007, 32
  %v1010 = vpop.permute.xlu0 %1009
  %v1012 = vmul.f32 %v1005, %v1010
  %1014 = vrot.lane.b32.xlu0 %v1006, 64
  %v1015 = vpop.permute.xlu0 %1014
  %v1017 = vmul.f32 %v1005, %v1015
  %1019 = vrot.lane.b32.xlu0 %v1017, 32
  %v1020 = vpop.permute.xlu0 %1019
  %v1022 = vadd.f32 %v1012, %v1020
  %v1023 = vtanh.pop %v1022
  %1025 = vrot.lane.b32.xlu0 %v1023, 64
  %v1026 = vpop.permute.xlu0 %1025
  %v1028 = vmul.f32 %v1005, %v1026
  %v1029 = vsel %vm937, 1, 0
  %1030 = vset.pattern.permute.xlu0 0
  %1031 = vperm.xlu0 %1030, %v1029
  %v1032 = vpop.permute.xlu0 %1031
  %vm1033 = vcmp.eq.s32.totalorder %v1032, 1
  %v1034 = vsel %vm1033, %v1022, %v1010
  %1036 = vrot.lane.b32.xlu0 %v1034, 96
  %v1037 = vpop.permute.xlu0 %1036
  %1039 = vst.msk [vmem:[#allocation5] sm:$0xff] %vm178, %v1037
  %v1040 = vld [vmem:[#allocation4] sm:$0xff]
  %1042 = vrot.lane.b32.xlu0 %v1040, 96
  %v1043 = vpop.permute.xlu0 %1042
  %v1045 = vsel %vm1033, %v1028, %v1043
  %1047 = vrot.lane.b32.xlu0 %v1045, 32
  %v1048 = vpop.permute.xlu0 %1047
  %1050 = vst.msk [vmem:[#allocation4] sm:$0xff] %vm178, %v1048
  %v1051 = vsel %vm1033, %v1028, 0.0
  %1053 = vrot.lane.b32.xlu0 %v1051, 32
  %v1054 = vpop.permute.xlu0 %1053
  %s1056 = scalar_lea.vmem %s6, 24
  %1057 = vst.msk [vmem:[%s1056] sm:$0xff] %vm178, %v1054
  %s1058 = smul.u32 4, 2
  %s1059 = smul.addr %s1058, 8
  %s1060 = scalar_lea.vmem [#allocation2], %s1059
  %v1061 = vld [vmem:[%s1060 + $0x8] sm:$0xff]
  %vm1062 = vcmp.gt.s32.totalorder %v183, 4
  %v1063 = vld [vmem:[#allocation6] sm:$0xff]
  %v1064 = vpack.c.bf16 %v1063, %v1063
  %v1065 = vld [vmem:[%s5] sm:$0xf]
  %v1066 = vld [vmem:[%s5 + $0x4] sm:$0xf]
  %v1067 = vld [vmem:[%s5 + $0x8] sm:$0xf]
  %v1068 = vld [vmem:[%s5 + $0xc] sm:$0xf]
  %v1073 = vunpack.c.l.b16 %v1065
  %v1074 = vunpack.c.l.b16 %v1066
  %v1075 = vunpack.c.l.b16 %v1067
  %v1076 = vunpack.c.l.b16 %v1068
  %v1077 = vpack.c.b16 %v1074, %v1073
  %v1078 = vpack.c.b16 %v1076, %v1075
  %v1082 = vsel %vm178, %v1064, 0
  %1084 = vmatprep.subr.bf16.mxu0 0
  %1085 = vmatpush1.bf16.msra.mxu0 %v1077
  %1086 = vmatprep.subr.bf16.mxu0 0
  %1087 = vmatpush1.bf16.msra.mxu0 %v1078
  %1088 = vmatprep.subr.bf16.mxu0 0
  %1089 = vmatpush1.bf16.msra.mxu0 0
  %1090 = vmatprep.subr.bf16.mxu0 0
  %1091 = vmatpush1.bf16.msra.mxu0 0
  %1092 = vmatprep.subr.bf16.mxu0 0
  %1093 = vmatpush1.bf16.msra.mxu0 0
  %1094 = vmatprep.subr.bf16.mxu0 0
  %1095 = vmatpush1.bf16.msra.mxu0 0
  %1096 = vmatprep.subr.bf16.mxu0 0
  %1097 = vmatpush1.bf16.msra.mxu0 0
  %1098 = vmatprep.subr.bf16.mxu0 0
  %1099 = vmatpush1.bf16.msra.mxu0 0
  %1100 = vmatprep.subr.bf16.mxu0 0
  %1101 = vmatpush1.bf16.msra.mxu0 0
  %1102 = vmatprep.subr.bf16.mxu0 0
  %1103 = vmatpush1.bf16.msra.mxu0 0
  %1104 = vmatprep.subr.bf16.mxu0 0
  %1105 = vmatpush1.bf16.msra.mxu0 0
  %1106 = vmatprep.subr.bf16.mxu0 0
  %1107 = vmatpush1.bf16.msra.mxu0 0
  %1108 = vmatprep.subr.bf16.mxu0 0
  %1109 = vmatpush1.bf16.msra.mxu0 0
  %1110 = vmatprep.subr.bf16.mxu0 0
  %1111 = vmatpush1.bf16.msra.mxu0 0
  %1112 = vmatprep.subr.bf16.mxu0 0
  %1113 = vmatpush1.bf16.msra.mxu0 0
  %1114 = vmatprep.subr.bf16.mxu0 0
  %1115 = vmatpush1.bf16.msra.mxu0 0
  %1116 = vmatprep.mubr.bf16.mxu0 0
  %1117 = vmatmul.mubr.bf16.gmra.mrb[0].mxu0 %v1082
  %v1118 = vpop.f32.mrb[0].mxu0
  %v1119 = vadd.f32 0.0, %v1118
  %v1120 = vpop.f32.mrb[0].mxu0
  %v1121 = vpop.f32.mrb[0].mxu0
  %v1122 = vpop.f32.mrb[0].mxu0
  %1123 = vdwg.mxu0
  %v1124 = vadd.f32 %v1061, %v1119
  %v1125 = vxor.u32 %v1124, 2147483648
  %v1126 = vmul.f32 %v1125, 1.442695
  %v1127 = vpow.pop %v1126
  %v1128 = vadd.f32 %v1127, 1.0
  %v1129 = vrcp.pop %v1128
  %v1130 = vmul.f32 1.0, %v1129
  %v1131 = vtanh.pop %v1124
  %v1132 = vld [vmem:[#allocation7] sm:$0xff]
  %1134 = vrot.lane.b32.xlu0 %v1132, 32
  %v1135 = vpop.permute.xlu0 %1134
  %v1137 = vmul.f32 %v1130, %v1135
  %1139 = vrot.lane.b32.xlu0 %v1131, 64
  %v1140 = vpop.permute.xlu0 %1139
  %v1142 = vmul.f32 %v1130, %v1140
  %1144 = vrot.lane.b32.xlu0 %v1142, 32
  %v1145 = vpop.permute.xlu0 %1144
  %v1147 = vadd.f32 %v1137, %v1145
  %v1148 = vtanh.pop %v1147
  %1150 = vrot.lane.b32.xlu0 %v1148, 64
  %v1151 = vpop.permute.xlu0 %1150
  %v1153 = vmul.f32 %v1130, %v1151
  %v1154 = vsel %vm1062, 1, 0
  %1155 = vset.pattern.permute.xlu0 0
  %1156 = vperm.xlu0 %1155, %v1154
  %v1157 = vpop.permute.xlu0 %1156
  %vm1158 = vcmp.eq.s32.totalorder %v1157, 1
  %v1159 = vsel %vm1158, %v1147, %v1135
  %1161 = vrot.lane.b32.xlu0 %v1159, 96
  %v1162 = vpop.permute.xlu0 %1161
  %1164 = vst.msk [vmem:[#allocation7] sm:$0xff] %vm178, %v1162
  %v1165 = vld [vmem:[#allocation6] sm:$0xff]
  %1167 = vrot.lane.b32.xlu0 %v1165, 96
  %v1168 = vpop.permute.xlu0 %1167
  %v1170 = vsel %vm1158, %v1153, %v1168
  %1172 = vrot.lane.b32.xlu0 %v1170, 32
  %v1173 = vpop.permute.xlu0 %1172
  %1175 = vst.msk [vmem:[#allocation6] sm:$0xff] %vm178, %v1173
  %v1176 = vsel %vm1158, %v1153, 0.0
  %1178 = vrot.lane.b32.xlu0 %v1176, 32
  %v1179 = vpop.permute.xlu0 %1178
  %s1181 = scalar_lea.vmem [#allocation3], 32
  %1182 = vst.msk [vmem:[%s1181] sm:$0xff] %vm178, %v1179
  %v1183 = vld [vmem:[%s1060] sm:$0xff]
  %v1184 = vld [vmem:[#allocation4] sm:$0xff]
  %v1185 = vpack.c.bf16 %v1184, %v1184
  %v1186 = vld [vmem:[%s4] sm:$0xf]
  %v1187 = vld [vmem:[%s4 + $0x4] sm:$0xf]
  %v1188 = vld [vmem:[%s4 + $0x8] sm:$0xf]
  %v1189 = vld [vmem:[%s4 + $0xc] sm:$0xf]
  %v1194 = vunpack.c.l.b16 %v1186
  %v1195 = vunpack.c.l.b16 %v1187
  %v1196 = vunpack.c.l.b16 %v1188
  %v1197 = vunpack.c.l.b16 %v1189
  %v1198 = vpack.c.b16 %v1195, %v1194
  %v1199 = vpack.c.b16 %v1197, %v1196
  %v1203 = vsel %vm178, %v1185, 0
  %1205 = vmatprep.subr.bf16.mxu0 0
  %1206 = vmatpush1.bf16.msra.mxu0 %v1198
  %1207 = vmatprep.subr.bf16.mxu0 0
  %1208 = vmatpush1.bf16.msra.mxu0 %v1199
  %1209 = vmatprep.subr.bf16.mxu0 0
  %1210 = vmatpush1.bf16.msra.mxu0 0
  %1211 = vmatprep.subr.bf16.mxu0 0
  %1212 = vmatpush1.bf16.msra.mxu0 0
  %1213 = vmatprep.subr.bf16.mxu0 0
  %1214 = vmatpush1.bf16.msra.mxu0 0
  %1215 = vmatprep.subr.bf16.mxu0 0
  %1216 = vmatpush1.bf16.msra.mxu0 0
  %1217 = vmatprep.subr.bf16.mxu0 0
  %1218 = vmatpush1.bf16.msra.mxu0 0
  %1219 = vmatprep.subr.bf16.mxu0 0
  %1220 = vmatpush1.bf16.msra.mxu0 0
  %1221 = vmatprep.subr.bf16.mxu0 0
  %1222 = vmatpush1.bf16.msra.mxu0 0
  %1223 = vmatprep.subr.bf16.mxu0 0
  %1224 = vmatpush1.bf16.msra.mxu0 0
  %1225 = vmatprep.subr.bf16.mxu0 0
  %1226 = vmatpush1.bf16.msra.mxu0 0
  %1227 = vmatprep.subr.bf16.mxu0 0
  %1228 = vmatpush1.bf16.msra.mxu0 0
  %1229 = vmatprep.subr.bf16.mxu0 0
  %1230 = vmatpush1.bf16.msra.mxu0 0
  %1231 = vmatprep.subr.bf16.mxu0 0
  %1232 = vmatpush1.bf16.msra.mxu0 0
  %1233 = vmatprep.subr.bf16.mxu0 0
  %1234 = vmatpush1.bf16.msra.mxu0 0
  %1235 = vmatprep.subr.bf16.mxu0 0
  %1236 = vmatpush1.bf16.msra.mxu0 0
  %1237 = vmatprep.mubr.bf16.mxu0 0
  %1238 = vmatmul.mubr.bf16.gmra.mrb[0].mxu0 %v1203
  %v1239 = vpop.f32.mrb[0].mxu0
  %v1240 = vadd.f32 0.0, %v1239
  %v1241 = vpop.f32.mrb[0].mxu0
  %v1242 = vpop.f32.mrb[0].mxu0
  %v1243 = vpop.f32.mrb[0].mxu0
  %1244 = vdwg.mxu0
  %v1245 = vadd.f32 %v1183, %v1240
  %v1246 = vxor.u32 %v1245, 2147483648
  %v1247 = vmul.f32 %v1246, 1.442695
  %v1248 = vpow.pop %v1247
  %v1249 = vadd.f32 %v1248, 1.0
  %v1250 = vrcp.pop %v1249
  %v1251 = vmul.f32 1.0, %v1250
  %v1252 = vtanh.pop %v1245
  %v1253 = vld [vmem:[#allocation5] sm:$0xff]
  %1255 = vrot.lane.b32.xlu0 %v1253, 32
  %v1256 = vpop.permute.xlu0 %1255
  %v1258 = vmul.f32 %v1251, %v1256
  %1260 = vrot.lane.b32.xlu0 %v1252, 64
  %v1261 = vpop.permute.xlu0 %1260
  %v1263 = vmul.f32 %v1251, %v1261
  %1265 = vrot.lane.b32.xlu0 %v1263, 32
  %v1266 = vpop.permute.xlu0 %1265
  %v1268 = vadd.f32 %v1258, %v1266
  %v1269 = vtanh.pop %v1268
  %1271 = vrot.lane.b32.xlu0 %v1269, 64
  %v1272 = vpop.permute.xlu0 %1271
  %v1274 = vmul.f32 %v1251, %v1272
  %v1275 = vsel %vm1158, %v1268, %v1256
  %1277 = vrot.lane.b32.xlu0 %v1275, 96
  %v1278 = vpop.permute.xlu0 %1277
  %1280 = vst.msk [vmem:[#allocation5] sm:$0xff] %vm178, %v1278
  %v1281 = vld [vmem:[#allocation4] sm:$0xff]
  %1283 = vrot.lane.b32.xlu0 %v1281, 96
  %v1284 = vpop.permute.xlu0 %1283
  %v1286 = vsel %vm1158, %v1274, %v1284
  %1288 = vrot.lane.b32.xlu0 %v1286, 32
  %v1289 = vpop.permute.xlu0 %1288
  %1291 = vst.msk [vmem:[#allocation4] sm:$0xff] %vm178, %v1289
  %v1292 = vsel %vm1158, %v1274, 0.0
  %1294 = vrot.lane.b32.xlu0 %v1292, 32
  %v1295 = vpop.permute.xlu0 %1294
  %s1297 = scalar_lea.vmem %s6, 32
  %1298 = vst.msk [vmem:[%s1297] sm:$0xff] %vm178, %v1295
  %v1299 = vld [vmem:[%s935 + $0x8] sm:$0xff]
  %v1300 = vld [vmem:[#allocation6] sm:$0xff]
  %v1301 = vpack.c.bf16 %v1300, %v1300
  %v1302 = vld [vmem:[%s5] sm:$0xf]
  %v1303 = vld [vmem:[%s5 + $0x4] sm:$0xf]
  %v1304 = vld [vmem:[%s5 + $0x8] sm:$0xf]
  %v1305 = vld [vmem:[%s5 + $0xc] sm:$0xf]
  %v1310 = vunpack.c.l.b16 %v1302
  %v1311 = vunpack.c.l.b16 %v1303
  %v1312 = vunpack.c.l.b16 %v1304
  %v1313 = vunpack.c.l.b16 %v1305
  %v1314 = vpack.c.b16 %v1311, %v1310
  %v1315 = vpack.c.b16 %v1313, %v1312
  %v1319 = vsel %vm178, %v1301, 0
  %1321 = vmatprep.subr.bf16.mxu0 0
  %1322 = vmatpush1.bf16.msra.mxu0 %v1314
  %1323 = vmatprep.subr.bf16.mxu0 0
  %1324 = vmatpush1.bf16.msra.mxu0 %v1315
  %1325 = vmatprep.subr.bf16.mxu0 0
  %1326 = vmatpush1.bf16.msra.mxu0 0
  %1327 = vmatprep.subr.bf16.mxu0 0
  %1328 = vmatpush1.bf16.msra.mxu0 0
  %1329 = vmatprep.subr.bf16.mxu0 0
  %1330 = vmatpush1.bf16.msra.mxu0 0
  %1331 = vmatprep.subr.bf16.mxu0 0
  %1332 = vmatpush1.bf16.msra.mxu0 0
  %1333 = vmatprep.subr.bf16.mxu0 0
  %1334 = vmatpush1.bf16.msra.mxu0 0
  %1335 = vmatprep.subr.bf16.mxu0 0
  %1336 = vmatpush1.bf16.msra.mxu0 0
  %1337 = vmatprep.subr.bf16.mxu0 0
  %1338 = vmatpush1.bf16.msra.mxu0 0
  %1339 = vmatprep.subr.bf16.mxu0 0
  %1340 = vmatpush1.bf16.msra.mxu0 0
  %1341 = vmatprep.subr.bf16.mxu0 0
  %1342 = vmatpush1.bf16.msra.mxu0 0
  %1343 = vmatprep.subr.bf16.mxu0 0
  %1344 = vmatpush1.bf16.msra.mxu0 0
  %1345 = vmatprep.subr.bf16.mxu0 0
  %1346 = vmatpush1.bf16.msra.mxu0 0
  %1347 = vmatprep.subr.bf16.mxu0 0
  %1348 = vmatpush1.bf16.msra.mxu0 0
  %1349 = vmatprep.subr.bf16.mxu0 0
  %1350 = vmatpush1.bf16.msra.mxu0 0
  %1351 = vmatprep.subr.bf16.mxu0 0
  %1352 = vmatpush1.bf16.msra.mxu0 0
  %1353 = vmatprep.mubr.bf16.mxu0 0
  %1354 = vmatmul.mubr.bf16.gmra.mrb[0].mxu0 %v1319
  %v1355 = vpop.f32.mrb[0].mxu0
  %v1356 = vadd.f32 0.0, %v1355
  %v1357 = vpop.f32.mrb[0].mxu0
  %v1358 = vpop.f32.mrb[0].mxu0
  %v1359 = vpop.f32.mrb[0].mxu0
  %1360 = vdwg.mxu0
  %v1361 = vadd.f32 %v1299, %v1356
  %v1362 = vxor.u32 %v1361, 2147483648
  %v1363 = vmul.f32 %v1362, 1.442695
  %v1364 = vpow.pop %v1363
  %v1365 = vadd.f32 %v1364, 1.0
  %v1366 = vrcp.pop %v1365
  %v1367 = vmul.f32 1.0, %v1366
  %v1368 = vtanh.pop %v1361
  %v1369 = vld [vmem:[#allocation7] sm:$0xff]
  %1371 = vrot.lane.b32.xlu0 %v1369, 32
  %v1372 = vpop.permute.xlu0 %1371
  %v1374 = vmul.f32 %v1367, %v1372
  %1376 = vrot.lane.b32.xlu0 %v1368, 64
  %v1377 = vpop.permute.xlu0 %1376
  %v1379 = vmul.f32 %v1367, %v1377
  %1381 = vrot.lane.b32.xlu0 %v1379, 32
  %v1382 = vpop.permute.xlu0 %1381
  %v1384 = vadd.f32 %v1374, %v1382
  %v1385 = vtanh.pop %v1384
  %1387 = vrot.lane.b32.xlu0 %v1385, 64
  %v1388 = vpop.permute.xlu0 %1387
  %v1390 = vmul.f32 %v1367, %v1388
  %v1391 = vsel %vm1033, %v1384, %v1372
  %1393 = vrot.lane.b32.xlu0 %v1391, 96
  %v1394 = vpop.permute.xlu0 %1393
  %1396 = vst.msk [vmem:[#allocation7] sm:$0xff] %vm178, %v1394
  %v1397 = vld [vmem:[#allocation6] sm:$0xff]
  %1399 = vrot.lane.b32.xlu0 %v1397, 96
  %v1400 = vpop.permute.xlu0 %1399
  %v1402 = vsel %vm1033, %v1390, %v1400
  %1404 = vrot.lane.b32.xlu0 %v1402, 32
  %v1405 = vpop.permute.xlu0 %1404
  %1407 = vst.msk [vmem:[#allocation6] sm:$0xff] %vm178, %v1405
  %v1408 = vsel %vm1033, %v1390, 0.0
  %1410 = vrot.lane.b32.xlu0 %v1408, 32
  %v1411 = vpop.permute.xlu0 %1410
  %s1413 = scalar_lea.vmem [#allocation3], 24
  %1414 = vst.msk [vmem:[%s1413] sm:$0xff] %vm178, %v1411
  %v1415 = vld [vmem:[%s810] sm:$0xff]
  %v1416 = vld [vmem:[#allocation4] sm:$0xff]
  %v1417 = vpack.c.bf16 %v1416, %v1416
  %v1418 = vld [vmem:[%s4] sm:$0xf]
  %v1419 = vld [vmem:[%s4 + $0x4] sm:$0xf]
  %v1420 = vld [vmem:[%s4 + $0x8] sm:$0xf]
  %v1421 = vld [vmem:[%s4 + $0xc] sm:$0xf]
  %v1426 = vunpack.c.l.b16 %v1418
  %v1427 = vunpack.c.l.b16 %v1419
  %v1428 = vunpack.c.l.b16 %v1420
  %v1429 = vunpack.c.l.b16 %v1421
  %v1430 = vpack.c.b16 %v1427, %v1426
  %v1431 = vpack.c.b16 %v1429, %v1428
  %v1435 = vsel %vm178, %v1417, 0
  %1437 = vmatprep.subr.bf16.mxu0 0
  %1438 = vmatpush1.bf16.msra.mxu0 %v1430
  %1439 = vmatprep.subr.bf16.mxu0 0
  %1440 = vmatpush1.bf16.msra.mxu0 %v1431
  %1441 = vmatprep.subr.bf16.mxu0 0
  %1442 = vmatpush1.bf16.msra.mxu0 0
  %1443 = vmatprep.subr.bf16.mxu0 0
  %1444 = vmatpush1.bf16.msra.mxu0 0
  %1445 = vmatprep.subr.bf16.mxu0 0
  %1446 = vmatpush1.bf16.msra.mxu0 0
  %1447 = vmatprep.subr.bf16.mxu0 0
  %1448 = vmatpush1.bf16.msra.mxu0 0
  %1449 = vmatprep.subr.bf16.mxu0 0
  %1450 = vmatpush1.bf16.msra.mxu0 0
  %1451 = vmatprep.subr.bf16.mxu0 0
  %1452 = vmatpush1.bf16.msra.mxu0 0
  %1453 = vmatprep.subr.bf16.mxu0 0
  %1454 = vmatpush1.bf16.msra.mxu0 0
  %1455 = vmatprep.subr.bf16.mxu0 0
  %1456 = vmatpush1.bf16.msra.mxu0 0
  %1457 = vmatprep.subr.bf16.mxu0 0
  %1458 = vmatpush1.bf16.msra.mxu0 0
  %1459 = vmatprep.subr.bf16.mxu0 0
  %1460 = vmatpush1.bf16.msra.mxu0 0
  %1461 = vmatprep.subr.bf16.mxu0 0
  %1462 = vmatpush1.bf16.msra.mxu0 0
  %1463 = vmatprep.subr.bf16.mxu0 0
  %1464 = vmatpush1.bf16.msra.mxu0 0
  %1465 = vmatprep.subr.bf16.mxu0 0
  %1466 = vmatpush1.bf16.msra.mxu0 0
  %1467 = vmatprep.subr.bf16.mxu0 0
  %1468 = vmatpush1.bf16.msra.mxu0 0
  %1469 = vmatprep.mubr.bf16.mxu0 0
  %1470 = vmatmul.mubr.bf16.gmra.mrb[0].mxu0 %v1435
  %v1471 = vpop.f32.mrb[0].mxu0
  %v1472 = vadd.f32 0.0, %v1471
  %v1473 = vpop.f32.mrb[0].mxu0
  %v1474 = vpop.f32.mrb[0].mxu0
  %v1475 = vpop.f32.mrb[0].mxu0
  %1476 = vdwg.mxu0
  %v1477 = vadd.f32 %v1415, %v1472
  %v1478 = vxor.u32 %v1477, 2147483648
  %v1479 = vmul.f32 %v1478, 1.442695
  %v1480 = vpow.pop %v1479
  %v1481 = vadd.f32 %v1480, 1.0
  %v1482 = vrcp.pop %v1481
  %v1483 = vmul.f32 1.0, %v1482
  %v1484 = vtanh.pop %v1477
  %v1485 = vld [vmem:[#allocation5] sm:$0xff]
  %1487 = vrot.lane.b32.xlu0 %v1485, 32
  %v1488 = vpop.permute.xlu0 %1487
  %v1490 = vmul.f32 %v1483, %v1488
  %1492 = vrot.lane.b32.xlu0 %v1484, 64
  %v1493 = vpop.permute.xlu0 %1492
  %v1495 = vmul.f32 %v1483, %v1493
  %1497 = vrot.lane.b32.xlu0 %v1495, 32
  %v1498 = vpop.permute.xlu0 %1497
  %v1500 = vadd.f32 %v1490, %v1498
  %v1501 = vtanh.pop %v1500
  %1503 = vrot.lane.b32.xlu0 %v1501, 64
  %v1504 = vpop.permute.xlu0 %1503
  %v1506 = vmul.f32 %v1483, %v1504
  %v1507 = vsel %vm908, %v1500, %v1488
  %1509 = vrot.lane.b32.xlu0 %v1507, 96
  %v1510 = vpop.permute.xlu0 %1509
  %1512 = vst.msk [vmem:[#allocation5] sm:$0xff] %vm178, %v1510
  %v1513 = vld [vmem:[#allocation4] sm:$0xff]
  %1515 = vrot.lane.b32.xlu0 %v1513, 96
  %v1516 = vpop.permute.xlu0 %1515
  %v1518 = vsel %vm908, %v1506, %v1516
  %1520 = vrot.lane.b32.xlu0 %v1518, 32
  %v1521 = vpop.permute.xlu0 %1520
  %1523 = vst.msk [vmem:[#allocation4] sm:$0xff] %vm178, %v1521
  %v1524 = vsel %vm908, %v1506, 0.0
  %1526 = vrot.lane.b32.xlu0 %v1524, 32
  %v1527 = vpop.permute.xlu0 %1526
  %s1529 = scalar_lea.vmem %s6, 40
  %1530 = vst.msk [vmem:[%s1529] sm:$0xff] %vm178, %v1527
  %v1531 = vld [vmem:[%s685 + $0x8] sm:$0xff]
  %v1532 = vld [vmem:[#allocation6] sm:$0xff]
  %v1533 = vpack.c.bf16 %v1532, %v1532
  %v1534 = vld [vmem:[%s5] sm:$0xf]
  %v1535 = vld [vmem:[%s5 + $0x4] sm:$0xf]
  %v1536 = vld [vmem:[%s5 + $0x8] sm:$0xf]
  %v1537 = vld [vmem:[%s5 + $0xc] sm:$0xf]
  %v1542 = vunpack.c.l.b16 %v1534
  %v1543 = vunpack.c.l.b16 %v1535
  %v1544 = vunpack.c.l.b16 %v1536
  %v1545 = vunpack.c.l.b16 %v1537
  %v1546 = vpack.c.b16 %v1543, %v1542
  %v1547 = vpack.c.b16 %v1545, %v1544
  %v1551 = vsel %vm178, %v1533, 0
  %1553 = vmatprep.subr.bf16.mxu0 0
  %1554 = vmatpush1.bf16.msra.mxu0 %v1546
  %1555 = vmatprep.subr.bf16.mxu0 0
  %1556 = vmatpush1.bf16.msra.mxu0 %v1547
  %1557 = vmatprep.subr.bf16.mxu0 0
  %1558 = vmatpush1.bf16.msra.mxu0 0
  %1559 = vmatprep.subr.bf16.mxu0 0
  %1560 = vmatpush1.bf16.msra.mxu0 0
  %1561 = vmatprep.subr.bf16.mxu0 0
  %1562 = vmatpush1.bf16.msra.mxu0 0
  %1563 = vmatprep.subr.bf16.mxu0 0
  %1564 = vmatpush1.bf16.msra.mxu0 0
  %1565 = vmatprep.subr.bf16.mxu0 0
  %1566 = vmatpush1.bf16.msra.mxu0 0
  %1567 = vmatprep.subr.bf16.mxu0 0
  %1568 = vmatpush1.bf16.msra.mxu0 0
  %1569 = vmatprep.subr.bf16.mxu0 0
  %1570 = vmatpush1.bf16.msra.mxu0 0
  %1571 = vmatprep.subr.bf16.mxu0 0
  %1572 = vmatpush1.bf16.msra.mxu0 0
  %1573 = vmatprep.subr.bf16.mxu0 0
  %1574 = vmatpush1.bf16.msra.mxu0 0
  %1575 = vmatprep.subr.bf16.mxu0 0
  %1576 = vmatpush1.bf16.msra.mxu0 0
  %1577 = vmatprep.subr.bf16.mxu0 0
  %1578 = vmatpush1.bf16.msra.mxu0 0
  %1579 = vmatprep.subr.bf16.mxu0 0
  %1580 = vmatpush1.bf16.msra.mxu0 0
  %1581 = vmatprep.subr.bf16.mxu0 0
  %1582 = vmatpush1.bf16.msra.mxu0 0
  %1583 = vmatprep.subr.bf16.mxu0 0
  %1584 = vmatpush1.bf16.msra.mxu0 0
  %1585 = vmatprep.mubr.bf16.mxu0 0
  %1586 = vmatmul.mubr.bf16.gmra.mrb[0].mxu0 %v1551
  %v1587 = vpop.f32.mrb[0].mxu0
  %v1588 = vadd.f32 0.0, %v1587
  %v1589 = vpop.f32.mrb[0].mxu0
  %v1590 = vpop.f32.mrb[0].mxu0
  %v1591 = vpop.f32.mrb[0].mxu0
  %1592 = vdwg.mxu0
  %v1593 = vadd.f32 %v1531, %v1588
  %v1594 = vxor.u32 %v1593, 2147483648
  %v1595 = vmul.f32 %v1594, 1.442695
  %v1596 = vpow.pop %v1595
  %v1597 = vadd.f32 %v1596, 1.0
  %v1598 = vrcp.pop %v1597
  %v1599 = vmul.f32 1.0, %v1598
  %v1600 = vtanh.pop %v1593
  %v1601 = vld [vmem:[#allocation7] sm:$0xff]
  %1603 = vrot.lane.b32.xlu0 %v1601, 32
  %v1604 = vpop.permute.xlu0 %1603
  %v1606 = vmul.f32 %v1599, %v1604
  %1608 = vrot.lane.b32.xlu0 %v1600, 64
  %v1609 = vpop.permute.xlu0 %1608
  %v1611 = vmul.f32 %v1599, %v1609
  %1613 = vrot.lane.b32.xlu0 %v1611, 32
  %v1614 = vpop.permute.xlu0 %1613
  %v1616 = vadd.f32 %v1606, %v1614
  %v1617 = vtanh.pop %v1616
  %1619 = vrot.lane.b32.xlu0 %v1617, 64
  %v1620 = vpop.permute.xlu0 %1619
  %v1622 = vmul.f32 %v1599, %v1620
  %v1623 = vsel %vm783, %v1616, %v1604
  %1625 = vrot.lane.b32.xlu0 %v1623, 96
  %v1626 = vpop.permute.xlu0 %1625
  %1628 = vst.msk [vmem:[#allocation7] sm:$0xff] %vm178, %v1626
  %v1629 = vld [vmem:[#allocation6] sm:$0xff]
  %1631 = vrot.lane.b32.xlu0 %v1629, 96
  %v1632 = vpop.permute.xlu0 %1631
  %v1634 = vsel %vm783, %v1622, %v1632
  %1636 = vrot.lane.b32.xlu0 %v1634, 32
  %v1637 = vpop.permute.xlu0 %1636
  %1639 = vst.msk [vmem:[#allocation6] sm:$0xff] %vm178, %v1637
  %v1640 = vsel %vm783, %v1622, 0.0
  %1642 = vrot.lane.b32.xlu0 %v1640, 32
  %v1643 = vpop.permute.xlu0 %1642
  %s1645 = scalar_lea.vmem [#allocation3], 16
  %1646 = vst.msk [vmem:[%s1645] sm:$0xff] %vm178, %v1643
  %v1647 = vld [vmem:[%s560] sm:$0xff]
  %v1648 = vld [vmem:[#allocation4] sm:$0xff]
  %v1649 = vpack.c.bf16 %v1648, %v1648
  %v1650 = vld [vmem:[%s4] sm:$0xf]
  %v1651 = vld [vmem:[%s4 + $0x4] sm:$0xf]
  %v1652 = vld [vmem:[%s4 + $0x8] sm:$0xf]
  %v1653 = vld [vmem:[%s4 + $0xc] sm:$0xf]
  %v1658 = vunpack.c.l.b16 %v1650
  %v1659 = vunpack.c.l.b16 %v1651
  %v1660 = vunpack.c.l.b16 %v1652
  %v1661 = vunpack.c.l.b16 %v1653
  %v1662 = vpack.c.b16 %v1659, %v1658
  %v1663 = vpack.c.b16 %v1661, %v1660
  %v1667 = vsel %vm178, %v1649, 0
  %1669 = vmatprep.subr.bf16.mxu0 0
  %1670 = vmatpush1.bf16.msra.mxu0 %v1662
  %1671 = vmatprep.subr.bf16.mxu0 0
  %1672 = vmatpush1.bf16.msra.mxu0 %v1663
  %1673 = vmatprep.subr.bf16.mxu0 0
  %1674 = vmatpush1.bf16.msra.mxu0 0
  %1675 = vmatprep.subr.bf16.mxu0 0
  %1676 = vmatpush1.bf16.msra.mxu0 0
  %1677 = vmatprep.subr.bf16.mxu0 0
  %1678 = vmatpush1.bf16.msra.mxu0 0
  %1679 = vmatprep.subr.bf16.mxu0 0
  %1680 = vmatpush1.bf16.msra.mxu0 0
  %1681 = vmatprep.subr.bf16.mxu0 0
  %1682 = vmatpush1.bf16.msra.mxu0 0
  %1683 = vmatprep.subr.bf16.mxu0 0
  %1684 = vmatpush1.bf16.msra.mxu0 0
  %1685 = vmatprep.subr.bf16.mxu0 0
  %1686 = vmatpush1.bf16.msra.mxu0 0
  %1687 = vmatprep.subr.bf16.mxu0 0
  %1688 = vmatpush1.bf16.msra.mxu0 0
  %1689 = vmatprep.subr.bf16.mxu0 0
  %1690 = vmatpush1.bf16.msra.mxu0 0
  %1691 = vmatprep.subr.bf16.mxu0 0
  %1692 = vmatpush1.bf16.msra.mxu0 0
  %1693 = vmatprep.subr.bf16.mxu0 0
  %1694 = vmatpush1.bf16.msra.mxu0 0
  %1695 = vmatprep.subr.bf16.mxu0 0
  %1696 = vmatpush1.bf16.msra.mxu0 0
  %1697 = vmatprep.subr.bf16.mxu0 0
  %1698 = vmatpush1.bf16.msra.mxu0 0
  %1699 = vmatprep.subr.bf16.mxu0 0
  %1700 = vmatpush1.bf16.msra.mxu0 0
  %1701 = vmatprep.mubr.bf16.mxu0 0
  %1702 = vmatmul.mubr.bf16.gmra.mrb[0].mxu0 %v1667
  %v1703 = vpop.f32.mrb[0].mxu0
  %v1704 = vadd.f32 0.0, %v1703
  %v1705 = vpop.f32.mrb[0].mxu0
  %v1706 = vpop.f32.mrb[0].mxu0
  %v1707 = vpop.f32.mrb[0].mxu0
  %1708 = vdwg.mxu0
  %v1709 = vadd.f32 %v1647, %v1704
  %v1710 = vxor.u32 %v1709, 2147483648
  %v1711 = vmul.f32 %v1710, 1.442695
  %v1712 = vpow.pop %v1711
  %v1713 = vadd.f32 %v1712, 1.0
  %v1714 = vrcp.pop %v1713
  %v1715 = vmul.f32 1.0, %v1714
  %v1716 = vtanh.pop %v1709
  %v1717 = vld [vmem:[#allocation5] sm:$0xff]
  %1719 = vrot.lane.b32.xlu0 %v1717, 32
  %v1720 = vpop.permute.xlu0 %1719
  %v1722 = vmul.f32 %v1715, %v1720
  %1724 = vrot.lane.b32.xlu0 %v1716, 64
  %v1725 = vpop.permute.xlu0 %1724
  %v1727 = vmul.f32 %v1715, %v1725
  %1729 = vrot.lane.b32.xlu0 %v1727, 32
  %v1730 = vpop.permute.xlu0 %1729
  %v1732 = vadd.f32 %v1722, %v1730
  %v1733 = vtanh.pop %v1732
  %1735 = vrot.lane.b32.xlu0 %v1733, 64
  %v1736 = vpop.permute.xlu0 %1735
  %v1738 = vmul.f32 %v1715, %v1736
  %v1739 = vsel %vm658, %v1732, %v1720
  %1741 = vrot.lane.b32.xlu0 %v1739, 96
  %v1742 = vpop.permute.xlu0 %1741
  %1744 = vst.msk [vmem:[#allocation5] sm:$0xff] %vm178, %v1742
  %v1745 = vld [vmem:[#allocation4] sm:$0xff]
  %1747 = vrot.lane.b32.xlu0 %v1745, 96
  %v1748 = vpop.permute.xlu0 %1747
  %v1750 = vsel %vm658, %v1738, %v1748
  %1752 = vrot.lane.b32.xlu0 %v1750, 32
  %v1753 = vpop.permute.xlu0 %1752
  %1755 = vst.msk [vmem:[#allocation4] sm:$0xff] %vm178, %v1753
  %v1756 = vsel %vm658, %v1738, 0.0
  %1758 = vrot.lane.b32.xlu0 %v1756, 32
  %v1759 = vpop.permute.xlu0 %1758
  %s1761 = scalar_lea.vmem %s6, 48
  %1762 = vst.msk [vmem:[%s1761] sm:$0xff] %vm178, %v1759
  %v1763 = vld [vmem:[%s435 + $0x8] sm:$0xff]
  %v1764 = vld [vmem:[#allocation6] sm:$0xff]
  %v1765 = vpack.c.bf16 %v1764, %v1764
  %v1766 = vld [vmem:[%s5] sm:$0xf]
  %v1767 = vld [vmem:[%s5 + $0x4] sm:$0xf]
  %v1768 = vld [vmem:[%s5 + $0x8] sm:$0xf]
  %v1769 = vld [vmem:[%s5 + $0xc] sm:$0xf]
  %v1774 = vunpack.c.l.b16 %v1766
  %v1775 = vunpack.c.l.b16 %v1767
  %v1776 = vunpack.c.l.b16 %v1768
  %v1777 = vunpack.c.l.b16 %v1769
  %v1778 = vpack.c.b16 %v1775, %v1774
  %v1779 = vpack.c.b16 %v1777, %v1776
  %v1783 = vsel %vm178, %v1765, 0
  %1785 = vmatprep.subr.bf16.mxu0 0
  %1786 = vmatpush1.bf16.msra.mxu0 %v1778
  %1787 = vmatprep.subr.bf16.mxu0 0
  %1788 = vmatpush1.bf16.msra.mxu0 %v1779
  %1789 = vmatprep.subr.bf16.mxu0 0
  %1790 = vmatpush1.bf16.msra.mxu0 0
  %1791 = vmatprep.subr.bf16.mxu0 0
  %1792 = vmatpush1.bf16.msra.mxu0 0
  %1793 = vmatprep.subr.bf16.mxu0 0
  %1794 = vmatpush1.bf16.msra.mxu0 0
  %1795 = vmatprep.subr.bf16.mxu0 0
  %1796 = vmatpush1.bf16.msra.mxu0 0
  %1797 = vmatprep.subr.bf16.mxu0 0
  %1798 = vmatpush1.bf16.msra.mxu0 0
  %1799 = vmatprep.subr.bf16.mxu0 0
  %1800 = vmatpush1.bf16.msra.mxu0 0
  %1801 = vmatprep.subr.bf16.mxu0 0
  %1802 = vmatpush1.bf16.msra.mxu0 0
  %1803 = vmatprep.subr.bf16.mxu0 0
  %1804 = vmatpush1.bf16.msra.mxu0 0
  %1805 = vmatprep.subr.bf16.mxu0 0
  %1806 = vmatpush1.bf16.msra.mxu0 0
  %1807 = vmatprep.subr.bf16.mxu0 0
  %1808 = vmatpush1.bf16.msra.mxu0 0
  %1809 = vmatprep.subr.bf16.mxu0 0
  %1810 = vmatpush1.bf16.msra.mxu0 0
  %1811 = vmatprep.subr.bf16.mxu0 0
  %1812 = vmatpush1.bf16.msra.mxu0 0
  %1813 = vmatprep.subr.bf16.mxu0 0
  %1814 = vmatpush1.bf16.msra.mxu0 0
  %1815 = vmatprep.subr.bf16.mxu0 0
  %1816 = vmatpush1.bf16.msra.mxu0 0
  %1817 = vmatprep.mubr.bf16.mxu0 0
  %1818 = vmatmul.mubr.bf16.gmra.mrb[0].mxu0 %v1783
  %v1819 = vpop.f32.mrb[0].mxu0
  %v1820 = vadd.f32 0.0, %v1819
  %v1821 = vpop.f32.mrb[0].mxu0
  %v1822 = vpop.f32.mrb[0].mxu0
  %v1823 = vpop.f32.mrb[0].mxu0
  %1824 = vdwg.mxu0
  %v1825 = vadd.f32 %v1763, %v1820
  %v1826 = vxor.u32 %v1825, 2147483648
  %v1827 = vmul.f32 %v1826, 1.442695
  %v1828 = vpow.pop %v1827
  %v1829 = vadd.f32 %v1828, 1.0
  %v1830 = vrcp.pop %v1829
  %v1831 = vmul.f32 1.0, %v1830
  %v1832 = vtanh.pop %v1825
  %v1833 = vld [vmem:[#allocation7] sm:$0xff]
  %1835 = vrot.lane.b32.xlu0 %v1833, 32
  %v1836 = vpop.permute.xlu0 %1835
  %v1838 = vmul.f32 %v1831, %v1836
  %1840 = vrot.lane.b32.xlu0 %v1832, 64
  %v1841 = vpop.permute.xlu0 %1840
  %v1843 = vmul.f32 %v1831, %v1841
  %1845 = vrot.lane.b32.xlu0 %v1843, 32
  %v1846 = vpop.permute.xlu0 %1845
  %v1848 = vadd.f32 %v1838, %v1846
  %v1849 = vtanh.pop %v1848
  %1851 = vrot.lane.b32.xlu0 %v1849, 64
  %v1852 = vpop.permute.xlu0 %1851
  %v1854 = vmul.f32 %v1831, %v1852
  %v1855 = vsel %vm533, %v1848, %v1836
  %1857 = vrot.lane.b32.xlu0 %v1855, 96
  %v1858 = vpop.permute.xlu0 %1857
  %1860 = vst.msk [vmem:[#allocation7] sm:$0xff] %vm178, %v1858
  %v1861 = vld [vmem:[#allocation6] sm:$0xff]
  %1863 = vrot.lane.b32.xlu0 %v1861, 96
  %v1864 = vpop.permute.xlu0 %1863
  %v1866 = vsel %vm533, %v1854, %v1864
  %1868 = vrot.lane.b32.xlu0 %v1866, 32
  %v1869 = vpop.permute.xlu0 %1868
  %1871 = vst.msk [vmem:[#allocation6] sm:$0xff] %vm178, %v1869
  %v1872 = vsel %vm533, %v1854, 0.0
  %1874 = vrot.lane.b32.xlu0 %v1872, 32
  %v1875 = vpop.permute.xlu0 %1874
  %s1877 = scalar_lea.vmem [#allocation3], 8
  %1878 = vst.msk [vmem:[%s1877] sm:$0xff] %vm178, %v1875
  %v1879 = vld [vmem:[%s310] sm:$0xff]
  %v1880 = vld [vmem:[#allocation4] sm:$0xff]
  %v1881 = vpack.c.bf16 %v1880, %v1880
  %v1882 = vld [vmem:[%s4] sm:$0xf]
  %v1883 = vld [vmem:[%s4 + $0x4] sm:$0xf]
  %v1884 = vld [vmem:[%s4 + $0x8] sm:$0xf]
  %v1885 = vld [vmem:[%s4 + $0xc] sm:$0xf]
  %v1890 = vunpack.c.l.b16 %v1882
  %v1891 = vunpack.c.l.b16 %v1883
  %v1892 = vunpack.c.l.b16 %v1884
  %v1893 = vunpack.c.l.b16 %v1885
  %v1894 = vpack.c.b16 %v1891, %v1890
  %v1895 = vpack.c.b16 %v1893, %v1892
  %v1899 = vsel %vm178, %v1881, 0
  %1901 = vmatprep.subr.bf16.mxu0 0
  %1902 = vmatpush1.bf16.msra.mxu0 %v1894
  %1903 = vmatprep.subr.bf16.mxu0 0
  %1904 = vmatpush1.bf16.msra.mxu0 %v1895
  %1905 = vmatprep.subr.bf16.mxu0 0
  %1906 = vmatpush1.bf16.msra.mxu0 0
  %1907 = vmatprep.subr.bf16.mxu0 0
  %1908 = vmatpush1.bf16.msra.mxu0 0
  %1909 = vmatprep.subr.bf16.mxu0 0
  %1910 = vmatpush1.bf16.msra.mxu0 0
  %1911 = vmatprep.subr.bf16.mxu0 0
  %1912 = vmatpush1.bf16.msra.mxu0 0
  %1913 = vmatprep.subr.bf16.mxu0 0
  %1914 = vmatpush1.bf16.msra.mxu0 0
  %1915 = vmatprep.subr.bf16.mxu0 0
  %1916 = vmatpush1.bf16.msra.mxu0 0
  %1917 = vmatprep.subr.bf16.mxu0 0
  %1918 = vmatpush1.bf16.msra.mxu0 0
  %1919 = vmatprep.subr.bf16.mxu0 0
  %1920 = vmatpush1.bf16.msra.mxu0 0
  %1921 = vmatprep.subr.bf16.mxu0 0
  %1922 = vmatpush1.bf16.msra.mxu0 0
  %1923 = vmatprep.subr.bf16.mxu0 0
  %1924 = vmatpush1.bf16.msra.mxu0 0
  %1925 = vmatprep.subr.bf16.mxu0 0
  %1926 = vmatpush1.bf16.msra.mxu0 0
  %1927 = vmatprep.subr.bf16.mxu0 0
  %1928 = vmatpush1.bf16.msra.mxu0 0
  %1929 = vmatprep.subr.bf16.mxu0 0
  %1930 = vmatpush1.bf16.msra.mxu0 0
  %1931 = vmatprep.subr.bf16.mxu0 0
  %1932 = vmatpush1.bf16.msra.mxu0 0
  %1933 = vmatprep.mubr.bf16.mxu0 0
  %1934 = vmatmul.mubr.bf16.gmra.mrb[0].mxu0 %v1899
  %v1935 = vpop.f32.mrb[0].mxu0
  %v1936 = vadd.f32 0.0, %v1935
  %v1937 = vpop.f32.mrb[0].mxu0
  %v1938 = vpop.f32.mrb[0].mxu0
  %v1939 = vpop.f32.mrb[0].mxu0
  %1940 = vdwg.mxu0
  %v1941 = vadd.f32 %v1879, %v1936
  %v1942 = vxor.u32 %v1941, 2147483648
  %v1943 = vmul.f32 %v1942, 1.442695
  %v1944 = vpow.pop %v1943
  %v1945 = vadd.f32 %v1944, 1.0
  %v1946 = vrcp.pop %v1945
  %v1947 = vmul.f32 1.0, %v1946
  %v1948 = vtanh.pop %v1941
  %v1949 = vld [vmem:[#allocation5] sm:$0xff]
  %1951 = vrot.lane.b32.xlu0 %v1949, 32
  %v1952 = vpop.permute.xlu0 %1951
  %v1954 = vmul.f32 %v1947, %v1952
  %1956 = vrot.lane.b32.xlu0 %v1948, 64
  %v1957 = vpop.permute.xlu0 %1956
  %v1959 = vmul.f32 %v1947, %v1957
  %1961 = vrot.lane.b32.xlu0 %v1959, 32
  %v1962 = vpop.permute.xlu0 %1961
  %v1964 = vadd.f32 %v1954, %v1962
  %v1965 = vtanh.pop %v1964
  %1967 = vrot.lane.b32.xlu0 %v1965, 64
  %v1968 = vpop.permute.xlu0 %1967
  %v1970 = vmul.f32 %v1947, %v1968
  %v1971 = vsel %vm408, %v1964, %v1952
  %1973 = vrot.lane.b32.xlu0 %v1971, 96
  %v1974 = vpop.permute.xlu0 %1973
  %1976 = vst.msk [vmem:[#allocation5] sm:$0xff] %vm178, %v1974
  %v1977 = vld [vmem:[#allocation4] sm:$0xff]
  %1979 = vrot.lane.b32.xlu0 %v1977, 96
  %v1980 = vpop.permute.xlu0 %1979
  %v1982 = vsel %vm408, %v1970, %v1980
  %1984 = vrot.lane.b32.xlu0 %v1982, 32
  %v1985 = vpop.permute.xlu0 %1984
  %1987 = vst.msk [vmem:[#allocation4] sm:$0xff] %vm178, %v1985
  %v1988 = vsel %vm408, %v1970, 0.0
  %1990 = vrot.lane.b32.xlu0 %v1988, 32
  %v1991 = vpop.permute.xlu0 %1990
  %s1993 = scalar_lea.vmem %s6, 56
  %1994 = vst.msk [vmem:[%s1993] sm:$0xff] %vm178, %v1991
  %v1995 = vld [vmem:[%s186 + $0x8] sm:$0xff]
  %v1996 = vld [vmem:[#allocation6] sm:$0xff]
  %v1997 = vpack.c.bf16 %v1996, %v1996
  %v1998 = vld [vmem:[%s5] sm:$0xf]
  %v1999 = vld [vmem:[%s5 + $0x4] sm:$0xf]
  %v2000 = vld [vmem:[%s5 + $0x8] sm:$0xf]
  %v2001 = vld [vmem:[%s5 + $0xc] sm:$0xf]
  %v2006 = vunpack.c.l.b16 %v1998
  %v2007 = vunpack.c.l.b16 %v1999
  %v2008 = vunpack.c.l.b16 %v2000
  %v2009 = vunpack.c.l.b16 %v2001
  %v2010 = vpack.c.b16 %v2007, %v2006
  %v2011 = vpack.c.b16 %v2009, %v2008
  %v2015 = vsel %vm178, %v1997, 0
  %2017 = vmatprep.subr.bf16.mxu0 0
  %2018 = vmatpush1.bf16.msra.mxu0 %v2010
  %2019 = vmatprep.subr.bf16.mxu0 0
  %2020 = vmatpush1.bf16.msra.mxu0 %v2011
  %2021 = vmatprep.subr.bf16.mxu0 0
  %2022 = vmatpush1.bf16.msra.mxu0 0
  %2023 = vmatprep.subr.bf16.mxu0 0
  %2024 = vmatpush1.bf16.msra.mxu0 0
  %2025 = vmatprep.subr.bf16.mxu0 0
  %2026 = vmatpush1.bf16.msra.mxu0 0
  %2027 = vmatprep.subr.bf16.mxu0 0
  %2028 = vmatpush1.bf16.msra.mxu0 0
  %2029 = vmatprep.subr.bf16.mxu0 0
  %2030 = vmatpush1.bf16.msra.mxu0 0
  %2031 = vmatprep.subr.bf16.mxu0 0
  %2032 = vmatpush1.bf16.msra.mxu0 0
  %2033 = vmatprep.subr.bf16.mxu0 0
  %2034 = vmatpush1.bf16.msra.mxu0 0
  %2035 = vmatprep.subr.bf16.mxu0 0
  %2036 = vmatpush1.bf16.msra.mxu0 0
  %2037 = vmatprep.subr.bf16.mxu0 0
  %2038 = vmatpush1.bf16.msra.mxu0 0
  %2039 = vmatprep.subr.bf16.mxu0 0
  %2040 = vmatpush1.bf16.msra.mxu0 0
  %2041 = vmatprep.subr.bf16.mxu0 0
  %2042 = vmatpush1.bf16.msra.mxu0 0
  %2043 = vmatprep.subr.bf16.mxu0 0
  %2044 = vmatpush1.bf16.msra.mxu0 0
  %2045 = vmatprep.subr.bf16.mxu0 0
  %2046 = vmatpush1.bf16.msra.mxu0 0
  %2047 = vmatprep.subr.bf16.mxu0 0
  %2048 = vmatpush1.bf16.msra.mxu0 0
  %2049 = vmatprep.mubr.bf16.mxu0 0
  %2050 = vmatmul.mubr.bf16.gmra.mrb[0].mxu0 %v2015
  %v2051 = vpop.f32.mrb[0].mxu0
  %v2052 = vadd.f32 0.0, %v2051
  %v2053 = vpop.f32.mrb[0].mxu0
  %v2054 = vpop.f32.mrb[0].mxu0
  %v2055 = vpop.f32.mrb[0].mxu0
  %2056 = vdwg.mxu0
  %v2057 = vadd.f32 %v1995, %v2052
  %v2058 = vxor.u32 %v2057, 2147483648
  %v2059 = vmul.f32 %v2058, 1.442695
  %v2060 = vpow.pop %v2059
  %v2061 = vadd.f32 %v2060, 1.0
  %v2062 = vrcp.pop %v2061
  %v2063 = vmul.f32 1.0, %v2062
  %v2064 = vtanh.pop %v2057
  %v2065 = vld [vmem:[#allocation7] sm:$0xff]
  %2067 = vrot.lane.b32.xlu0 %v2065, 32
  %v2068 = vpop.permute.xlu0 %2067
  %v2070 = vmul.f32 %v2063, %v2068
  %2072 = vrot.lane.b32.xlu0 %v2064, 64
  %v2073 = vpop.permute.xlu0 %2072
  %v2075 = vmul.f32 %v2063, %v2073
  %2077 = vrot.lane.b32.xlu0 %v2075, 32
  %v2078 = vpop.permute.xlu0 %2077
  %v2080 = vadd.f32 %v2070, %v2078
  %v2081 = vtanh.pop %v2080
  %2083 = vrot.lane.b32.xlu0 %v2081, 64
  %v2084 = vpop.permute.xlu0 %2083
  %v2086 = vmul.f32 %v2063, %v2084
  %v2087 = vsel %vm284, %v2080, %v2068
  %2089 = vrot.lane.b32.xlu0 %v2087, 96
  %v2090 = vpop.permute.xlu0 %2089
  %2092 = vst.msk [vmem:[#allocation7] sm:$0xff] %vm178, %v2090
  %v2093 = vld [vmem:[#allocation6] sm:$0xff]
  %2095 = vrot.lane.b32.xlu0 %v2093, 96
  %v2096 = vpop.permute.xlu0 %2095
  %v2098 = vsel %vm284, %v2086, %v2096
  %2100 = vrot.lane.b32.xlu0 %v2098, 32
  %v2101 = vpop.permute.xlu0 %2100
  %2103 = vst.msk [vmem:[#allocation6] sm:$0xff] %vm178, %v2101
  %v2104 = vsel %vm284, %v2086, 0.0
  %2106 = vrot.lane.b32.xlu0 %v2104, 32
  %v2107 = vpop.permute.xlu0 %2106
  %2109 = vst.msk [vmem:[#allocation3] sm:$0xff] %vm178, %v2107
  %v2110 = vld [vmem:[%s6] sm:$0xff]
  %v2111 = vld [vmem:[%s6 + $0x8] sm:$0xff]
  %v2112 = vld [vmem:[%s6 + $0x10] sm:$0xff]
  %v2113 = vld [vmem:[%s6 + $0x18] sm:$0xff]
  %v2114 = vld [vmem:[%s6 + $0x20] sm:$0xff]
  %v2115 = vld [vmem:[%s6 + $0x28] sm:$0xff]
  %v2116 = vld [vmem:[%s6 + $0x30] sm:$0xff]
  %v2117 = vld [vmem:[%s6 + $0x38] sm:$0xff]
  %v2118 = vld [vmem:[#allocation3] sm:$0xff]
  %v2119 = vld [vmem:[#allocation3 + $0x8] sm:$0xff]
  %v2120 = vld [vmem:[#allocation3 + $0x10] sm:$0xff]
  %v2121 = vld [vmem:[#allocation3 + $0x18] sm:$0xff]
  %v2122 = vld [vmem:[#allocation3 + $0x20] sm:$0xff]
  %v2123 = vld [vmem:[#allocation3 + $0x28] sm:$0xff]
  %v2124 = vld [vmem:[#allocation3 + $0x30] sm:$0xff]
  %v2125 = vld [vmem:[#allocation3 + $0x38] sm:$0xff]
  %v2126 = vadd.f32 %v2110, %v2118
  %v2127 = vadd.f32 %v2111, %v2119
  %v2128 = vadd.f32 %v2112, %v2120
  %v2129 = vadd.f32 %v2113, %v2121
  %v2130 = vadd.f32 %v2114, %v2122
  %v2131 = vadd.f32 %v2115, %v2123
  %v2132 = vadd.f32 %v2116, %v2124
  %v2133 = vadd.f32 %v2117, %v2125
  %2134 = vst.msk [vmem:[%s6] sm:$0xff] %vm178, %v2126
  %2135 = vst.msk [vmem:[%s6 + $0x8] sm:$0xff] %vm178, %v2127
  %2136 = vst.msk [vmem:[%s6 + $0x10] sm:$0xff] %vm178, %v2128
  %2137 = vst.msk [vmem:[%s6 + $0x18] sm:$0xff] %vm178, %v2129
  %2138 = vst.msk [vmem:[%s6 + $0x20] sm:$0xff] %vm178, %v2130
  %2139 = vst.msk [vmem:[%s6 + $0x28] sm:$0xff] %vm178, %v2131
  %2140 = vst.msk [vmem:[%s6 + $0x30] sm:$0xff] %vm178, %v2132
  %2141 = vst.msk [vmem:[%s6 + $0x38] sm:$0xff] %vm178, %v2133
  // Predicated region
  $region26: #{tpu_custom_call.1} parent=0 // pred_check
    _
  $region27: #{tpu_custom_call.1} parent=0 // pred_check_branch
    %2143 = sbr.rel (0) target = $region29
  $region28: #{tpu_custom_call.1} parent=0 // pred_region
    _
  $region29: #{tpu_custom_call.1} parent=0 // pred_fallthru
    _
  // Predicated region
  $region30: #{tpu_custom_call.1} parent=0 // pred_check
    _
  $region31: #{tpu_custom_call.1} parent=0 // pred_check_branch
    %2145 = sbr.rel (0) target = $region33
  $region32: #{tpu_custom_call.1} parent=0 // pred_region
    _
  $region33: #{tpu_custom_call.1} parent=0 // pred_fallthru
    _

</llo_original>
